<compile_context>
chip_gen: v6e
topology: v6e:2x2x1
jax: 0.10.0
libtpu: 0.0.40
codegen_flags: <defaults>
</compile_context>

<pallas_src>
import functools

import jax
import jax.numpy as jnp
import numpy as np
from jax.experimental import pallas as pl
from jax.experimental.pallas import tpu as pltpu

EPS = 1e-5      # PyTorch BatchNorm1d default eps
LANES = 128


# --------------------------------------------------------------------------- #
# Fused Pallas kernel: pre-block + all stacks + branch sum, constant length
# --------------------------------------------------------------------------- #
def fused_mdtc_kernel(x_ref, wdw0_ref, b10_ref, wp0_ref, b230_ref, wc0_ref,
                      wdwS_ref, bS_ref, wmS_ref, o_ref, *,
                      K, causal, dilations, stack_size, residual_pre):
    """Entire MDTC block chain for one lane-packed group of batch elements.

    Each TCNBlock: depthwise dilated conv (+folded BN1) -> ReLU ->
    pointwise 1x1 (+folded BN2) -> ReLU -> 1x1 conv (+folded BN3)
    -> (+residual) -> ReLU.  All blocks run at the constant padded length;
    only the (zero-padded) edge region is wrong and it is trimmed in XLA.
    """
    T_in = x_ref.shape[1]

    def shift_rows(x, s):
        # result[t] = x[t - s] with zero fill (s is a static Python int).
        if s == 0:
            return x
        zeros = jnp.zeros((abs(s), x.shape[1]), x.dtype)
        if s > 0:
            return jnp.concatenate([zeros, x[:T_in - s, :]], axis=0)
        return jnp.concatenate([x[-s:, :], zeros], axis=0)

    def block(x, wdw, b1, wp, b2, wc, b3, dilation, residual):
        rf = dilation * (K - 1)
        base = rf if causal else rf // 2
        # Depthwise dilated conv at constant length; BN1 scale folded into
        # wdw, only the additive shift b1 remains.  acc starts with tap 0.
        acc = None
        for k in range(K):
            xs = shift_rows(x, base - k * dilation)
            term = xs * wdw[k:k + 1, :]
            acc = term if acc is None else acc + term
        y1 = jnp.maximum(acc + b1, 0.0)
        # Pointwise (1x1) conv on the MXU: bf16 operands, f32 accumulation.
        y2 = jnp.dot(y1.astype(jnp.bfloat16), wp,
                     preferred_element_type=jnp.float32) + b2
        y2 = jnp.maximum(y2, 0.0)
        # TCNBlock conv2 (1x1); BN3 scale folded into wc.
        y3 = jnp.dot(y2.astype(jnp.bfloat16), wc,
                     preferred_element_type=jnp.float32) + b3
        if residual:
            y3 = y3 + x          # constant-length layout -> offset-0 residual
        return jnp.maximum(y3, 0.0)

    # Pre-processor block (dilation 1).  MDTC's extra ReLU after it is a
    # no-op because the block output is already non-negative.
    b230 = b230_ref[...]
    out = block(x_ref[0], wdw0_ref[...], b10_ref[...], wp0_ref[...],
                b230[0:1, :], wc0_ref[...], b230[1:2, :], 1, residual_pre)

    acc_sum = None
    # TODO(synk): for much larger stack_num*stack_size switch to a per-stack
    # lax.fori_loop over the stacked weight arrays to bound vreg live ranges.
    for blk in range(len(dilations)):
        b = bS_ref[blk]                       # (3, GC): b1 / b2 / b3
        out = block(out, wdwS_ref[blk], b[0:1, :], wmS_ref[2 * blk],
                    b[1:2, :], wmS_ref[2 * blk + 1], b[2:3, :],
                    dilations[blk], True)
        # End of a stack -> branch output; all branches share the constant
        # length so the multi-scale sum needs no per-branch trimming.
        if (blk + 1) % stack_size == 0:
            acc_sum = out if acc_sum is None else acc_sum + out

    o_ref[0] = acc_sum


def mdtc_fused(xp, packed, *, kernel_size, causal, stack_size, residual_pre):
    NB, T_in, GCin = xp.shape
    GC = packed["wc0"].shape[1]
    dilations = packed["dilations"]

    kern = functools.partial(
        fused_mdtc_kernel, K=kernel_size, causal=causal, dilations=dilations,
        stack_size=stack_size, residual_pre=residual_pre)

    def full_spec(a):
        n = a.ndim
        return pl.BlockSpec(a.shape, lambda b, n=n: (0,) * n)

    weights = [packed[k] for k in
               ("wdw0", "b10", "wp0", "b230", "wc0", "wdwS", "bS", "wmS")]

    # Advisory cost estimate so XLA can overlap the head/softmax around it.
    n_blk = len(dilations)
    dw_flops = 2 * kernel_size * T_in
    flops = NB * (dw_flops * GCin + 2 * T_in * GCin * GC + 2 * T_in * GC * GC
                  + n_blk * (dw_flops * GC + 4 * T_in * GC * GC))
    w_bytes = sum(int(w.size) * w.dtype.itemsize for w in weights)
    bytes_accessed = NB * T_in * (GCin + GC) * 4 + w_bytes

    return pl.pallas_call(
        kern,
        out_shape=jax.ShapeDtypeStruct((NB, T_in, GC), jnp.float32),
        grid=(NB,),
        in_specs=[pl.BlockSpec((1, T_in, GCin), lambda b: (b, 0, 0))]
                 + [full_spec(w) for w in weights],
        out_specs=pl.BlockSpec((1, T_in, GC), lambda b: (b, 0, 0)),
        compiler_params=pltpu.CompilerParams(
            dimension_semantics=("parallel",),
            vmem_limit_bytes=64 * 1024 * 1024),
        cost_estimate=pl.CostEstimate(
            flops=int(flops), transcendentals=0,
            bytes_accessed=int(bytes_accessed)),
    )(xp, *weights)


# --------------------------------------------------------------------------- #
# Parameter construction (deterministic, synthetic) with BN-scale folding
# --------------------------------------------------------------------------- #
def make_block_params(key, C_in, C_out, K):
    ks = jax.random.split(key, 18)

    def bn(i, C):
        g = 1.0 + 0.1 * jax.random.normal(ks[i], (C,), jnp.float32)
        b = 0.1 * jax.random.normal(ks[i + 1], (C,), jnp.float32)
        m = 0.1 * jax.random.normal(ks[i + 2], (C,), jnp.float32)
        v = jax.random.uniform(ks[i + 3], (C,), jnp.float32, 0.5, 1.5)
        return g, b, m, v

    wdw = 0.3 * jax.random.normal(ks[0], (K, C_in), jnp.float32)   # depthwise
    bdw = 0.1 * jax.random.normal(ks[1], (C_in,), jnp.float32)
    g1, be1, m1, v1 = bn(2, C_in)
    wp = jax.random.normal(ks[6], (C_in, C_out), jnp.float32) / np.sqrt(C_in)
    bp = 0.1 * jax.random.normal(ks[7], (C_out,), jnp.float32)
    g2, be2, m2, v2 = bn(8, C_out)
    wc = jax.random.normal(ks[12], (C_out, C_out), jnp.float32) / np.sqrt(C_out)
    bc = 0.1 * jax.random.normal(ks[13], (C_out,), jnp.float32)
    g3, be3, m3, v3 = bn(14, C_out)

    s1 = g1 / jnp.sqrt(v1 + EPS); b1 = (bdw - m1) * s1 + be1
    s2 = g2 / jnp.sqrt(v2 + EPS); b2 = (bp - m2) * s2 + be2
    s3 = g3 / jnp.sqrt(v3 + EPS); b3 = (bc - m3) * s3 + be3

    # Fold BN scales into the conv weights; store the 1x1 weights in bf16
    # (the deployed MXU precision); depthwise/bias stay f32 for the VPU path.
    wdw_f = wdw * s1[None, :]
    wp_f = (wp * s2[None, :]).astype(jnp.bfloat16)
    wc_f = (wc * s3[None, :]).astype(jnp.bfloat16)
    r = lambda a: a.reshape(1, -1)
    return dict(wdw=wdw_f, b1=r(b1), wp=wp_f, b2=r(b2), wc=wc_f, b3=r(b3))


def make_mdtc_params(key, stack_num, stack_size, in_channels, res_channels,
                     kernel_size, num_classes):
    keys = jax.random.split(key, 2 + stack_num)
    pre = make_block_params(keys[0], in_channels, res_channels, kernel_size)
    blocks, dilations = [], []
    for i in range(stack_num):
        bkeys = jax.random.split(keys[1 + i], stack_size)
        for l in range(stack_size):          # dilations 1, 2, 4, ... per stack
            blocks.append(make_block_params(bkeys[l], res_channels,
                                            res_channels, kernel_size))
            dilations.append(2 ** l)
    stacked = {k: jnp.stack([b[k] for b in blocks], axis=0)
               for k in blocks[0]}
    kd = jax.random.split(keys[-1], 2)
    wd = jax.random.normal(kd[0], (res_channels, num_classes),
                           jnp.float32) / np.sqrt(res_channels)
    bd = 0.1 * jax.random.normal(kd[1], (1, num_classes), jnp.float32)
    return dict(pre=pre, stack=stacked, dilations=tuple(dilations),
                wd=wd, bd=bd)


def pack_params(params, G):
    """Lane-pack weights for G batch elements per grid step (build-time)."""
    pre, stk = params["pre"], params["stack"]
    n_blk = len(params["dilations"])

    def tile_c(a):                # (..., C) -> (..., G*C), batch-major packing
        return jnp.tile(a, (1,) * (a.ndim - 1) + (G,))

    def bdiag(w):                 # (Ci, Co) -> (G*Ci, G*Co), block diagonal
        return jnp.kron(jnp.eye(G, dtype=w.dtype), w)

    wpS = jax.vmap(bdiag)(stk["wp"])                      # (n, GC, GC) bf16
    wcS = jax.vmap(bdiag)(stk["wc"])
    GC = wpS.shape[-1]
    wmS = jnp.stack([wpS, wcS], axis=1).reshape(2 * n_blk, GC, GC)

    return dict(
        wdw0=tile_c(pre["wdw"]),
        b10=tile_c(pre["b1"]),
        wp0=bdiag(pre["wp"]),
        b230=jnp.concatenate([tile_c(pre["b2"]), tile_c(pre["b3"])], axis=0),
        wc0=bdiag(pre["wc"]),
        wdwS=tile_c(stk["wdw"]),
        bS=jnp.concatenate([tile_c(stk["b1"]), tile_c(stk["b2"]),
                            tile_c(stk["b3"])], axis=1),
        wmS=wmS,
        dilations=params["dilations"],
    )


# --------------------------------------------------------------------------- #
# MDTC forward (Pallas fused body + XLA head)
# --------------------------------------------------------------------------- #
def mdtc_forward(x, params, *, stack_num, stack_size, in_channels,
                 res_channels, kernel_size, causal):
    B, T, Cin = x.shape
    C = res_channels
    K = kernel_size
    rf_total = (K - 1) + stack_num * (K - 1) * (2 ** stack_size - 1)

    # Lane-pack G batch elements along the 128-lane channel axis.
    G = max(1, LANES // C)
    B_pad = -(-B // G) * G

    # Zero padding: receptive-field padding (as in the module) plus extra
    # zeros so T_in is a multiple of 8 (full-sublane vregs everywhere).
    if causal:
        extra = (-(T + rf_total)) % 8
        pad_l, pad_r, keep = rf_total + extra, 0, rf_total + extra
    else:
        h = rf_total // 2
        extra = (-(T + 2 * h)) % 8
        pad_l, pad_r, keep = h, h + extra, h
    xp = jnp.pad(x, ((0, B_pad - B), (pad_l, pad_r), (0, 0)))
    T_in = xp.shape[1]
    NB = B_pad // G
    xp = xp.reshape(NB, G, T_in, Cin).transpose(0, 2, 1, 3)
    xp = xp.reshape(NB, T_in, G * Cin)

    packed = pack_params(params, G)   # in deployment this is done at load time
    y = mdtc_fused(xp, packed, kernel_size=K, causal=causal,
                   stack_size=stack_size,
                   residual_pre=(in_channels == res_channels))

    # Unpack lanes -> batch and trim the time padding (layout plumbing in XLA).
    y = y.reshape(NB, T_in, G, C).transpose(0, 2, 1, 3).reshape(B_pad, T_in, C)
    y = y[:B, keep:keep + T, :]

    # Tiny dense head (num_classes=8 would force masked lane stores in-kernel)
    # kept in plain XLA on the lane-dense kernel output.
    logits = jnp.einsum("btc,cn->btn", y, params["wd"],
                        precision=jax.lax.Precision.HIGHEST) + params["bd"]
    return jax.nn.softmax(logits, axis=-1)


# --------------------------------------------------------------------------- #
# Pure-JAX reference (original valid-conv semantics, f32 compute)
# --------------------------------------------------------------------------- #
def tcn_block_ref(x, p, K, dilation, causal, residual):
    rf = dilation * (K - 1)
    T_out = x.shape[1] - rf
    acc = jnp.zeros((x.shape[0], T_out, x.shape[2]), jnp.float32)
    for k in range(K):
        off = k * dilation
        acc = acc + x[:, off:off + T_out, :] * p["wdw"][k][None, None, :]
    y1 = jnp.maximum(acc + p["b1"], 0.0)
    y2 = jnp.einsum("btc,cd->btd", y1, p["wp"].astype(jnp.float32),
                    precision=jax.lax.Precision.HIGHEST)
    y2 = jnp.maximum(y2 + p["b2"], 0.0)
    y3 = jnp.einsum("btc,cd->btd", y2, p["wc"].astype(jnp.float32),
                    precision=jax.lax.Precision.HIGHEST) + p["b3"]
    if residual:
        start = rf if causal else rf // 2
        y3 = y3 + x[:, start:start + T_out, :]
    return jnp.maximum(y3, 0.0)


def mdtc_ref(x, params, *, stack_num, stack_size, in_channels, res_channels,
             kernel_size, causal):
    K = kernel_size
    rf_total = (K - 1) + stack_num * (K - 1) * (2 ** stack_size - 1)
    if causal:
        xp = jnp.pad(x, ((0, 0), (rf_total, 0), (0, 0)))
    else:
        h = rf_total // 2
        xp = jnp.pad(x, ((0, 0), (h, h), (0, 0)))
    out = tcn_block_ref(xp, params["pre"], K, 1, causal,
                        in_channels == res_channels)
    stk, dil = params["stack"], params["dilations"]
    outs = []
    for i, d in enumerate(dil):
        blk_p = {k: stk[k][i] for k in stk}
        out = tcn_block_ref(out, blk_p, K, d, causal, True)
        if (i + 1) % stack_size == 0:
            outs.append(out)
    T_last = outs[-1].shape[1]
    s = None
    for o in outs:
        rm = o.shape[1] - T_last
        if causal and rm > 0:
            o = o[:, rm:, :]
        elif (not causal) and rm > 1:
            hh = rm // 2
            o = o[:, hh:o.shape[1] - hh, :]
        s = o if s is None else s + o
    logits = jnp.einsum("btc,cn->btn", s, params["wd"],
                        precision=jax.lax.Precision.HIGHEST) + params["bd"]
    return jax.nn.softmax(logits, axis=-1)


# --------------------------------------------------------------------------- #
if __name__ == "__main__":
    key = jax.random.PRNGKey(0)
    num_classes = 8
    B, T = 2, 16

    for causal in (True, False):
        cfg = dict(stack_num=3, stack_size=2, in_channels=16, res_channels=32,
                   kernel_size=3, causal=causal)
        kp, kx = jax.random.split(key)
        params = make_mdtc_params(kp, cfg["stack_num"], cfg["stack_size"],
                                  cfg["in_channels"], cfg["res_channels"],
                                  cfg["kernel_size"], num_classes)
        # input like PyTorch MDTC: (batch, time, feature)
        x = jax.random.normal(kx, (B, T, cfg["in_channels"]), jnp.float32)

        out = mdtc_forward(x, params, **cfg)
        out = jax.block_until_ready(out)

        ref = mdtc_ref(x, params, **cfg)
        # Tolerance accounts for bf16 MXU operands (f32 accumulation) in the
        # kernel vs. the all-f32 reference; outputs are softmax probabilities.
        np.testing.assert_allclose(np.asarray(out), np.asarray(ref),
                                   rtol=5e-2, atol=2e-2)
        assert out.shape == (B, T, num_classes)

    print("KERNEL_OK")
</pallas_src>

<mosaic_0001>
module attributes {stable_mosaic.version = 11 : i64} {
  func.func @fused_mdtc_kernel(%arg0: i32, %arg1: memref<1x40x64xf32, #tpu.memory_space<vmem>>, %arg2: memref<3x64xf32, #tpu.memory_space<vmem>>, %arg3: memref<1x64xf32, #tpu.memory_space<vmem>>, %arg4: memref<64x128xbf16, #tpu.memory_space<vmem>>, %arg5: memref<2x128xf32, #tpu.memory_space<vmem>>, %arg6: memref<128x128xbf16, #tpu.memory_space<vmem>>, %arg7: memref<6x3x128xf32, #tpu.memory_space<vmem>>, %arg8: memref<6x3x128xf32, #tpu.memory_space<vmem>>, %arg9: memref<12x128x128xbf16, #tpu.memory_space<vmem>>, %arg10: memref<1x40x128xf32, #tpu.memory_space<vmem>>) attributes {dimension_semantics = [#tpu.dimension_semantics<parallel>], iteration_bounds = array<i64: 1>, scalar_prefetch = 0 : i64, scratch_operands = 0 : i64, tpu.core_type = #tpu.core_type<tc>, window_params = [{transform_indices = @transform_0, window_bounds = array<i64: 1, 40, 64>}, {pipeline_mode = #tpu.pipeline_mode<synchronous>, transform_indices = @transform_1, window_bounds = array<i64: 3, 64>}, {pipeline_mode = #tpu.pipeline_mode<synchronous>, transform_indices = @transform_2, window_bounds = array<i64: 1, 64>}, {pipeline_mode = #tpu.pipeline_mode<synchronous>, transform_indices = @transform_3, window_bounds = array<i64: 64, 128>}, {pipeline_mode = #tpu.pipeline_mode<synchronous>, transform_indices = @transform_4, window_bounds = array<i64: 2, 128>}, {pipeline_mode = #tpu.pipeline_mode<synchronous>, transform_indices = @transform_5, window_bounds = array<i64: 128, 128>}, {pipeline_mode = #tpu.pipeline_mode<synchronous>, transform_indices = @transform_6, window_bounds = array<i64: 6, 3, 128>}, {pipeline_mode = #tpu.pipeline_mode<synchronous>, transform_indices = @transform_7, window_bounds = array<i64: 6, 3, 128>}, {pipeline_mode = #tpu.pipeline_mode<synchronous>, transform_indices = @transform_8, window_bounds = array<i64: 12, 128, 128>}, {transform_indices = @transform_9, window_bounds = array<i64: 1, 40, 128>}]} {
    %c0 = arith.constant 0 : index
    %c0_0 = arith.constant 0 : index
    %0 = vector.load %arg5[%c0, %c0_0] : memref<2x128xf32, #tpu.memory_space<vmem>>, vector<2x128xf32>
    %c0_1 = arith.constant 0 : index
    %c0_2 = arith.constant 0 : index
    %c0_3 = arith.constant 0 : index
    %1 = vector.load %arg1[%c0_1, %c0_2, %c0_3] : memref<1x40x64xf32, #tpu.memory_space<vmem>>, vector<1x40x64xf32>
    %2 = vector.shape_cast %1 : vector<1x40x64xf32> to vector<40x64xf32>
    %c0_4 = arith.constant 0 : index
    %c0_5 = arith.constant 0 : index
    %3 = vector.load %arg2[%c0_4, %c0_5] : memref<3x64xf32, #tpu.memory_space<vmem>>, vector<3x64xf32>
    %c0_6 = arith.constant 0 : index
    %c0_7 = arith.constant 0 : index
    %4 = vector.load %arg3[%c0_6, %c0_7] : memref<1x64xf32, #tpu.memory_space<vmem>>, vector<1x64xf32>
    %c0_8 = arith.constant 0 : index
    %c0_9 = arith.constant 0 : index
    %5 = vector.load %arg4[%c0_8, %c0_9] : memref<64x128xbf16, #tpu.memory_space<vmem>>, vector<64x128xbf16>
    %6 = vector.extract_strided_slice %0 {offsets = [0, 0], sizes = [1, 128], strides = [1, 1]} : vector<2x128xf32> to vector<1x128xf32>
    %c0_10 = arith.constant 0 : index
    %c0_11 = arith.constant 0 : index
    %7 = vector.load %arg6[%c0_10, %c0_11] : memref<128x128xbf16, #tpu.memory_space<vmem>>, vector<128x128xbf16>
    %8 = vector.extract_strided_slice %0 {offsets = [1, 0], sizes = [1, 128], strides = [1, 1]} : vector<2x128xf32> to vector<1x128xf32>
    %cst = arith.constant 0.000000e+00 : f32
    %9 = vector.broadcast %cst : f32 to vector<2x64xf32>
    %10 = vector.extract_strided_slice %2 {offsets = [0, 0], sizes = [38, 64], strides = [1, 1]} : vector<40x64xf32> to vector<38x64xf32>
    %11 = tpu.concatenate %9, %10 in 0 : vector<2x64xf32>, vector<38x64xf32> -> vector<40x64xf32>
    %12 = vector.extract_strided_slice %3 {offsets = [0, 0], sizes = [1, 64], strides = [1, 1]} : vector<3x64xf32> to vector<1x64xf32>
    %13 = vector.broadcast %12 : vector<1x64xf32> to vector<40x64xf32>
    %14 = arith.mulf %11, %13 : vector<40x64xf32>
    %cst_12 = arith.constant 0.000000e+00 : f32
    %15 = vector.broadcast %cst_12 : f32 to vector<1x64xf32>
    %16 = vector.extract_strided_slice %2 {offsets = [0, 0], sizes = [39, 64], strides = [1, 1]} : vector<40x64xf32> to vector<39x64xf32>
    %17 = tpu.concatenate %15, %16 in 0 : vector<1x64xf32>, vector<39x64xf32> -> vector<40x64xf32>
    %18 = vector.extract_strided_slice %3 {offsets = [1, 0], sizes = [1, 64], strides = [1, 1]} : vector<3x64xf32> to vector<1x64xf32>
    %19 = vector.broadcast %18 : vector<1x64xf32> to vector<40x64xf32>
    %20 = arith.mulf %17, %19 : vector<40x64xf32>
    %21 = arith.addf %14, %20 : vector<40x64xf32>
    %22 = vector.extract_strided_slice %3 {offsets = [2, 0], sizes = [1, 64], strides = [1, 1]} : vector<3x64xf32> to vector<1x64xf32>
    %23 = vector.broadcast %22 : vector<1x64xf32> to vector<40x64xf32>
    %24 = arith.mulf %2, %23 : vector<40x64xf32>
    %25 = arith.addf %21, %24 : vector<40x64xf32>
    %26 = vector.broadcast %4 : vector<1x64xf32> to vector<40x64xf32>
    %27 = arith.addf %25, %26 : vector<40x64xf32>
    %cst_13 = arith.constant 0.000000e+00 : f32
    %28 = vector.broadcast %cst_13 : f32 to vector<40x64xf32>
    %29 = arith.maximumf %27, %28 : vector<40x64xf32>
    %30 = arith.truncf %29 : vector<40x64xf32> to vector<40x64xbf16>
    %cst_14 = arith.constant dense<0.000000e+00> : vector<40x128xf32>
    %31 = tpu.matmul %30, %5, %cst_14 {dimension_numbers = #tpu.dot_dimension_numbers<[1], [0], [0], [1], [0, 0, 1, 1], [], []>} : vector<40x64xbf16>, vector<64x128xbf16>, vector<40x128xf32> -> vector<40x128xf32>
    %32 = vector.broadcast %6 : vector<1x128xf32> to vector<40x128xf32>
    %33 = arith.addf %31, %32 : vector<40x128xf32>
    %cst_15 = arith.constant 0.000000e+00 : f32
    %34 = vector.broadcast %cst_15 : f32 to vector<40x128xf32>
    %35 = arith.maximumf %33, %34 : vector<40x128xf32>
    %36 = arith.truncf %35 : vector<40x128xf32> to vector<40x128xbf16>
    %cst_16 = arith.constant dense<0.000000e+00> : vector<40x128xf32>
    %37 = tpu.matmul %36, %7, %cst_16 {dimension_numbers = #tpu.dot_dimension_numbers<[1], [0], [0], [1], [0, 0, 1, 1], [], []>} : vector<40x128xbf16>, vector<128x128xbf16>, vector<40x128xf32> -> vector<40x128xf32>
    %38 = vector.broadcast %8 : vector<1x128xf32> to vector<40x128xf32>
    %39 = arith.addf %37, %38 : vector<40x128xf32>
    %cst_17 = arith.constant 0.000000e+00 : f32
    %40 = vector.broadcast %cst_17 : f32 to vector<40x128xf32>
    %41 = arith.maximumf %39, %40 : vector<40x128xf32>
    %c0_18 = arith.constant 0 : index
    %c0_19 = arith.constant 0 : index
    %c0_20 = arith.constant 0 : index
    %42 = vector.load %arg8[%c0_18, %c0_19, %c0_20] : memref<6x3x128xf32, #tpu.memory_space<vmem>>, vector<1x3x128xf32>
    %43 = vector.shape_cast %42 : vector<1x3x128xf32> to vector<3x128xf32>
    %c0_21 = arith.constant 0 : index
    %c0_22 = arith.constant 0 : index
    %c0_23 = arith.constant 0 : index
    %44 = vector.load %arg7[%c0_21, %c0_22, %c0_23] : memref<6x3x128xf32, #tpu.memory_space<vmem>>, vector<1x3x128xf32>
    %45 = vector.shape_cast %44 : vector<1x3x128xf32> to vector<3x128xf32>
    %46 = vector.extract_strided_slice %43 {offsets = [0, 0], sizes = [1, 128], strides = [1, 1]} : vector<3x128xf32> to vector<1x128xf32>
    %c0_24 = arith.constant 0 : index
    %c0_25 = arith.constant 0 : index
    %c0_26 = arith.constant 0 : index
    %47 = vector.load %arg9[%c0_24, %c0_25, %c0_26] : memref<12x128x128xbf16, #tpu.memory_space<vmem>>, vector<1x128x128xbf16>
    %48 = vector.shape_cast %47 : vector<1x128x128xbf16> to vector<128x128xbf16>
    %49 = vector.extract_strided_slice %43 {offsets = [1, 0], sizes = [1, 128], strides = [1, 1]} : vector<3x128xf32> to vector<1x128xf32>
    %c1 = arith.constant 1 : index
    %c0_27 = arith.constant 0 : index
    %c0_28 = arith.constant 0 : index
    %50 = vector.load %arg9[%c1, %c0_27, %c0_28] : memref<12x128x128xbf16, #tpu.memory_space<vmem>>, vector<1x128x128xbf16>
    %51 = vector.shape_cast %50 : vector<1x128x128xbf16> to vector<128x128xbf16>
    %52 = vector.extract_strided_slice %43 {offsets = [2, 0], sizes = [1, 128], strides = [1, 1]} : vector<3x128xf32> to vector<1x128xf32>
    %cst_29 = arith.constant 0.000000e+00 : f32
    %53 = vector.broadcast %cst_29 : f32 to vector<2x128xf32>
    %54 = vector.extract_strided_slice %41 {offsets = [0, 0], sizes = [38, 128], strides = [1, 1]} : vector<40x128xf32> to vector<38x128xf32>
    %55 = tpu.concatenate %53, %54 in 0 : vector<2x128xf32>, vector<38x128xf32> -> vector<40x128xf32>
    %56 = vector.extract_strided_slice %45 {offsets = [0, 0], sizes = [1, 128], strides = [1, 1]} : vector<3x128xf32> to vector<1x128xf32>
    %57 = vector.broadcast %56 : vector<1x128xf32> to vector<40x128xf32>
    %58 = arith.mulf %55, %57 : vector<40x128xf32>
    %cst_30 = arith.constant 0.000000e+00 : f32
    %59 = vector.broadcast %cst_30 : f32 to vector<1x128xf32>
    %60 = vector.extract_strided_slice %41 {offsets = [0, 0], sizes = [39, 128], strides = [1, 1]} : vector<40x128xf32> to vector<39x128xf32>
    %61 = tpu.concatenate %59, %60 in 0 : vector<1x128xf32>, vector<39x128xf32> -> vector<40x128xf32>
    %62 = vector.extract_strided_slice %45 {offsets = [1, 0], sizes = [1, 128], strides = [1, 1]} : vector<3x128xf32> to vector<1x128xf32>
    %63 = vector.broadcast %62 : vector<1x128xf32> to vector<40x128xf32>
    %64 = arith.mulf %61, %63 : vector<40x128xf32>
    %65 = arith.addf %58, %64 : vector<40x128xf32>
    %66 = vector.extract_strided_slice %45 {offsets = [2, 0], sizes = [1, 128], strides = [1, 1]} : vector<3x128xf32> to vector<1x128xf32>
    %67 = vector.broadcast %66 : vector<1x128xf32> to vector<40x128xf32>
    %68 = arith.mulf %41, %67 : vector<40x128xf32>
    %69 = arith.addf %65, %68 : vector<40x128xf32>
    %70 = vector.broadcast %46 : vector<1x128xf32> to vector<40x128xf32>
    %71 = arith.addf %69, %70 : vector<40x128xf32>
    %cst_31 = arith.constant 0.000000e+00 : f32
    %72 = vector.broadcast %cst_31 : f32 to vector<40x128xf32>
    %73 = arith.maximumf %71, %72 : vector<40x128xf32>
    %74 = arith.truncf %73 : vector<40x128xf32> to vector<40x128xbf16>
    %cst_32 = arith.constant dense<0.000000e+00> : vector<40x128xf32>
    %75 = tpu.matmul %74, %48, %cst_32 {dimension_numbers = #tpu.dot_dimension_numbers<[1], [0], [0], [1], [0, 0, 1, 1], [], []>} : vector<40x128xbf16>, vector<128x128xbf16>, vector<40x128xf32> -> vector<40x128xf32>
    %76 = vector.broadcast %49 : vector<1x128xf32> to vector<40x128xf32>
    %77 = arith.addf %75, %76 : vector<40x128xf32>
    %cst_33 = arith.constant 0.000000e+00 : f32
    %78 = vector.broadcast %cst_33 : f32 to vector<40x128xf32>
    %79 = arith.maximumf %77, %78 : vector<40x128xf32>
    %80 = arith.truncf %79 : vector<40x128xf32> to vector<40x128xbf16>
    %cst_34 = arith.constant dense<0.000000e+00> : vector<40x128xf32>
    %81 = tpu.matmul %80, %51, %cst_34 {dimension_numbers = #tpu.dot_dimension_numbers<[1], [0], [0], [1], [0, 0, 1, 1], [], []>} : vector<40x128xbf16>, vector<128x128xbf16>, vector<40x128xf32> -> vector<40x128xf32>
    %82 = vector.broadcast %52 : vector<1x128xf32> to vector<40x128xf32>
    %83 = arith.addf %81, %82 : vector<40x128xf32>
    %84 = arith.addf %83, %41 : vector<40x128xf32>
    %cst_35 = arith.constant 0.000000e+00 : f32
    %85 = vector.broadcast %cst_35 : f32 to vector<40x128xf32>
    %86 = arith.maximumf %84, %85 : vector<40x128xf32>
    %c1_36 = arith.constant 1 : index
    %c0_37 = arith.constant 0 : index
    %c0_38 = arith.constant 0 : index
    %87 = vector.load %arg8[%c1_36, %c0_37, %c0_38] : memref<6x3x128xf32, #tpu.memory_space<vmem>>, vector<1x3x128xf32>
    %88 = vector.shape_cast %87 : vector<1x3x128xf32> to vector<3x128xf32>
    %c1_39 = arith.constant 1 : index
    %c0_40 = arith.constant 0 : index
    %c0_41 = arith.constant 0 : index
    %89 = vector.load %arg7[%c1_39, %c0_40, %c0_41] : memref<6x3x128xf32, #tpu.memory_space<vmem>>, vector<1x3x128xf32>
    %90 = vector.shape_cast %89 : vector<1x3x128xf32> to vector<3x128xf32>
    %91 = vector.extract_strided_slice %88 {offsets = [0, 0], sizes = [1, 128], strides = [1, 1]} : vector<3x128xf32> to vector<1x128xf32>
    %c2 = arith.constant 2 : index
    %c0_42 = arith.constant 0 : index
    %c0_43 = arith.constant 0 : index
    %92 = vector.load %arg9[%c2, %c0_42, %c0_43] : memref<12x128x128xbf16, #tpu.memory_space<vmem>>, vector<1x128x128xbf16>
    %93 = vector.shape_cast %92 : vector<1x128x128xbf16> to vector<128x128xbf16>
    %94 = vector.extract_strided_slice %88 {offsets = [1, 0], sizes = [1, 128], strides = [1, 1]} : vector<3x128xf32> to vector<1x128xf32>
    %c3 = arith.constant 3 : index
    %c0_44 = arith.constant 0 : index
    %c0_45 = arith.constant 0 : index
    %95 = vector.load %arg9[%c3, %c0_44, %c0_45] : memref<12x128x128xbf16, #tpu.memory_space<vmem>>, vector<1x128x128xbf16>
    %96 = vector.shape_cast %95 : vector<1x128x128xbf16> to vector<128x128xbf16>
    %97 = vector.extract_strided_slice %88 {offsets = [2, 0], sizes = [1, 128], strides = [1, 1]} : vector<3x128xf32> to vector<1x128xf32>
    %cst_46 = arith.constant 0.000000e+00 : f32
    %98 = vector.broadcast %cst_46 : f32 to vector<4x128xf32>
    %99 = vector.extract_strided_slice %86 {offsets = [0, 0], sizes = [36, 128], strides = [1, 1]} : vector<40x128xf32> to vector<36x128xf32>
    %100 = tpu.concatenate %98, %99 in 0 : vector<4x128xf32>, vector<36x128xf32> -> vector<40x128xf32>
    %101 = vector.extract_strided_slice %90 {offsets = [0, 0], sizes = [1, 128], strides = [1, 1]} : vector<3x128xf32> to vector<1x128xf32>
    %102 = vector.broadcast %101 : vector<1x128xf32> to vector<40x128xf32>
    %103 = arith.mulf %100, %102 : vector<40x128xf32>
    %cst_47 = arith.constant 0.000000e+00 : f32
    %104 = vector.broadcast %cst_47 : f32 to vector<2x128xf32>
    %105 = vector.extract_strided_slice %86 {offsets = [0, 0], sizes = [38, 128], strides = [1, 1]} : vector<40x128xf32> to vector<38x128xf32>
    %106 = tpu.concatenate %104, %105 in 0 : vector<2x128xf32>, vector<38x128xf32> -> vector<40x128xf32>
    %107 = vector.extract_strided_slice %90 {offsets = [1, 0], sizes = [1, 128], strides = [1, 1]} : vector<3x128xf32> to vector<1x128xf32>
    %108 = vector.broadcast %107 : vector<1x128xf32> to vector<40x128xf32>
    %109 = arith.mulf %106, %108 : vector<40x128xf32>
    %110 = arith.addf %103, %109 : vector<40x128xf32>
    %111 = vector.extract_strided_slice %90 {offsets = [2, 0], sizes = [1, 128], strides = [1, 1]} : vector<3x128xf32> to vector<1x128xf32>
    %112 = vector.broadcast %111 : vector<1x128xf32> to vector<40x128xf32>
    %113 = arith.mulf %86, %112 : vector<40x128xf32>
    %114 = arith.addf %110, %113 : vector<40x128xf32>
    %115 = vector.broadcast %91 : vector<1x128xf32> to vector<40x128xf32>
    %116 = arith.addf %114, %115 : vector<40x128xf32>
    %cst_48 = arith.constant 0.000000e+00 : f32
    %117 = vector.broadcast %cst_48 : f32 to vector<40x128xf32>
    %118 = arith.maximumf %116, %117 : vector<40x128xf32>
    %119 = arith.truncf %118 : vector<40x128xf32> to vector<40x128xbf16>
    %cst_49 = arith.constant dense<0.000000e+00> : vector<40x128xf32>
    %120 = tpu.matmul %119, %93, %cst_49 {dimension_numbers = #tpu.dot_dimension_numbers<[1], [0], [0], [1], [0, 0, 1, 1], [], []>} : vector<40x128xbf16>, vector<128x128xbf16>, vector<40x128xf32> -> vector<40x128xf32>
    %121 = vector.broadcast %94 : vector<1x128xf32> to vector<40x128xf32>
    %122 = arith.addf %120, %121 : vector<40x128xf32>
    %cst_50 = arith.constant 0.000000e+00 : f32
    %123 = vector.broadcast %cst_50 : f32 to vector<40x128xf32>
    %124 = arith.maximumf %122, %123 : vector<40x128xf32>
    %125 = arith.truncf %124 : vector<40x128xf32> to vector<40x128xbf16>
    %cst_51 = arith.constant dense<0.000000e+00> : vector<40x128xf32>
    %126 = tpu.matmul %125, %96, %cst_51 {dimension_numbers = #tpu.dot_dimension_numbers<[1], [0], [0], [1], [0, 0, 1, 1], [], []>} : vector<40x128xbf16>, vector<128x128xbf16>, vector<40x128xf32> -> vector<40x128xf32>
    %127 = vector.broadcast %97 : vector<1x128xf32> to vector<40x128xf32>
    %128 = arith.addf %126, %127 : vector<40x128xf32>
    %129 = arith.addf %128, %86 : vector<40x128xf32>
    %cst_52 = arith.constant 0.000000e+00 : f32
    %130 = vector.broadcast %cst_52 : f32 to vector<40x128xf32>
    %131 = arith.maximumf %129, %130 : vector<40x128xf32>
    %c2_53 = arith.constant 2 : index
    %c0_54 = arith.constant 0 : index
    %c0_55 = arith.constant 0 : index
    %132 = vector.load %arg8[%c2_53, %c0_54, %c0_55] : memref<6x3x128xf32, #tpu.memory_space<vmem>>, vector<1x3x128xf32>
    %133 = vector.shape_cast %132 : vector<1x3x128xf32> to vector<3x128xf32>
    %c2_56 = arith.constant 2 : index
    %c0_57 = arith.constant 0 : index
    %c0_58 = arith.constant 0 : index
    %134 = vector.load %arg7[%c2_56, %c0_57, %c0_58] : memref<6x3x128xf32, #tpu.memory_space<vmem>>, vector<1x3x128xf32>
    %135 = vector.shape_cast %134 : vector<1x3x128xf32> to vector<3x128xf32>
    %136 = vector.extract_strided_slice %133 {offsets = [0, 0], sizes = [1, 128], strides = [1, 1]} : vector<3x128xf32> to vector<1x128xf32>
    %c4 = arith.constant 4 : index
    %c0_59 = arith.constant 0 : index
    %c0_60 = arith.constant 0 : index
    %137 = vector.load %arg9[%c4, %c0_59, %c0_60] : memref<12x128x128xbf16, #tpu.memory_space<vmem>>, vector<1x128x128xbf16>
    %138 = vector.shape_cast %137 : vector<1x128x128xbf16> to vector<128x128xbf16>
    %139 = vector.extract_strided_slice %133 {offsets = [1, 0], sizes = [1, 128], strides = [1, 1]} : vector<3x128xf32> to vector<1x128xf32>
    %c5 = arith.constant 5 : index
    %c0_61 = arith.constant 0 : index
    %c0_62 = arith.constant 0 : index
    %140 = vector.load %arg9[%c5, %c0_61, %c0_62] : memref<12x128x128xbf16, #tpu.memory_space<vmem>>, vector<1x128x128xbf16>
    %141 = vector.shape_cast %140 : vector<1x128x128xbf16> to vector<128x128xbf16>
    %142 = vector.extract_strided_slice %133 {offsets = [2, 0], sizes = [1, 128], strides = [1, 1]} : vector<3x128xf32> to vector<1x128xf32>
    %cst_63 = arith.constant 0.000000e+00 : f32
    %143 = vector.broadcast %cst_63 : f32 to vector<2x128xf32>
    %144 = vector.extract_strided_slice %131 {offsets = [0, 0], sizes = [38, 128], strides = [1, 1]} : vector<40x128xf32> to vector<38x128xf32>
    %145 = tpu.concatenate %143, %144 in 0 : vector<2x128xf32>, vector<38x128xf32> -> vector<40x128xf32>
    %146 = vector.extract_strided_slice %135 {offsets = [0, 0], sizes = [1, 128], strides = [1, 1]} : vector<3x128xf32> to vector<1x128xf32>
    %147 = vector.broadcast %146 : vector<1x128xf32> to vector<40x128xf32>
    %148 = arith.mulf %145, %147 : vector<40x128xf32>
    %cst_64 = arith.constant 0.000000e+00 : f32
    %149 = vector.broadcast %cst_64 : f32 to vector<1x128xf32>
    %150 = vector.extract_strided_slice %131 {offsets = [0, 0], sizes = [39, 128], strides = [1, 1]} : vector<40x128xf32> to vector<39x128xf32>
    %151 = tpu.concatenate %149, %150 in 0 : vector<1x128xf32>, vector<39x128xf32> -> vector<40x128xf32>
    %152 = vector.extract_strided_slice %135 {offsets = [1, 0], sizes = [1, 128], strides = [1, 1]} : vector<3x128xf32> to vector<1x128xf32>
    %153 = vector.broadcast %152 : vector<1x128xf32> to vector<40x128xf32>
    %154 = arith.mulf %151, %153 : vector<40x128xf32>
    %155 = arith.addf %148, %154 : vector<40x128xf32>
    %156 = vector.extract_strided_slice %135 {offsets = [2, 0], sizes = [1, 128], strides = [1, 1]} : vector<3x128xf32> to vector<1x128xf32>
    %157 = vector.broadcast %156 : vector<1x128xf32> to vector<40x128xf32>
    %158 = arith.mulf %131, %157 : vector<40x128xf32>
    %159 = arith.addf %155, %158 : vector<40x128xf32>
    %160 = vector.broadcast %136 : vector<1x128xf32> to vector<40x128xf32>
    %161 = arith.addf %159, %160 : vector<40x128xf32>
    %cst_65 = arith.constant 0.000000e+00 : f32
    %162 = vector.broadcast %cst_65 : f32 to vector<40x128xf32>
    %163 = arith.maximumf %161, %162 : vector<40x128xf32>
    %164 = arith.truncf %163 : vector<40x128xf32> to vector<40x128xbf16>
    %cst_66 = arith.constant dense<0.000000e+00> : vector<40x128xf32>
    %165 = tpu.matmul %164, %138, %cst_66 {dimension_numbers = #tpu.dot_dimension_numbers<[1], [0], [0], [1], [0, 0, 1, 1], [], []>} : vector<40x128xbf16>, vector<128x128xbf16>, vector<40x128xf32> -> vector<40x128xf32>
    %166 = vector.broadcast %139 : vector<1x128xf32> to vector<40x128xf32>
    %167 = arith.addf %165, %166 : vector<40x128xf32>
    %cst_67 = arith.constant 0.000000e+00 : f32
    %168 = vector.broadcast %cst_67 : f32 to vector<40x128xf32>
    %169 = arith.maximumf %167, %168 : vector<40x128xf32>
    %170 = arith.truncf %169 : vector<40x128xf32> to vector<40x128xbf16>
    %cst_68 = arith.constant dense<0.000000e+00> : vector<40x128xf32>
    %171 = tpu.matmul %170, %141, %cst_68 {dimension_numbers = #tpu.dot_dimension_numbers<[1], [0], [0], [1], [0, 0, 1, 1], [], []>} : vector<40x128xbf16>, vector<128x128xbf16>, vector<40x128xf32> -> vector<40x128xf32>
    %172 = vector.broadcast %142 : vector<1x128xf32> to vector<40x128xf32>
    %173 = arith.addf %171, %172 : vector<40x128xf32>
    %174 = arith.addf %173, %131 : vector<40x128xf32>
    %cst_69 = arith.constant 0.000000e+00 : f32
    %175 = vector.broadcast %cst_69 : f32 to vector<40x128xf32>
    %176 = arith.maximumf %174, %175 : vector<40x128xf32>
    %c3_70 = arith.constant 3 : index
    %c0_71 = arith.constant 0 : index
    %c0_72 = arith.constant 0 : index
    %177 = vector.load %arg8[%c3_70, %c0_71, %c0_72] : memref<6x3x128xf32, #tpu.memory_space<vmem>>, vector<1x3x128xf32>
    %178 = vector.shape_cast %177 : vector<1x3x128xf32> to vector<3x128xf32>
    %c3_73 = arith.constant 3 : index
    %c0_74 = arith.constant 0 : index
    %c0_75 = arith.constant 0 : index
    %179 = vector.load %arg7[%c3_73, %c0_74, %c0_75] : memref<6x3x128xf32, #tpu.memory_space<vmem>>, vector<1x3x128xf32>
    %180 = vector.shape_cast %179 : vector<1x3x128xf32> to vector<3x128xf32>
    %181 = vector.extract_strided_slice %178 {offsets = [0, 0], sizes = [1, 128], strides = [1, 1]} : vector<3x128xf32> to vector<1x128xf32>
    %c6 = arith.constant 6 : index
    %c0_76 = arith.constant 0 : index
    %c0_77 = arith.constant 0 : index
    %182 = vector.load %arg9[%c6, %c0_76, %c0_77] : memref<12x128x128xbf16, #tpu.memory_space<vmem>>, vector<1x128x128xbf16>
    %183 = vector.shape_cast %182 : vector<1x128x128xbf16> to vector<128x128xbf16>
    %184 = vector.extract_strided_slice %178 {offsets = [1, 0], sizes = [1, 128], strides = [1, 1]} : vector<3x128xf32> to vector<1x128xf32>
    %c7 = arith.constant 7 : index
    %c0_78 = arith.constant 0 : index
    %c0_79 = arith.constant 0 : index
    %185 = vector.load %arg9[%c7, %c0_78, %c0_79] : memref<12x128x128xbf16, #tpu.memory_space<vmem>>, vector<1x128x128xbf16>
    %186 = vector.shape_cast %185 : vector<1x128x128xbf16> to vector<128x128xbf16>
    %187 = vector.extract_strided_slice %178 {offsets = [2, 0], sizes = [1, 128], strides = [1, 1]} : vector<3x128xf32> to vector<1x128xf32>
    %cst_80 = arith.constant 0.000000e+00 : f32
    %188 = vector.broadcast %cst_80 : f32 to vector<4x128xf32>
    %189 = vector.extract_strided_slice %176 {offsets = [0, 0], sizes = [36, 128], strides = [1, 1]} : vector<40x128xf32> to vector<36x128xf32>
    %190 = tpu.concatenate %188, %189 in 0 : vector<4x128xf32>, vector<36x128xf32> -> vector<40x128xf32>
    %191 = vector.extract_strided_slice %180 {offsets = [0, 0], sizes = [1, 128], strides = [1, 1]} : vector<3x128xf32> to vector<1x128xf32>
    %192 = vector.broadcast %191 : vector<1x128xf32> to vector<40x128xf32>
    %193 = arith.mulf %190, %192 : vector<40x128xf32>
    %cst_81 = arith.constant 0.000000e+00 : f32
    %194 = vector.broadcast %cst_81 : f32 to vector<2x128xf32>
    %195 = vector.extract_strided_slice %176 {offsets = [0, 0], sizes = [38, 128], strides = [1, 1]} : vector<40x128xf32> to vector<38x128xf32>
    %196 = tpu.concatenate %194, %195 in 0 : vector<2x128xf32>, vector<38x128xf32> -> vector<40x128xf32>
    %197 = vector.extract_strided_slice %180 {offsets = [1, 0], sizes = [1, 128], strides = [1, 1]} : vector<3x128xf32> to vector<1x128xf32>
    %198 = vector.broadcast %197 : vector<1x128xf32> to vector<40x128xf32>
    %199 = arith.mulf %196, %198 : vector<40x128xf32>
    %200 = arith.addf %193, %199 : vector<40x128xf32>
    %201 = vector.extract_strided_slice %180 {offsets = [2, 0], sizes = [1, 128], strides = [1, 1]} : vector<3x128xf32> to vector<1x128xf32>
    %202 = vector.broadcast %201 : vector<1x128xf32> to vector<40x128xf32>
    %203 = arith.mulf %176, %202 : vector<40x128xf32>
    %204 = arith.addf %200, %203 : vector<40x128xf32>
    %205 = vector.broadcast %181 : vector<1x128xf32> to vector<40x128xf32>
    %206 = arith.addf %204, %205 : vector<40x128xf32>
    %cst_82 = arith.constant 0.000000e+00 : f32
    %207 = vector.broadcast %cst_82 : f32 to vector<40x128xf32>
    %208 = arith.maximumf %206, %207 : vector<40x128xf32>
    %209 = arith.truncf %208 : vector<40x128xf32> to vector<40x128xbf16>
    %cst_83 = arith.constant dense<0.000000e+00> : vector<40x128xf32>
    %210 = tpu.matmul %209, %183, %cst_83 {dimension_numbers = #tpu.dot_dimension_numbers<[1], [0], [0], [1], [0, 0, 1, 1], [], []>} : vector<40x128xbf16>, vector<128x128xbf16>, vector<40x128xf32> -> vector<40x128xf32>
    %211 = vector.broadcast %184 : vector<1x128xf32> to vector<40x128xf32>
    %212 = arith.addf %210, %211 : vector<40x128xf32>
    %cst_84 = arith.constant 0.000000e+00 : f32
    %213 = vector.broadcast %cst_84 : f32 to vector<40x128xf32>
    %214 = arith.maximumf %212, %213 : vector<40x128xf32>
    %215 = arith.truncf %214 : vector<40x128xf32> to vector<40x128xbf16>
    %cst_85 = arith.constant dense<0.000000e+00> : vector<40x128xf32>
    %216 = tpu.matmul %215, %186, %cst_85 {dimension_numbers = #tpu.dot_dimension_numbers<[1], [0], [0], [1], [0, 0, 1, 1], [], []>} : vector<40x128xbf16>, vector<128x128xbf16>, vector<40x128xf32> -> vector<40x128xf32>
    %217 = vector.broadcast %187 : vector<1x128xf32> to vector<40x128xf32>
    %218 = arith.addf %216, %217 : vector<40x128xf32>
    %219 = arith.addf %218, %176 : vector<40x128xf32>
    %cst_86 = arith.constant 0.000000e+00 : f32
    %220 = vector.broadcast %cst_86 : f32 to vector<40x128xf32>
    %221 = arith.maximumf %219, %220 : vector<40x128xf32>
    %222 = arith.addf %131, %221 : vector<40x128xf32>
    %c4_87 = arith.constant 4 : index
    %c0_88 = arith.constant 0 : index
    %c0_89 = arith.constant 0 : index
    %223 = vector.load %arg8[%c4_87, %c0_88, %c0_89] : memref<6x3x128xf32, #tpu.memory_space<vmem>>, vector<1x3x128xf32>
    %224 = vector.shape_cast %223 : vector<1x3x128xf32> to vector<3x128xf32>
    %c4_90 = arith.constant 4 : index
    %c0_91 = arith.constant 0 : index
    %c0_92 = arith.constant 0 : index
    %225 = vector.load %arg7[%c4_90, %c0_91, %c0_92] : memref<6x3x128xf32, #tpu.memory_space<vmem>>, vector<1x3x128xf32>
    %226 = vector.shape_cast %225 : vector<1x3x128xf32> to vector<3x128xf32>
    %227 = vector.extract_strided_slice %224 {offsets = [0, 0], sizes = [1, 128], strides = [1, 1]} : vector<3x128xf32> to vector<1x128xf32>
    %c8 = arith.constant 8 : index
    %c0_93 = arith.constant 0 : index
    %c0_94 = arith.constant 0 : index
    %228 = vector.load %arg9[%c8, %c0_93, %c0_94] : memref<12x128x128xbf16, #tpu.memory_space<vmem>>, vector<1x128x128xbf16>
    %229 = vector.shape_cast %228 : vector<1x128x128xbf16> to vector<128x128xbf16>
    %230 = vector.extract_strided_slice %224 {offsets = [1, 0], sizes = [1, 128], strides = [1, 1]} : vector<3x128xf32> to vector<1x128xf32>
    %c9 = arith.constant 9 : index
    %c0_95 = arith.constant 0 : index
    %c0_96 = arith.constant 0 : index
    %231 = vector.load %arg9[%c9, %c0_95, %c0_96] : memref<12x128x128xbf16, #tpu.memory_space<vmem>>, vector<1x128x128xbf16>
    %232 = vector.shape_cast %231 : vector<1x128x128xbf16> to vector<128x128xbf16>
    %233 = vector.extract_strided_slice %224 {offsets = [2, 0], sizes = [1, 128], strides = [1, 1]} : vector<3x128xf32> to vector<1x128xf32>
    %cst_97 = arith.constant 0.000000e+00 : f32
    %234 = vector.broadcast %cst_97 : f32 to vector<2x128xf32>
    %235 = vector.extract_strided_slice %221 {offsets = [0, 0], sizes = [38, 128], strides = [1, 1]} : vector<40x128xf32> to vector<38x128xf32>
    %236 = tpu.concatenate %234, %235 in 0 : vector<2x128xf32>, vector<38x128xf32> -> vector<40x128xf32>
    %237 = vector.extract_strided_slice %226 {offsets = [0, 0], sizes = [1, 128], strides = [1, 1]} : vector<3x128xf32> to vector<1x128xf32>
    %238 = vector.broadcast %237 : vector<1x128xf32> to vector<40x128xf32>
    %239 = arith.mulf %236, %238 : vector<40x128xf32>
    %cst_98 = arith.constant 0.000000e+00 : f32
    %240 = vector.broadcast %cst_98 : f32 to vector<1x128xf32>
    %241 = vector.extract_strided_slice %221 {offsets = [0, 0], sizes = [39, 128], strides = [1, 1]} : vector<40x128xf32> to vector<39x128xf32>
    %242 = tpu.concatenate %240, %241 in 0 : vector<1x128xf32>, vector<39x128xf32> -> vector<40x128xf32>
    %243 = vector.extract_strided_slice %226 {offsets = [1, 0], sizes = [1, 128], strides = [1, 1]} : vector<3x128xf32> to vector<1x128xf32>
    %244 = vector.broadcast %243 : vector<1x128xf32> to vector<40x128xf32>
    %245 = arith.mulf %242, %244 : vector<40x128xf32>
    %246 = arith.addf %239, %245 : vector<40x128xf32>
    %247 = vector.extract_strided_slice %226 {offsets = [2, 0], sizes = [1, 128], strides = [1, 1]} : vector<3x128xf32> to vector<1x128xf32>
    %248 = vector.broadcast %247 : vector<1x128xf32> to vector<40x128xf32>
    %249 = arith.mulf %221, %248 : vector<40x128xf32>
    %250 = arith.addf %246, %249 : vector<40x128xf32>
    %251 = vector.broadcast %227 : vector<1x128xf32> to vector<40x128xf32>
    %252 = arith.addf %250, %251 : vector<40x128xf32>
    %cst_99 = arith.constant 0.000000e+00 : f32
    %253 = vector.broadcast %cst_99 : f32 to vector<40x128xf32>
    %254 = arith.maximumf %252, %253 : vector<40x128xf32>
    %255 = arith.truncf %254 : vector<40x128xf32> to vector<40x128xbf16>
    %cst_100 = arith.constant dense<0.000000e+00> : vector<40x128xf32>
    %256 = tpu.matmul %255, %229, %cst_100 {dimension_numbers = #tpu.dot_dimension_numbers<[1], [0], [0], [1], [0, 0, 1, 1], [], []>} : vector<40x128xbf16>, vector<128x128xbf16>, vector<40x128xf32> -> vector<40x128xf32>
    %257 = vector.broadcast %230 : vector<1x128xf32> to vector<40x128xf32>
    %258 = arith.addf %256, %257 : vector<40x128xf32>
    %cst_101 = arith.constant 0.000000e+00 : f32
    %259 = vector.broadcast %cst_101 : f32 to vector<40x128xf32>
    %260 = arith.maximumf %258, %259 : vector<40x128xf32>
    %261 = arith.truncf %260 : vector<40x128xf32> to vector<40x128xbf16>
    %cst_102 = arith.constant dense<0.000000e+00> : vector<40x128xf32>
    %262 = tpu.matmul %261, %232, %cst_102 {dimension_numbers = #tpu.dot_dimension_numbers<[1], [0], [0], [1], [0, 0, 1, 1], [], []>} : vector<40x128xbf16>, vector<128x128xbf16>, vector<40x128xf32> -> vector<40x128xf32>
    %263 = vector.broadcast %233 : vector<1x128xf32> to vector<40x128xf32>
    %264 = arith.addf %262, %263 : vector<40x128xf32>
    %265 = arith.addf %264, %221 : vector<40x128xf32>
    %cst_103 = arith.constant 0.000000e+00 : f32
    %266 = vector.broadcast %cst_103 : f32 to vector<40x128xf32>
    %267 = arith.maximumf %265, %266 : vector<40x128xf32>
    %c5_104 = arith.constant 5 : index
    %c0_105 = arith.constant 0 : index
    %c0_106 = arith.constant 0 : index
    %268 = vector.load %arg8[%c5_104, %c0_105, %c0_106] : memref<6x3x128xf32, #tpu.memory_space<vmem>>, vector<1x3x128xf32>
    %269 = vector.shape_cast %268 : vector<1x3x128xf32> to vector<3x128xf32>
    %c5_107 = arith.constant 5 : index
    %c0_108 = arith.constant 0 : index
    %c0_109 = arith.constant 0 : index
    %270 = vector.load %arg7[%c5_107, %c0_108, %c0_109] : memref<6x3x128xf32, #tpu.memory_space<vmem>>, vector<1x3x128xf32>
    %271 = vector.shape_cast %270 : vector<1x3x128xf32> to vector<3x128xf32>
    %272 = vector.extract_strided_slice %269 {offsets = [0, 0], sizes = [1, 128], strides = [1, 1]} : vector<3x128xf32> to vector<1x128xf32>
    %c10 = arith.constant 10 : index
    %c0_110 = arith.constant 0 : index
    %c0_111 = arith.constant 0 : index
    %273 = vector.load %arg9[%c10, %c0_110, %c0_111] : memref<12x128x128xbf16, #tpu.memory_space<vmem>>, vector<1x128x128xbf16>
    %274 = vector.shape_cast %273 : vector<1x128x128xbf16> to vector<128x128xbf16>
    %275 = vector.extract_strided_slice %269 {offsets = [1, 0], sizes = [1, 128], strides = [1, 1]} : vector<3x128xf32> to vector<1x128xf32>
    %c11 = arith.constant 11 : index
    %c0_112 = arith.constant 0 : index
    %c0_113 = arith.constant 0 : index
    %276 = vector.load %arg9[%c11, %c0_112, %c0_113] : memref<12x128x128xbf16, #tpu.memory_space<vmem>>, vector<1x128x128xbf16>
    %277 = vector.shape_cast %276 : vector<1x128x128xbf16> to vector<128x128xbf16>
    %278 = vector.extract_strided_slice %269 {offsets = [2, 0], sizes = [1, 128], strides = [1, 1]} : vector<3x128xf32> to vector<1x128xf32>
    %cst_114 = arith.constant 0.000000e+00 : f32
    %279 = vector.broadcast %cst_114 : f32 to vector<4x128xf32>
    %280 = vector.extract_strided_slice %267 {offsets = [0, 0], sizes = [36, 128], strides = [1, 1]} : vector<40x128xf32> to vector<36x128xf32>
    %281 = tpu.concatenate %279, %280 in 0 : vector<4x128xf32>, vector<36x128xf32> -> vector<40x128xf32>
    %282 = vector.extract_strided_slice %271 {offsets = [0, 0], sizes = [1, 128], strides = [1, 1]} : vector<3x128xf32> to vector<1x128xf32>
    %283 = vector.broadcast %282 : vector<1x128xf32> to vector<40x128xf32>
    %284 = arith.mulf %281, %283 : vector<40x128xf32>
    %cst_115 = arith.constant 0.000000e+00 : f32
    %285 = vector.broadcast %cst_115 : f32 to vector<2x128xf32>
    %286 = vector.extract_strided_slice %267 {offsets = [0, 0], sizes = [38, 128], strides = [1, 1]} : vector<40x128xf32> to vector<38x128xf32>
    %287 = tpu.concatenate %285, %286 in 0 : vector<2x128xf32>, vector<38x128xf32> -> vector<40x128xf32>
    %288 = vector.extract_strided_slice %271 {offsets = [1, 0], sizes = [1, 128], strides = [1, 1]} : vector<3x128xf32> to vector<1x128xf32>
    %289 = vector.broadcast %288 : vector<1x128xf32> to vector<40x128xf32>
    %290 = arith.mulf %287, %289 : vector<40x128xf32>
    %291 = arith.addf %284, %290 : vector<40x128xf32>
    %292 = vector.extract_strided_slice %271 {offsets = [2, 0], sizes = [1, 128], strides = [1, 1]} : vector<3x128xf32> to vector<1x128xf32>
    %293 = vector.broadcast %292 : vector<1x128xf32> to vector<40x128xf32>
    %294 = arith.mulf %267, %293 : vector<40x128xf32>
    %295 = arith.addf %291, %294 : vector<40x128xf32>
    %296 = vector.broadcast %272 : vector<1x128xf32> to vector<40x128xf32>
    %297 = arith.addf %295, %296 : vector<40x128xf32>
    %cst_116 = arith.constant 0.000000e+00 : f32
    %298 = vector.broadcast %cst_116 : f32 to vector<40x128xf32>
    %299 = arith.maximumf %297, %298 : vector<40x128xf32>
    %300 = arith.truncf %299 : vector<40x128xf32> to vector<40x128xbf16>
    %cst_117 = arith.constant dense<0.000000e+00> : vector<40x128xf32>
    %301 = tpu.matmul %300, %274, %cst_117 {dimension_numbers = #tpu.dot_dimension_numbers<[1], [0], [0], [1], [0, 0, 1, 1], [], []>} : vector<40x128xbf16>, vector<128x128xbf16>, vector<40x128xf32> -> vector<40x128xf32>
    %302 = vector.broadcast %275 : vector<1x128xf32> to vector<40x128xf32>
    %303 = arith.addf %301, %302 : vector<40x128xf32>
    %cst_118 = arith.constant 0.000000e+00 : f32
    %304 = vector.broadcast %cst_118 : f32 to vector<40x128xf32>
    %305 = arith.maximumf %303, %304 : vector<40x128xf32>
    %306 = arith.truncf %305 : vector<40x128xf32> to vector<40x128xbf16>
    %cst_119 = arith.constant dense<0.000000e+00> : vector<40x128xf32>
    %307 = tpu.matmul %306, %277, %cst_119 {dimension_numbers = #tpu.dot_dimension_numbers<[1], [0], [0], [1], [0, 0, 1, 1], [], []>} : vector<40x128xbf16>, vector<128x128xbf16>, vector<40x128xf32> -> vector<40x128xf32>
    %308 = vector.broadcast %278 : vector<1x128xf32> to vector<40x128xf32>
    %309 = arith.addf %307, %308 : vector<40x128xf32>
    %310 = arith.addf %309, %267 : vector<40x128xf32>
    %cst_120 = arith.constant 0.000000e+00 : f32
    %311 = vector.broadcast %cst_120 : f32 to vector<40x128xf32>
    %312 = arith.maximumf %310, %311 : vector<40x128xf32>
    %313 = arith.addf %222, %312 : vector<40x128xf32>
    %c0_121 = arith.constant 0 : index
    %c0_122 = arith.constant 0 : index
    %c0_123 = arith.constant 0 : index
    %314 = vector.load %arg10[%c0_121, %c0_122, %c0_123] : memref<1x40x128xf32, #tpu.memory_space<vmem>>, vector<1x40x128xf32>
    %315 = vector.shape_cast %314 : vector<1x40x128xf32> to vector<40x128xf32>
    %316 = vector.shape_cast %313 : vector<40x128xf32> to vector<1x40x128xf32>
    tpu.vector_store %arg10[%c0_121, %c0_122, %c0_123], %316 {strides = array<i32>} : memref<1x40x128xf32, #tpu.memory_space<vmem>>, vector<1x40x128xf32>,
    return
  }
  func.func @transform_0(%arg0: i32) -> (i32, i32, i32) {
    %c0_i32 = arith.constant 0 : i32
    %c0_i32_0 = arith.constant 0 : i32
    %c0_i32_1 = arith.constant 0 : i32
    return %arg0, %c0_i32, %c0_i32_0 : i32, i32, i32
  }
  func.func @transform_1(%arg0: i32) -> (i32, i32) {
    %c0_i32 = arith.constant 0 : i32
    %c0_i32_0 = arith.constant 0 : i32
    %c0_i32_1 = arith.constant 0 : i32
    return %c0_i32, %c0_i32_0 : i32, i32
  }
  func.func @transform_2(%arg0: i32) -> (i32, i32) {
    %c0_i32 = arith.constant 0 : i32
    %c0_i32_0 = arith.constant 0 : i32
    %c0_i32_1 = arith.constant 0 : i32
    return %c0_i32, %c0_i32_0 : i32, i32
  }
  func.func @transform_3(%arg0: i32) -> (i32, i32) {
    %c0_i32 = arith.constant 0 : i32
    %c0_i32_0 = arith.constant 0 : i32
    %c0_i32_1 = arith.constant 0 : i32
    return %c0_i32, %c0_i32_0 : i32, i32
  }
  func.func @transform_4(%arg0: i32) -> (i32, i32) {
    %c0_i32 = arith.constant 0 : i32
    %c0_i32_0 = arith.constant 0 : i32
    %c0_i32_1 = arith.constant 0 : i32
    return %c0_i32, %c0_i32_0 : i32, i32
  }
  func.func @transform_5(%arg0: i32) -> (i32, i32) {
    %c0_i32 = arith.constant 0 : i32
    %c0_i32_0 = arith.constant 0 : i32
    %c0_i32_1 = arith.constant 0 : i32
    return %c0_i32, %c0_i32_0 : i32, i32
  }
  func.func @transform_6(%arg0: i32) -> (i32, i32, i32) {
    %c0_i32 = arith.constant 0 : i32
    %c0_i32_0 = arith.constant 0 : i32
    %c0_i32_1 = arith.constant 0 : i32
    %c0_i32_2 = arith.constant 0 : i32
    return %c0_i32, %c0_i32_0, %c0_i32_1 : i32, i32, i32
  }
  func.func @transform_7(%arg0: i32) -> (i32, i32, i32) {
    %c0_i32 = arith.constant 0 : i32
    %c0_i32_0 = arith.constant 0 : i32
    %c0_i32_1 = arith.constant 0 : i32
    %c0_i32_2 = arith.constant 0 : i32
    return %c0_i32, %c0_i32_0, %c0_i32_1 : i32, i32, i32
  }
  func.func @transform_8(%arg0: i32) -> (i32, i32, i32) {
    %c0_i32 = arith.constant 0 : i32
    %c0_i32_0 = arith.constant 0 : i32
    %c0_i32_1 = arith.constant 0 : i32
    %c0_i32_2 = arith.constant 0 : i32
    return %c0_i32, %c0_i32_0, %c0_i32_1 : i32, i32, i32
  }
  func.func @transform_9(%arg0: i32) -> (i32, i32, i32) {
    %c0_i32 = arith.constant 0 : i32
    %c0_i32_0 = arith.constant 0 : i32
    %c0_i32_1 = arith.constant 0 : i32
    return %arg0, %c0_i32, %c0_i32_0 : i32, i32, i32
  }
}

</mosaic_0001>

<llo_original>
// kernel: tpu_custom_call.1
$region0: #{tpu_custom_call.1}
  #allocation0 [shape = 'u32[]', space=smem, size = 0x4, offset = 0x4, fixed_abs, tag = 'smem constant byte address 0x4 - core index']
  #allocation1 [shape = 'u32[144,128]{1,0:T(1,128)}', space=vmem, size = 0x12000, scoped, tag = 'internal scratch']
  %s0 = inlined_call_operand.hbm [shape: f32[1,40,64], index: 0, kind: input, shape index: {}]
  %s1 = inlined_call_operand.hbm [shape: f32[3,64], index: 1, kind: input, shape index: {}]
  %s2 = inlined_call_operand.vmem [shape: f32[1,64], index: 2, kind: input, shape index: {}]
  %s3 = inlined_call_operand.hbm [shape: bf16[64,128], index: 3, kind: input, shape index: {}]
  %s4 = inlined_call_operand.vmem [shape: f32[2,128], index: 4, kind: input, shape index: {}]
  %s5 = inlined_call_operand.hbm [shape: bf16[128,128], index: 5, kind: input, shape index: {}]
  %s6 = inlined_call_operand.hbm [shape: f32[6,3,128], index: 6, kind: input, shape index: {}]
  %s7 = inlined_call_operand.hbm [shape: f32[6,3,128], index: 7, kind: input, shape index: {}]
  %s8 = inlined_call_operand.hbm [shape: bf16[12,128,128], index: 8, kind: input, shape index: {}]
  %s9 = inlined_call_operand.hbm [shape: f32[1,40,128], index: 9, kind: output, shape index: {}]
  %s10 = sld [smem:[#allocation0]]
  $region74: #{tpu_custom_call.1} parent=0
    _
  %s12 = ssub.s32 1, %s10
  %s13 = scalar_select 0, %s12, %s10
  $region1: #{tpu_custom_call.1} parent=0
    #allocation2 [shape = 'u8[20480]{0}', space=vmem, size = 0x5000, scoped, tag = 'input window, operand 0, single buffered']
    #allocation3 [shape = 's32[1]{0}', space=sflag, size = 0x4, scoped, tag = 'scoped memory for tpu_custom_call.1']
    #allocation4 [shape = 's32[1]{0}', space=sflag, size = 0x4, scoped, tag = 'scoped memory for tpu_custom_call.1']
    #allocation5 [shape = 'u8[2048]{0}', space=vmem, size = 0x800, scoped, tag = 'input window, operand 1, single buffered']
    #allocation6 [shape = 's32[1]{0}', space=sflag, size = 0x4, scoped, tag = 'scoped memory for tpu_custom_call.1']
    #allocation7 [shape = 'u8[16384]{0}', space=vmem, size = 0x4000, scoped, tag = 'input window, operand 3, single buffered']
    #allocation8 [shape = 'u8[32768]{0}', space=vmem, size = 0x8000, scoped, tag = 'input window, operand 5, single buffered']
    #allocation9 [shape = 's32[1]{0}', space=sflag, size = 0x4, scoped, tag = 'scoped memory for tpu_custom_call.1']
    #allocation10 [shape = 'u8[12288]{0}', space=vmem, size = 0x3000, scoped, tag = 'input window, operand 6, single buffered']
    #allocation11 [shape = 'u8[12288]{0}', space=vmem, size = 0x3000, scoped, tag = 'input window, operand 7, single buffered']
    #allocation12 [shape = 's32[1]{0}', space=sflag, size = 0x4, scoped, tag = 'scoped memory for tpu_custom_call.1']
    #allocation13 [shape = 'u8[393216]{0}', space=vmem, size = 0x60000, scoped, tag = 'input window, operand 8, single buffered']
    #allocation14 [shape = 'u8[20480]{0}', space=vmem, size = 0x5000, scoped, tag = 'output window, operand 0, single buffered']
    %14 = vsyncpa [#allocation3], 0
    %15 = vsyncpa [#allocation6], 0
    %16 = vsyncpa [#allocation9], 0
    %17 = vsyncpa [#allocation12], 0
    %18 = vsyncpa [#allocation4], 0
    // Predicated region
    $region2: #{tpu_custom_call.1} parent=1 // pred_check
      _
    $region3: #{tpu_custom_call.1} parent=1 // pred_check_branch
      %20 = sbr.rel (0) target = $region5
    $region4: #{tpu_custom_call.1} parent=1 // pred_region
      %s22 = ssub.s32 640, 640
      %23 = vsyncadd [#allocation3], %s22
      %s24 = sshll.u32 [#allocation2], 4
      %s25 = int_to_ptr.vmem [resolvable:$true] %s24
      %30 = dma.hbm_to_vmem [thread:$0]  %s0, 640, %s25, [#allocation3], 128, 128, 8
    $region5: #{tpu_custom_call.1} parent=1 // pred_fallthru
      _
    // Predicated region
    $region6: #{tpu_custom_call.1} parent=1 // pred_check
      _
    $region7: #{tpu_custom_call.1} parent=1 // pred_check_branch
      %32 = sbr.rel (0) target = $region9
    $region8: #{tpu_custom_call.1} parent=1 // pred_region
      %s34 = ssub.s32 64, 64
      %35 = vsyncadd [#allocation6], %s34
      %s37 = sshll.u32 [#allocation5], 4
      %s38 = int_to_ptr.vmem [resolvable:$true] %s37
      %40 = dma.hbm_to_vmem [thread:$0]  %s1, 64, %s38, [#allocation6]
    $region9: #{tpu_custom_call.1} parent=1 // pred_fallthru
      _
    // Predicated region
    $region10: #{tpu_custom_call.1} parent=1 // pred_check
      _
    $region11: #{tpu_custom_call.1} parent=1 // pred_check_branch
      %42 = sbr.rel (0) target = $region13
    $region12: #{tpu_custom_call.1} parent=1 // pred_region
      _
    $region13: #{tpu_custom_call.1} parent=1 // pred_fallthru
      _
    // Predicated region
    $region14: #{tpu_custom_call.1} parent=1 // pred_check
      _
    $region15: #{tpu_custom_call.1} parent=1 // pred_check_branch
      %44 = sbr.rel (0) target = $region17
    $region16: #{tpu_custom_call.1} parent=1 // pred_region
      %s46 = ssub.s32 512, 512
      %47 = vsyncadd [#allocation6], %s46
      %s48 = sshll.u32 [#allocation7], 4
      %s49 = int_to_ptr.vmem [resolvable:$true] %s48
      %54 = dma.hbm_to_vmem [thread:$0]  %s3, 512, %s49, [#allocation6], 64, 64, 4
    $region17: #{tpu_custom_call.1} parent=1 // pred_fallthru
      _
    // Predicated region
    $region18: #{tpu_custom_call.1} parent=1 // pred_check
      _
    $region19: #{tpu_custom_call.1} parent=1 // pred_check_branch
      %56 = sbr.rel (0) target = $region21
    $region20: #{tpu_custom_call.1} parent=1 // pred_region
      _
    $region21: #{tpu_custom_call.1} parent=1 // pred_fallthru
      _
    // Predicated region
    $region22: #{tpu_custom_call.1} parent=1 // pred_check
      _
    $region23: #{tpu_custom_call.1} parent=1 // pred_check_branch
      %58 = sbr.rel (0) target = $region25
    $region24: #{tpu_custom_call.1} parent=1 // pred_region
      %s60 = ssub.s32 1024, 1024
      %61 = vsyncadd [#allocation9], %s60
      %s62 = sshll.u32 [#allocation8], 4
      %s63 = int_to_ptr.vmem [resolvable:$true] %s62
      %68 = dma.hbm_to_vmem [thread:$0]  %s5, 1024, %s63, [#allocation9], 64, 64, 4
    $region25: #{tpu_custom_call.1} parent=1 // pred_fallthru
      _
    // Predicated region
    $region26: #{tpu_custom_call.1} parent=1 // pred_check
      _
    $region27: #{tpu_custom_call.1} parent=1 // pred_check_branch
      %70 = sbr.rel (0) target = $region29
    $region28: #{tpu_custom_call.1} parent=1 // pred_region
      %s72 = ssub.s32 384, 384
      %73 = vsyncadd [#allocation9], %s72
      %s74 = sshll.u32 [#allocation10], 4
      %s75 = int_to_ptr.vmem [resolvable:$true] %s74
      %80 = dma.hbm_to_vmem [thread:$0]  %s6, 384, %s75, [#allocation9], 64, 64, 4
    $region29: #{tpu_custom_call.1} parent=1 // pred_fallthru
      _
    // Predicated region
    $region30: #{tpu_custom_call.1} parent=1 // pred_check
      _
    $region31: #{tpu_custom_call.1} parent=1 // pred_check_branch
      %82 = sbr.rel (0) target = $region33
    $region32: #{tpu_custom_call.1} parent=1 // pred_region
      %s84 = ssub.s32 384, 384
      %85 = vsyncadd [#allocation12], %s84
      %s86 = sshll.u32 [#allocation11], 4
      %s87 = int_to_ptr.vmem [resolvable:$true] %s86
      %92 = dma.hbm_to_vmem [thread:$0]  %s7, 384, %s87, [#allocation12], 64, 64, 4
    $region33: #{tpu_custom_call.1} parent=1 // pred_fallthru
      _
    // Predicated region
    $region34: #{tpu_custom_call.1} parent=1 // pred_check
      _
    $region35: #{tpu_custom_call.1} parent=1 // pred_check_branch
      %94 = sbr.rel (0) target = $region37
    $region36: #{tpu_custom_call.1} parent=1 // pred_region
      %s96 = ssub.s32 12288, 12288
      %97 = vsyncadd [#allocation12], %s96
      %s98 = sshll.u32 [#allocation13], 4
      %s99 = int_to_ptr.vmem [resolvable:$true] %s98
      %104 = dma.hbm_to_vmem [thread:$0]  %s8, 12288, %s99, [#allocation12], 64, 64, 4
    $region37: #{tpu_custom_call.1} parent=1 // pred_fallthru
      _
    // Predicated region
    $region38: #{tpu_custom_call.1} parent=1 // pred_check
      _
    $region39: #{tpu_custom_call.1} parent=1 // pred_check_branch
      %106 = sbr.rel (0) target = $region41
    $region40: #{tpu_custom_call.1} parent=1 // pred_region
      %107 = dma.done [#allocation3], 640
    $region41: #{tpu_custom_call.1} parent=1 // pred_fallthru
      _
    // Predicated region
    $region42: #{tpu_custom_call.1} parent=1 // pred_check
      _
    $region43: #{tpu_custom_call.1} parent=1 // pred_check_branch
      %109 = sbr.rel (0) target = $region45
    $region44: #{tpu_custom_call.1} parent=1 // pred_region
      %110 = dma.done [#allocation6], 64
    $region45: #{tpu_custom_call.1} parent=1 // pred_fallthru
      _
    // Predicated region
    $region46: #{tpu_custom_call.1} parent=1 // pred_check
      _
    $region47: #{tpu_custom_call.1} parent=1 // pred_check_branch
      %112 = sbr.rel (0) target = $region49
    $region48: #{tpu_custom_call.1} parent=1 // pred_region
      %113 = dma.done [#allocation6], 512
    $region49: #{tpu_custom_call.1} parent=1 // pred_fallthru
      _
    // Predicated region
    $region50: #{tpu_custom_call.1} parent=1 // pred_check
      _
    $region51: #{tpu_custom_call.1} parent=1 // pred_check_branch
      %115 = sbr.rel (0) target = $region53
    $region52: #{tpu_custom_call.1} parent=1 // pred_region
      %116 = dma.done [#allocation9], 1024
    $region53: #{tpu_custom_call.1} parent=1 // pred_fallthru
      _
    // Predicated region
    $region54: #{tpu_custom_call.1} parent=1 // pred_check
      _
    $region55: #{tpu_custom_call.1} parent=1 // pred_check_branch
      %118 = sbr.rel (0) target = $region57
    $region56: #{tpu_custom_call.1} parent=1 // pred_region
      %119 = dma.done [#allocation9], 384
    $region57: #{tpu_custom_call.1} parent=1 // pred_fallthru
      _
    // Predicated region
    $region58: #{tpu_custom_call.1} parent=1 // pred_check
      _
    $region59: #{tpu_custom_call.1} parent=1 // pred_check_branch
      %121 = sbr.rel (0) target = $region61
    $region60: #{tpu_custom_call.1} parent=1 // pred_region
      %122 = dma.done [#allocation12], 384
    $region61: #{tpu_custom_call.1} parent=1 // pred_fallthru
      _
    // Predicated region
    $region62: #{tpu_custom_call.1} parent=1 // pred_check
      _
    $region63: #{tpu_custom_call.1} parent=1 // pred_check_branch
      %124 = sbr.rel (0) target = $region65
    $region64: #{tpu_custom_call.1} parent=1 // pred_region
      %125 = dma.done [#allocation12], 12288
    $region65: #{tpu_custom_call.1} parent=1 // pred_fallthru
      _
    %v127 = vld [vmem:[%s4] sm:$0x3]
    %v128 = vld [vmem:[#allocation2] sm:$0xff]
    %v129 = vld [vmem:[#allocation2 + $0x8] sm:$0xff]
    %v130 = vld [vmem:[#allocation2 + $0x10] sm:$0xff]
    %v131 = vld [vmem:[#allocation2 + $0x18] sm:$0xff]
    %v132 = vld [vmem:[#allocation2 + $0x20] sm:$0xff]
    %v133 = vld [vmem:[#allocation5] sm:$0x7]
    %v134 = vld [vmem:[%s2] sm:$0x1]
    %v135 = vld [vmem:[#allocation7] sm:$0xf]
    %v136 = vld [vmem:[#allocation7 + $0x4] sm:$0xf]
    %v137 = vld [vmem:[#allocation7 + $0x8] sm:$0xf]
    %v138 = vld [vmem:[#allocation7 + $0xc] sm:$0xf]
    %v139 = vld [vmem:[#allocation7 + $0x10] sm:$0xf]
    %v140 = vld [vmem:[#allocation7 + $0x14] sm:$0xf]
    %v141 = vld [vmem:[#allocation7 + $0x18] sm:$0xf]
    %v142 = vld [vmem:[#allocation7 + $0x1c] sm:$0xf]
    %v143 = vld [vmem:[#allocation8] sm:$0xf]
    %v144 = vld [vmem:[#allocation8 + $0x4] sm:$0xf]
    %v145 = vld [vmem:[#allocation8 + $0x8] sm:$0xf]
    %v146 = vld [vmem:[#allocation8 + $0xc] sm:$0xf]
    %v147 = vld [vmem:[#allocation8 + $0x10] sm:$0xf]
    %v148 = vld [vmem:[#allocation8 + $0x14] sm:$0xf]
    %v149 = vld [vmem:[#allocation8 + $0x18] sm:$0xf]
    %v150 = vld [vmem:[#allocation8 + $0x1c] sm:$0xf]
    %v151 = vld [vmem:[#allocation8 + $0x20] sm:$0xf]
    %v152 = vld [vmem:[#allocation8 + $0x24] sm:$0xf]
    %v153 = vld [vmem:[#allocation8 + $0x28] sm:$0xf]
    %v154 = vld [vmem:[#allocation8 + $0x2c] sm:$0xf]
    %v155 = vld [vmem:[#allocation8 + $0x30] sm:$0xf]
    %v156 = vld [vmem:[#allocation8 + $0x34] sm:$0xf]
    %v157 = vld [vmem:[#allocation8 + $0x38] sm:$0xf]
    %v158 = vld [vmem:[#allocation8 + $0x3c] sm:$0xf]
    %vm164 = vcmask 1041408
    %v165 = vrot.slane %v128, 6
    %v166 = vrot.slane %v129, 6
    %v167 = vsel %vm164, %v165, %v166
    %v168 = vrot.slane %v130, 6
    %v169 = vsel %vm164, %v166, %v168
    %v170 = vrot.slane %v131, 6
    %v171 = vsel %vm164, %v168, %v170
    %v172 = vrot.slane %v132, 6
    %v173 = vsel %vm164, %v170, %v172
    %v179 = vsel %vm164, 0.0, %v165
    %v180 = vlaneseq
    %v181 = vshrl.u32 %v180, 7
    %v182 = vsub.s32 0, %v181
    %v183 = vrot.slane %v133, %v182
    %v184 = vmul.f32 %v179, %v183
    %v185 = vmul.f32 %v167, %v183
    %v186 = vmul.f32 %v169, %v183
    %v187 = vmul.f32 %v171, %v183
    %v188 = vmul.f32 %v173, %v183
    %vm189 = vcmask 1040384
    %v190 = vrot.slane %v128, 7
    %v191 = vrot.slane %v129, 7
    %v192 = vsel %vm189, %v190, %v191
    %v193 = vrot.slane %v130, 7
    %v194 = vsel %vm189, %v191, %v193
    %v195 = vrot.slane %v131, 7
    %v196 = vsel %vm189, %v193, %v195
    %v197 = vrot.slane %v132, 7
    %v198 = vsel %vm189, %v195, %v197
    %v204 = vsel %vm189, 0.0, %v190
    %v205 = vlaneseq
    %v206 = vshrl.u32 %v205, 7
    %v207 = vsub.s32 1, %v206
    %v208 = vrot.slane %v133, %v207
    %v209 = vmul.f32 %v204, %v208
    %v210 = vmul.f32 %v192, %v208
    %v211 = vmul.f32 %v194, %v208
    %v212 = vmul.f32 %v196, %v208
    %v213 = vmul.f32 %v198, %v208
    %v214 = vadd.f32 %v184, %v209
    %v215 = vadd.f32 %v185, %v210
    %v216 = vadd.f32 %v186, %v211
    %v217 = vadd.f32 %v187, %v212
    %v218 = vadd.f32 %v188, %v213
    %v219 = vlaneseq
    %v220 = vshrl.u32 %v219, 7
    %v221 = vsub.s32 2, %v220
    %v222 = vrot.slane %v133, %v221
    %v223 = vmul.f32 %v128, %v222
    %v224 = vmul.f32 %v129, %v222
    %v225 = vmul.f32 %v130, %v222
    %v226 = vmul.f32 %v131, %v222
    %v227 = vmul.f32 %v132, %v222
    %v228 = vadd.f32 %v214, %v223
    %v229 = vadd.f32 %v215, %v224
    %v230 = vadd.f32 %v216, %v225
    %v231 = vadd.f32 %v217, %v226
    %v232 = vadd.f32 %v218, %v227
    %v234 = vlaneseq
    %v235 = vshrl.u32 %v234, 7
    %v236 = vsub.s32 0, %v235
    %v237 = vrot.slane %v134, %v236
    %v239 = vadd.f32 %v228, %v237
    %v240 = vadd.f32 %v229, %v237
    %v241 = vadd.f32 %v230, %v237
    %v242 = vadd.f32 %v231, %v237
    %v243 = vadd.f32 %v232, %v237
    %v244 = vmax.f32 %v239, 0.0
    %v245 = vmax.f32 %v240, 0.0
    %v246 = vmax.f32 %v241, 0.0
    %v247 = vmax.f32 %v242, 0.0
    %v248 = vmax.f32 %v243, 0.0
    %v249 = vpack.c.bf16 %v245, %v244
    %v250 = vpack.c.bf16 %v247, %v246
    %v251 = vpack.c.bf16 %v248, %v248
    %v252 = vlaneseq
    %v253 = vshrl.u32 %v252, 7
    %v254 = vsub.s32 0, %v253
    %v255 = vrot.slane %v127, %v254
    %v264 = vunpack.c.l.b16 %v135
    %v265 = vunpack.c.l.b16 %v136
    %v266 = vunpack.c.l.b16 %v137
    %v267 = vunpack.c.l.b16 %v138
    %v268 = vunpack.c.l.b16 %v139
    %v269 = vunpack.c.l.b16 %v140
    %v270 = vunpack.c.l.b16 %v141
    %v271 = vunpack.c.l.b16 %v142
    %v272 = vpack.c.b16 %v265, %v264
    %v273 = vpack.c.b16 %v267, %v266
    %v274 = vpack.c.b16 %v269, %v268
    %v275 = vpack.c.b16 %v271, %v270
    %vm280 = vcmask 523264
    %v282 = vsel %vm280, %v249, 0
    %v285 = vsel %vm280, %v250, 0
    %v288 = vsel %vm280, %v251, 0
    %290 = vmatprep.subr.bf16.mxu0 0
    %291 = vmatpush1.bf16.msra.mxu0 0
    %292 = vmatprep.subr.bf16.mxu0 0
    %293 = vmatpush1.bf16.msra.mxu0 0
    %294 = vmatprep.subr.bf16.mxu0 0
    %295 = vmatpush1.bf16.msra.mxu0 0
    %296 = vmatprep.subr.bf16.mxu0 0
    %297 = vmatpush1.bf16.msra.mxu0 0
    %298 = vmatprep.subr.bf16.mxu0 0
    %299 = vmatpush1.bf16.msra.mxu0 %v275
    %300 = vmatprep.subr.bf16.mxu0 0
    %301 = vmatpush1.bf16.msra.mxu0 %v274
    %302 = vmatprep.subr.bf16.mxu0 0
    %303 = vmatpush1.bf16.msra.mxu0 %v273
    %304 = vmatprep.subr.bf16.mxu0 0
    %305 = vmatpush1.bf16.msra.mxu0 %v272
    %306 = vmatprep.subr.bf16.mxu0 0
    %307 = vmatpush2.bf16.msra.mxu0 0
    %308 = vmatprep.subr.bf16.mxu0 0
    %309 = vmatpush2.bf16.msra.mxu0 0
    %310 = vmatprep.subr.bf16.mxu0 0
    %311 = vmatpush2.bf16.msra.mxu0 0
    %312 = vmatprep.subr.bf16.mxu0 0
    %313 = vmatpush2.bf16.msra.mxu0 0
    %314 = vmatprep.subr.bf16.mxu0 0
    %315 = vmatpush2.bf16.msra.mxu0 0
    %316 = vmatprep.subr.bf16.mxu0 0
    %317 = vmatpush2.bf16.msra.mxu0 0
    %318 = vmatprep.subr.bf16.mxu0 0
    %319 = vmatpush2.bf16.msra.mxu0 0
    %320 = vmatprep.subr.bf16.mxu0 0
    %321 = vmatpush2.bf16.msra.mxu0 0
    %322 = vmatprep.mubr.bf16.mxu0 0
    %323 = vmatmul.mubr.bf16.gmra.mxu0 %v282
    %v324 = vpop.f32.mrf.mxu0
    %v325 = vadd.f32 %v255, %v324
    %v326 = vpop.f32.mrf.mxu0
    %v327 = vpop.f32.mrf.mxu0
    %v328 = vadd.f32 %v255, %v327
    %v329 = vpop.f32.mrf.mxu0
    %330 = vmatprep.mubr.bf16.mxu0 0
    %331 = vmatmul.mubr.bf16.gmra.mxu0 %v285
    %v332 = vpop.f32.mrf.mxu0
    %v333 = vadd.f32 %v255, %v332
    %v334 = vpop.f32.mrf.mxu0
    %v335 = vpop.f32.mrf.mxu0
    %v336 = vadd.f32 %v255, %v335
    %v337 = vpop.f32.mrf.mxu0
    %338 = vmatprep.mubr.bf16.mxu0 0
    %339 = vmatmul.mubr.bf16.gmra.mxu0 %v288
    %v340 = vpop.f32.mrf.mxu0
    %v341 = vadd.f32 %v255, %v340
    %v342 = vpop.f32.mrf.mxu0
    %v343 = vpop.f32.mrf.mxu0
    %v344 = vpop.f32.mrf.mxu0
    %345 = vdwg.mxu0
    %v346 = vmax.f32 %v325, 0.0
    %v347 = vmax.f32 %v328, 0.0
    %v348 = vmax.f32 %v333, 0.0
    %v349 = vmax.f32 %v336, 0.0
    %v350 = vmax.f32 %v341, 0.0
    %v351 = vpack.c.bf16 %v347, %v346
    %v352 = vpack.c.bf16 %v349, %v348
    %v353 = vpack.c.bf16 %v350, %v350
    %v354 = vlaneseq
    %v355 = vshrl.u32 %v354, 7
    %v356 = vsub.s32 1, %v355
    %v357 = vrot.slane %v127, %v356
    %v374 = vunpack.c.l.b16 %v143
    %v375 = vunpack.c.l.b16 %v144
    %v376 = vunpack.c.l.b16 %v145
    %v377 = vunpack.c.l.b16 %v146
    %v378 = vunpack.c.l.b16 %v147
    %v379 = vunpack.c.l.b16 %v148
    %v380 = vunpack.c.l.b16 %v149
    %v381 = vunpack.c.l.b16 %v150
    %v382 = vunpack.c.l.b16 %v151
    %v383 = vunpack.c.l.b16 %v152
    %v384 = vunpack.c.l.b16 %v153
    %v385 = vunpack.c.l.b16 %v154
    %v386 = vunpack.c.l.b16 %v155
    %v387 = vunpack.c.l.b16 %v156
    %v388 = vunpack.c.l.b16 %v157
    %v389 = vunpack.c.l.b16 %v158
    %v390 = vpack.c.b16 %v375, %v374
    %v391 = vpack.c.b16 %v377, %v376
    %v392 = vpack.c.b16 %v379, %v378
    %v393 = vpack.c.b16 %v381, %v380
    %v394 = vpack.c.b16 %v383, %v382
    %v395 = vpack.c.b16 %v385, %v384
    %v396 = vpack.c.b16 %v387, %v386
    %v397 = vpack.c.b16 %v389, %v388
    %406 = vmatprep.subr.bf16.mxu0 0
    %407 = vmatpush1.bf16.msra.mxu0 %v397
    %408 = vmatprep.subr.bf16.mxu0 0
    %409 = vmatpush1.bf16.msra.mxu0 %v396
    %410 = vmatprep.subr.bf16.mxu0 0
    %411 = vmatpush1.bf16.msra.mxu0 %v395
    %412 = vmatprep.subr.bf16.mxu0 0
    %413 = vmatpush1.bf16.msra.mxu0 %v394
    %414 = vmatprep.subr.bf16.mxu0 0
    %415 = vmatpush1.bf16.msra.mxu0 %v393
    %416 = vmatprep.subr.bf16.mxu0 0
    %417 = vmatpush1.bf16.msra.mxu0 %v392
    %418 = vmatprep.subr.bf16.mxu0 0
    %419 = vmatpush1.bf16.msra.mxu0 %v391
    %420 = vmatprep.subr.bf16.mxu0 0
    %421 = vmatpush1.bf16.msra.mxu0 %v390
    %422 = vmatprep.subr.bf16.mxu0 0
    %423 = vmatpush2.bf16.msra.mxu0 0
    %424 = vmatprep.subr.bf16.mxu0 0
    %425 = vmatpush2.bf16.msra.mxu0 0
    %426 = vmatprep.subr.bf16.mxu0 0
    %427 = vmatpush2.bf16.msra.mxu0 0
    %428 = vmatprep.subr.bf16.mxu0 0
    %429 = vmatpush2.bf16.msra.mxu0 0
    %430 = vmatprep.subr.bf16.mxu0 0
    %431 = vmatpush2.bf16.msra.mxu0 0
    %432 = vmatprep.subr.bf16.mxu0 0
    %433 = vmatpush2.bf16.msra.mxu0 0
    %434 = vmatprep.subr.bf16.mxu0 0
    %435 = vmatpush2.bf16.msra.mxu0 0
    %436 = vmatprep.subr.bf16.mxu0 0
    %437 = vmatpush2.bf16.msra.mxu0 0
    %438 = vmatprep.mubr.bf16.mxu0 0
    %439 = vmatmul.mubr.bf16.gmra.mxu0 %v351
    %v440 = vpop.f32.mrf.mxu0
    %v441 = vadd.f32 %v357, %v440
    %v442 = vpop.f32.mrf.mxu0
    %v443 = vpop.f32.mrf.mxu0
    %v444 = vadd.f32 %v357, %v443
    %v445 = vpop.f32.mrf.mxu0
    %446 = vmatprep.mubr.bf16.mxu0 0
    %447 = vmatmul.mubr.bf16.gmra.mxu0 %v352
    %v448 = vpop.f32.mrf.mxu0
    %v449 = vadd.f32 %v357, %v448
    %v450 = vpop.f32.mrf.mxu0
    %v451 = vpop.f32.mrf.mxu0
    %v452 = vadd.f32 %v357, %v451
    %v453 = vpop.f32.mrf.mxu0
    %454 = vmatprep.mubr.bf16.mxu0 0
    %455 = vmatmul.mubr.bf16.gmra.mxu0 %v353
    %v456 = vpop.f32.mrf.mxu0
    %v457 = vadd.f32 %v357, %v456
    %v458 = vpop.f32.mrf.mxu0
    %v459 = vpop.f32.mrf.mxu0
    %v460 = vpop.f32.mrf.mxu0
    %461 = vdwg.mxu0
    %v462 = vmax.f32 %v441, 0.0
    %v463 = vmax.f32 %v444, 0.0
    %v464 = vmax.f32 %v449, 0.0
    %v465 = vmax.f32 %v452, 0.0
    %v466 = vmax.f32 %v457, 0.0
    %v467 = vld [vmem:[#allocation11] sm:$0x7]
    %v468 = vld [vmem:[#allocation10] sm:$0x7]
    %v469 = vld [vmem:[#allocation13] sm:$0xf]
    %v470 = vld [vmem:[#allocation13 + $0x4] sm:$0xf]
    %v471 = vld [vmem:[#allocation13 + $0x8] sm:$0xf]
    %v472 = vld [vmem:[#allocation13 + $0xc] sm:$0xf]
    %v473 = vld [vmem:[#allocation13 + $0x10] sm:$0xf]
    %v474 = vld [vmem:[#allocation13 + $0x14] sm:$0xf]
    %v475 = vld [vmem:[#allocation13 + $0x18] sm:$0xf]
    %v476 = vld [vmem:[#allocation13 + $0x1c] sm:$0xf]
    %v477 = vld [vmem:[#allocation13 + $0x20] sm:$0xf]
    %v478 = vld [vmem:[#allocation13 + $0x24] sm:$0xf]
    %v479 = vld [vmem:[#allocation13 + $0x28] sm:$0xf]
    %v480 = vld [vmem:[#allocation13 + $0x2c] sm:$0xf]
    %v481 = vld [vmem:[#allocation13 + $0x30] sm:$0xf]
    %v482 = vld [vmem:[#allocation13 + $0x34] sm:$0xf]
    %v483 = vld [vmem:[#allocation13 + $0x38] sm:$0xf]
    %v484 = vld [vmem:[#allocation13 + $0x3c] sm:$0xf]
    %s485 = scalar_lea.vmem [#allocation13], 64
    %v486 = vld [vmem:[%s485] sm:$0xf]
    %v487 = vld [vmem:[%s485 + $0x4] sm:$0xf]
    %v488 = vld [vmem:[%s485 + $0x8] sm:$0xf]
    %v489 = vld [vmem:[%s485 + $0xc] sm:$0xf]
    %v490 = vld [vmem:[%s485 + $0x10] sm:$0xf]
    %v491 = vld [vmem:[%s485 + $0x14] sm:$0xf]
    %v492 = vld [vmem:[%s485 + $0x18] sm:$0xf]
    %v493 = vld [vmem:[%s485 + $0x1c] sm:$0xf]
    %v494 = vld [vmem:[%s485 + $0x20] sm:$0xf]
    %v495 = vld [vmem:[%s485 + $0x24] sm:$0xf]
    %v496 = vld [vmem:[%s485 + $0x28] sm:$0xf]
    %v497 = vld [vmem:[%s485 + $0x2c] sm:$0xf]
    %v498 = vld [vmem:[%s485 + $0x30] sm:$0xf]
    %v499 = vld [vmem:[%s485 + $0x34] sm:$0xf]
    %v500 = vld [vmem:[%s485 + $0x38] sm:$0xf]
    %v501 = vld [vmem:[%s485 + $0x3c] sm:$0xf]
    %v507 = vrot.slane %v462, 6
    %v508 = vrot.slane %v463, 6
    %v509 = vsel %vm164, %v507, %v508
    %v510 = vrot.slane %v464, 6
    %v511 = vsel %vm164, %v508, %v510
    %v512 = vrot.slane %v465, 6
    %v513 = vsel %vm164, %v510, %v512
    %v514 = vrot.slane %v466, 6
    %v515 = vsel %vm164, %v512, %v514
    %v521 = vsel %vm164, 0.0, %v507
    %v522 = vlaneseq
    %v523 = vshrl.u32 %v522, 7
    %v524 = vsub.s32 0, %v523
    %v525 = vrot.slane %v468, %v524
    %v526 = vmul.f32 %v521, %v525
    %v527 = vmul.f32 %v509, %v525
    %v528 = vmul.f32 %v511, %v525
    %v529 = vmul.f32 %v513, %v525
    %v530 = vmul.f32 %v515, %v525
    %v531 = vrot.slane %v462, 7
    %v532 = vrot.slane %v463, 7
    %v533 = vsel %vm189, %v531, %v532
    %v534 = vrot.slane %v464, 7
    %v535 = vsel %vm189, %v532, %v534
    %v536 = vrot.slane %v465, 7
    %v537 = vsel %vm189, %v534, %v536
    %v538 = vrot.slane %v466, 7
    %v539 = vsel %vm189, %v536, %v538
    %v545 = vsel %vm189, 0.0, %v531
    %v546 = vlaneseq
    %v547 = vshrl.u32 %v546, 7
    %v548 = vsub.s32 1, %v547
    %v549 = vrot.slane %v468, %v548
    %v550 = vmul.f32 %v545, %v549
    %v551 = vmul.f32 %v533, %v549
    %v552 = vmul.f32 %v535, %v549
    %v553 = vmul.f32 %v537, %v549
    %v554 = vmul.f32 %v539, %v549
    %v555 = vadd.f32 %v526, %v550
    %v556 = vadd.f32 %v527, %v551
    %v557 = vadd.f32 %v528, %v552
    %v558 = vadd.f32 %v529, %v553
    %v559 = vadd.f32 %v530, %v554
    %v560 = vlaneseq
    %v561 = vshrl.u32 %v560, 7
    %v562 = vsub.s32 2, %v561
    %v563 = vrot.slane %v468, %v562
    %v564 = vmul.f32 %v462, %v563
    %v565 = vmul.f32 %v463, %v563
    %v566 = vmul.f32 %v464, %v563
    %v567 = vmul.f32 %v465, %v563
    %v568 = vmul.f32 %v466, %v563
    %v569 = vadd.f32 %v555, %v564
    %v570 = vadd.f32 %v556, %v565
    %v571 = vadd.f32 %v557, %v566
    %v572 = vadd.f32 %v558, %v567
    %v573 = vadd.f32 %v559, %v568
    %v574 = vlaneseq
    %v575 = vshrl.u32 %v574, 7
    %v576 = vsub.s32 0, %v575
    %v577 = vrot.slane %v467, %v576
    %v578 = vadd.f32 %v569, %v577
    %v579 = vadd.f32 %v570, %v577
    %v580 = vadd.f32 %v571, %v577
    %v581 = vadd.f32 %v572, %v577
    %v582 = vadd.f32 %v573, %v577
    %v583 = vmax.f32 %v578, 0.0
    %v584 = vmax.f32 %v579, 0.0
    %v585 = vmax.f32 %v580, 0.0
    %v586 = vmax.f32 %v581, 0.0
    %v587 = vmax.f32 %v582, 0.0
    %v588 = vpack.c.bf16 %v584, %v583
    %v589 = vpack.c.bf16 %v586, %v585
    %v590 = vpack.c.bf16 %v587, %v587
    %v591 = vlaneseq
    %v592 = vshrl.u32 %v591, 7
    %v593 = vsub.s32 1, %v592
    %v594 = vrot.slane %v467, %v593
    %v611 = vunpack.c.l.b16 %v469
    %v612 = vunpack.c.l.b16 %v470
    %v613 = vunpack.c.l.b16 %v471
    %v614 = vunpack.c.l.b16 %v472
    %v615 = vunpack.c.l.b16 %v473
    %v616 = vunpack.c.l.b16 %v474
    %v617 = vunpack.c.l.b16 %v475
    %v618 = vunpack.c.l.b16 %v476
    %v619 = vunpack.c.l.b16 %v477
    %v620 = vunpack.c.l.b16 %v478
    %v621 = vunpack.c.l.b16 %v479
    %v622 = vunpack.c.l.b16 %v480
    %v623 = vunpack.c.l.b16 %v481
    %v624 = vunpack.c.l.b16 %v482
    %v625 = vunpack.c.l.b16 %v483
    %v626 = vunpack.c.l.b16 %v484
    %v627 = vpack.c.b16 %v612, %v611
    %v628 = vpack.c.b16 %v614, %v613
    %v629 = vpack.c.b16 %v616, %v615
    %v630 = vpack.c.b16 %v618, %v617
    %v631 = vpack.c.b16 %v620, %v619
    %v632 = vpack.c.b16 %v622, %v621
    %v633 = vpack.c.b16 %v624, %v623
    %v634 = vpack.c.b16 %v626, %v625
    %643 = vmatprep.subr.bf16.mxu0 0
    %644 = vmatpush1.bf16.msra.mxu0 %v634
    %645 = vmatprep.subr.bf16.mxu0 0
    %646 = vmatpush1.bf16.msra.mxu0 %v633
    %647 = vmatprep.subr.bf16.mxu0 0
    %648 = vmatpush1.bf16.msra.mxu0 %v632
    %649 = vmatprep.subr.bf16.mxu0 0
    %650 = vmatpush1.bf16.msra.mxu0 %v631
    %651 = vmatprep.subr.bf16.mxu0 0
    %652 = vmatpush1.bf16.msra.mxu0 %v630
    %653 = vmatprep.subr.bf16.mxu0 0
    %654 = vmatpush1.bf16.msra.mxu0 %v629
    %655 = vmatprep.subr.bf16.mxu0 0
    %656 = vmatpush1.bf16.msra.mxu0 %v628
    %657 = vmatprep.subr.bf16.mxu0 0
    %658 = vmatpush1.bf16.msra.mxu0 %v627
    %659 = vmatprep.subr.bf16.mxu0 0
    %660 = vmatpush2.bf16.msra.mxu0 0
    %661 = vmatprep.subr.bf16.mxu0 0
    %662 = vmatpush2.bf16.msra.mxu0 0
    %663 = vmatprep.subr.bf16.mxu0 0
    %664 = vmatpush2.bf16.msra.mxu0 0
    %665 = vmatprep.subr.bf16.mxu0 0
    %666 = vmatpush2.bf16.msra.mxu0 0
    %667 = vmatprep.subr.bf16.mxu0 0
    %668 = vmatpush2.bf16.msra.mxu0 0
    %669 = vmatprep.subr.bf16.mxu0 0
    %670 = vmatpush2.bf16.msra.mxu0 0
    %671 = vmatprep.subr.bf16.mxu0 0
    %672 = vmatpush2.bf16.msra.mxu0 0
    %673 = vmatprep.subr.bf16.mxu0 0
    %674 = vmatpush2.bf16.msra.mxu0 0
    %675 = vmatprep.mubr.bf16.mxu0 0
    %676 = vmatmul.mubr.bf16.gmra.mxu0 %v588
    %v677 = vpop.f32.mrf.mxu0
    %v678 = vadd.f32 %v594, %v677
    %v679 = vpop.f32.mrf.mxu0
    %v680 = vpop.f32.mrf.mxu0
    %v681 = vadd.f32 %v594, %v680
    %v682 = vpop.f32.mrf.mxu0
    %683 = vmatprep.mubr.bf16.mxu0 0
    %684 = vmatmul.mubr.bf16.gmra.mxu0 %v589
    %v685 = vpop.f32.mrf.mxu0
    %v686 = vadd.f32 %v594, %v685
    %v687 = vpop.f32.mrf.mxu0
    %v688 = vpop.f32.mrf.mxu0
    %v689 = vadd.f32 %v594, %v688
    %v690 = vpop.f32.mrf.mxu0
    %691 = vmatprep.mubr.bf16.mxu0 0
    %692 = vmatmul.mubr.bf16.gmra.mxu0 %v590
    %v693 = vpop.f32.mrf.mxu0
    %v694 = vadd.f32 %v594, %v693
    %v695 = vpop.f32.mrf.mxu0
    %v696 = vpop.f32.mrf.mxu0
    %v697 = vpop.f32.mrf.mxu0
    %698 = vdwg.mxu0
    %v699 = vmax.f32 %v678, 0.0
    %v700 = vmax.f32 %v681, 0.0
    %v701 = vmax.f32 %v686, 0.0
    %v702 = vmax.f32 %v689, 0.0
    %v703 = vmax.f32 %v694, 0.0
    %v704 = vpack.c.bf16 %v700, %v699
    %v705 = vpack.c.bf16 %v702, %v701
    %v706 = vpack.c.bf16 %v703, %v703
    %v707 = vlaneseq
    %v708 = vshrl.u32 %v707, 7
    %v709 = vsub.s32 2, %v708
    %v710 = vrot.slane %v467, %v709
    %v727 = vunpack.c.l.b16 %v486
    %v728 = vunpack.c.l.b16 %v487
    %v729 = vunpack.c.l.b16 %v488
    %v730 = vunpack.c.l.b16 %v489
    %v731 = vunpack.c.l.b16 %v490
    %v732 = vunpack.c.l.b16 %v491
    %v733 = vunpack.c.l.b16 %v492
    %v734 = vunpack.c.l.b16 %v493
    %v735 = vunpack.c.l.b16 %v494
    %v736 = vunpack.c.l.b16 %v495
    %v737 = vunpack.c.l.b16 %v496
    %v738 = vunpack.c.l.b16 %v497
    %v739 = vunpack.c.l.b16 %v498
    %v740 = vunpack.c.l.b16 %v499
    %v741 = vunpack.c.l.b16 %v500
    %v742 = vunpack.c.l.b16 %v501
    %v743 = vpack.c.b16 %v728, %v727
    %v744 = vpack.c.b16 %v730, %v729
    %v745 = vpack.c.b16 %v732, %v731
    %v746 = vpack.c.b16 %v734, %v733
    %v747 = vpack.c.b16 %v736, %v735
    %v748 = vpack.c.b16 %v738, %v737
    %v749 = vpack.c.b16 %v740, %v739
    %v750 = vpack.c.b16 %v742, %v741
    %759 = vmatprep.subr.bf16.mxu0 0
    %760 = vmatpush1.bf16.msra.mxu0 %v750
    %761 = vmatprep.subr.bf16.mxu0 0
    %762 = vmatpush1.bf16.msra.mxu0 %v749
    %763 = vmatprep.subr.bf16.mxu0 0
    %764 = vmatpush1.bf16.msra.mxu0 %v748
    %765 = vmatprep.subr.bf16.mxu0 0
    %766 = vmatpush1.bf16.msra.mxu0 %v747
    %767 = vmatprep.subr.bf16.mxu0 0
    %768 = vmatpush1.bf16.msra.mxu0 %v746
    %769 = vmatprep.subr.bf16.mxu0 0
    %770 = vmatpush1.bf16.msra.mxu0 %v745
    %771 = vmatprep.subr.bf16.mxu0 0
    %772 = vmatpush1.bf16.msra.mxu0 %v744
    %773 = vmatprep.subr.bf16.mxu0 0
    %774 = vmatpush1.bf16.msra.mxu0 %v743
    %775 = vmatprep.subr.bf16.mxu0 0
    %776 = vmatpush2.bf16.msra.mxu0 0
    %777 = vmatprep.subr.bf16.mxu0 0
    %778 = vmatpush2.bf16.msra.mxu0 0
    %779 = vmatprep.subr.bf16.mxu0 0
    %780 = vmatpush2.bf16.msra.mxu0 0
    %781 = vmatprep.subr.bf16.mxu0 0
    %782 = vmatpush2.bf16.msra.mxu0 0
    %783 = vmatprep.subr.bf16.mxu0 0
    %784 = vmatpush2.bf16.msra.mxu0 0
    %785 = vmatprep.subr.bf16.mxu0 0
    %786 = vmatpush2.bf16.msra.mxu0 0
    %787 = vmatprep.subr.bf16.mxu0 0
    %788 = vmatpush2.bf16.msra.mxu0 0
    %789 = vmatprep.subr.bf16.mxu0 0
    %790 = vmatpush2.bf16.msra.mxu0 0
    %791 = vmatprep.mubr.bf16.mxu0 0
    %792 = vmatmul.mubr.bf16.gmra.mxu0 %v704
    %v793 = vpop.f32.mrf.mxu0
    %v794 = vadd.f32 %v710, %v793
    %v795 = vpop.f32.mrf.mxu0
    %v796 = vpop.f32.mrf.mxu0
    %v797 = vadd.f32 %v710, %v796
    %v798 = vpop.f32.mrf.mxu0
    %799 = vmatprep.mubr.bf16.mxu0 0
    %800 = vmatmul.mubr.bf16.gmra.mxu0 %v705
    %v801 = vpop.f32.mrf.mxu0
    %v802 = vadd.f32 %v710, %v801
    %v803 = vpop.f32.mrf.mxu0
    %v804 = vpop.f32.mrf.mxu0
    %v805 = vadd.f32 %v710, %v804
    %v806 = vpop.f32.mrf.mxu0
    %807 = vmatprep.mubr.bf16.mxu0 0
    %808 = vmatmul.mubr.bf16.gmra.mxu0 %v706
    %v809 = vpop.f32.mrf.mxu0
    %v810 = vadd.f32 %v710, %v809
    %v811 = vpop.f32.mrf.mxu0
    %v812 = vpop.f32.mrf.mxu0
    %v813 = vpop.f32.mrf.mxu0
    %814 = vdwg.mxu0
    %v815 = vadd.f32 %v794, %v462
    %v816 = vadd.f32 %v797, %v463
    %v817 = vadd.f32 %v802, %v464
    %v818 = vadd.f32 %v805, %v465
    %v819 = vadd.f32 %v810, %v466
    %v820 = vmax.f32 %v815, 0.0
    %v821 = vmax.f32 %v816, 0.0
    %v822 = vmax.f32 %v817, 0.0
    %v823 = vmax.f32 %v818, 0.0
    %v824 = vmax.f32 %v819, 0.0
    %s825 = scalar_lea.vmem [#allocation11], 4
    %v826 = vld [vmem:[%s825] sm:$0x7]
    %s827 = scalar_lea.vmem [#allocation10], 4
    %v828 = vld [vmem:[%s827] sm:$0x7]
    %s829 = scalar_lea.vmem [#allocation13], 128
    %v830 = vld [vmem:[%s829] sm:$0xf]
    %v831 = vld [vmem:[%s829 + $0x4] sm:$0xf]
    %v832 = vld [vmem:[%s829 + $0x8] sm:$0xf]
    %v833 = vld [vmem:[%s829 + $0xc] sm:$0xf]
    %v834 = vld [vmem:[%s829 + $0x10] sm:$0xf]
    %v835 = vld [vmem:[%s829 + $0x14] sm:$0xf]
    %v836 = vld [vmem:[%s829 + $0x18] sm:$0xf]
    %v837 = vld [vmem:[%s829 + $0x1c] sm:$0xf]
    %v838 = vld [vmem:[%s829 + $0x20] sm:$0xf]
    %v839 = vld [vmem:[%s829 + $0x24] sm:$0xf]
    %v840 = vld [vmem:[%s829 + $0x28] sm:$0xf]
    %v841 = vld [vmem:[%s829 + $0x2c] sm:$0xf]
    %v842 = vld [vmem:[%s829 + $0x30] sm:$0xf]
    %v843 = vld [vmem:[%s829 + $0x34] sm:$0xf]
    %v844 = vld [vmem:[%s829 + $0x38] sm:$0xf]
    %v845 = vld [vmem:[%s829 + $0x3c] sm:$0xf]
    %s846 = scalar_lea.vmem [#allocation13], 192
    %v847 = vld [vmem:[%s846] sm:$0xf]
    %v848 = vld [vmem:[%s846 + $0x4] sm:$0xf]
    %v849 = vld [vmem:[%s846 + $0x8] sm:$0xf]
    %v850 = vld [vmem:[%s846 + $0xc] sm:$0xf]
    %v851 = vld [vmem:[%s846 + $0x10] sm:$0xf]
    %v852 = vld [vmem:[%s846 + $0x14] sm:$0xf]
    %v853 = vld [vmem:[%s846 + $0x18] sm:$0xf]
    %v854 = vld [vmem:[%s846 + $0x1c] sm:$0xf]
    %v855 = vld [vmem:[%s846 + $0x20] sm:$0xf]
    %v856 = vld [vmem:[%s846 + $0x24] sm:$0xf]
    %v857 = vld [vmem:[%s846 + $0x28] sm:$0xf]
    %v858 = vld [vmem:[%s846 + $0x2c] sm:$0xf]
    %v859 = vld [vmem:[%s846 + $0x30] sm:$0xf]
    %v860 = vld [vmem:[%s846 + $0x34] sm:$0xf]
    %v861 = vld [vmem:[%s846 + $0x38] sm:$0xf]
    %v862 = vld [vmem:[%s846 + $0x3c] sm:$0xf]
    %vm868 = vcmask 1043456
    %v869 = vrot.slane %v820, 4
    %v870 = vrot.slane %v821, 4
    %v871 = vsel %vm868, %v869, %v870
    %v872 = vrot.slane %v822, 4
    %v873 = vsel %vm868, %v870, %v872
    %v874 = vrot.slane %v823, 4
    %v875 = vsel %vm868, %v872, %v874
    %v876 = vrot.slane %v824, 4
    %v877 = vsel %vm868, %v874, %v876
    %v883 = vsel %vm868, 0.0, %v869
    %v884 = vlaneseq
    %v885 = vshrl.u32 %v884, 7
    %v886 = vsub.s32 0, %v885
    %v887 = vrot.slane %v828, %v886
    %v888 = vmul.f32 %v883, %v887
    %v889 = vmul.f32 %v871, %v887
    %v890 = vmul.f32 %v873, %v887
    %v891 = vmul.f32 %v875, %v887
    %v892 = vmul.f32 %v877, %v887
    %v893 = vrot.slane %v820, 6
    %v894 = vrot.slane %v821, 6
    %v895 = vsel %vm164, %v893, %v894
    %v896 = vrot.slane %v822, 6
    %v897 = vsel %vm164, %v894, %v896
    %v898 = vrot.slane %v823, 6
    %v899 = vsel %vm164, %v896, %v898
    %v900 = vrot.slane %v824, 6
    %v901 = vsel %vm164, %v898, %v900
    %v907 = vsel %vm164, 0.0, %v893
    %v908 = vlaneseq
    %v909 = vshrl.u32 %v908, 7
    %v910 = vsub.s32 1, %v909
    %v911 = vrot.slane %v828, %v910
    %v912 = vmul.f32 %v907, %v911
    %v913 = vmul.f32 %v895, %v911
    %v914 = vmul.f32 %v897, %v911
    %v915 = vmul.f32 %v899, %v911
    %v916 = vmul.f32 %v901, %v911
    %v917 = vadd.f32 %v888, %v912
    %v918 = vadd.f32 %v889, %v913
    %v919 = vadd.f32 %v890, %v914
    %v920 = vadd.f32 %v891, %v915
    %v921 = vadd.f32 %v892, %v916
    %v922 = vlaneseq
    %v923 = vshrl.u32 %v922, 7
    %v924 = vsub.s32 2, %v923
    %v925 = vrot.slane %v828, %v924
    %v926 = vmul.f32 %v820, %v925
    %v927 = vmul.f32 %v821, %v925
    %v928 = vmul.f32 %v822, %v925
    %v929 = vmul.f32 %v823, %v925
    %v930 = vmul.f32 %v824, %v925
    %v931 = vadd.f32 %v917, %v926
    %v932 = vadd.f32 %v918, %v927
    %v933 = vadd.f32 %v919, %v928
    %v934 = vadd.f32 %v920, %v929
    %v935 = vadd.f32 %v921, %v930
    %v936 = vlaneseq
    %v937 = vshrl.u32 %v936, 7
    %v938 = vsub.s32 0, %v937
    %v939 = vrot.slane %v826, %v938
    %v940 = vadd.f32 %v931, %v939
    %v941 = vadd.f32 %v932, %v939
    %v942 = vadd.f32 %v933, %v939
    %v943 = vadd.f32 %v934, %v939
    %v944 = vadd.f32 %v935, %v939
    %v945 = vmax.f32 %v940, 0.0
    %v946 = vmax.f32 %v941, 0.0
    %v947 = vmax.f32 %v942, 0.0
    %v948 = vmax.f32 %v943, 0.0
    %v949 = vmax.f32 %v944, 0.0
    %v950 = vpack.c.bf16 %v946, %v945
    %v951 = vpack.c.bf16 %v948, %v947
    %v952 = vpack.c.bf16 %v949, %v949
    %v953 = vlaneseq
    %v954 = vshrl.u32 %v953, 7
    %v955 = vsub.s32 1, %v954
    %v956 = vrot.slane %v826, %v955
    %v973 = vunpack.c.l.b16 %v830
    %v974 = vunpack.c.l.b16 %v831
    %v975 = vunpack.c.l.b16 %v832
    %v976 = vunpack.c.l.b16 %v833
    %v977 = vunpack.c.l.b16 %v834
    %v978 = vunpack.c.l.b16 %v835
    %v979 = vunpack.c.l.b16 %v836
    %v980 = vunpack.c.l.b16 %v837
    %v981 = vunpack.c.l.b16 %v838
    %v982 = vunpack.c.l.b16 %v839
    %v983 = vunpack.c.l.b16 %v840
    %v984 = vunpack.c.l.b16 %v841
    %v985 = vunpack.c.l.b16 %v842
    %v986 = vunpack.c.l.b16 %v843
    %v987 = vunpack.c.l.b16 %v844
    %v988 = vunpack.c.l.b16 %v845
    %v989 = vpack.c.b16 %v974, %v973
    %v990 = vpack.c.b16 %v976, %v975
    %v991 = vpack.c.b16 %v978, %v977
    %v992 = vpack.c.b16 %v980, %v979
    %v993 = vpack.c.b16 %v982, %v981
    %v994 = vpack.c.b16 %v984, %v983
    %v995 = vpack.c.b16 %v986, %v985
    %v996 = vpack.c.b16 %v988, %v987
    %1005 = vmatprep.subr.bf16.mxu0 0
    %1006 = vmatpush1.bf16.msra.mxu0 %v996
    %1007 = vmatprep.subr.bf16.mxu0 0
    %1008 = vmatpush1.bf16.msra.mxu0 %v995
    %1009 = vmatprep.subr.bf16.mxu0 0
    %1010 = vmatpush1.bf16.msra.mxu0 %v994
    %1011 = vmatprep.subr.bf16.mxu0 0
    %1012 = vmatpush1.bf16.msra.mxu0 %v993
    %1013 = vmatprep.subr.bf16.mxu0 0
    %1014 = vmatpush1.bf16.msra.mxu0 %v992
    %1015 = vmatprep.subr.bf16.mxu0 0
    %1016 = vmatpush1.bf16.msra.mxu0 %v991
    %1017 = vmatprep.subr.bf16.mxu0 0
    %1018 = vmatpush1.bf16.msra.mxu0 %v990
    %1019 = vmatprep.subr.bf16.mxu0 0
    %1020 = vmatpush1.bf16.msra.mxu0 %v989
    %1021 = vmatprep.subr.bf16.mxu0 0
    %1022 = vmatpush2.bf16.msra.mxu0 0
    %1023 = vmatprep.subr.bf16.mxu0 0
    %1024 = vmatpush2.bf16.msra.mxu0 0
    %1025 = vmatprep.subr.bf16.mxu0 0
    %1026 = vmatpush2.bf16.msra.mxu0 0
    %1027 = vmatprep.subr.bf16.mxu0 0
    %1028 = vmatpush2.bf16.msra.mxu0 0
    %1029 = vmatprep.subr.bf16.mxu0 0
    %1030 = vmatpush2.bf16.msra.mxu0 0
    %1031 = vmatprep.subr.bf16.mxu0 0
    %1032 = vmatpush2.bf16.msra.mxu0 0
    %1033 = vmatprep.subr.bf16.mxu0 0
    %1034 = vmatpush2.bf16.msra.mxu0 0
    %1035 = vmatprep.subr.bf16.mxu0 0
    %1036 = vmatpush2.bf16.msra.mxu0 0
    %1037 = vmatprep.mubr.bf16.mxu0 0
    %1038 = vmatmul.mubr.bf16.gmra.mxu0 %v950
    %v1039 = vpop.f32.mrf.mxu0
    %v1040 = vadd.f32 %v956, %v1039
    %v1041 = vpop.f32.mrf.mxu0
    %v1042 = vpop.f32.mrf.mxu0
    %v1043 = vadd.f32 %v956, %v1042
    %v1044 = vpop.f32.mrf.mxu0
    %1045 = vmatprep.mubr.bf16.mxu0 0
    %1046 = vmatmul.mubr.bf16.gmra.mxu0 %v951
    %v1047 = vpop.f32.mrf.mxu0
    %v1048 = vadd.f32 %v956, %v1047
    %v1049 = vpop.f32.mrf.mxu0
    %v1050 = vpop.f32.mrf.mxu0
    %v1051 = vadd.f32 %v956, %v1050
    %v1052 = vpop.f32.mrf.mxu0
    %1053 = vmatprep.mubr.bf16.mxu0 0
    %1054 = vmatmul.mubr.bf16.gmra.mxu0 %v952
    %v1055 = vpop.f32.mrf.mxu0
    %v1056 = vadd.f32 %v956, %v1055
    %v1057 = vpop.f32.mrf.mxu0
    %v1058 = vpop.f32.mrf.mxu0
    %v1059 = vpop.f32.mrf.mxu0
    %1060 = vdwg.mxu0
    %v1061 = vmax.f32 %v1040, 0.0
    %v1062 = vmax.f32 %v1043, 0.0
    %v1063 = vmax.f32 %v1048, 0.0
    %v1064 = vmax.f32 %v1051, 0.0
    %v1065 = vmax.f32 %v1056, 0.0
    %v1066 = vpack.c.bf16 %v1062, %v1061
    %v1067 = vpack.c.bf16 %v1064, %v1063
    %v1068 = vpack.c.bf16 %v1065, %v1065
    %v1069 = vlaneseq
    %v1070 = vshrl.u32 %v1069, 7
    %v1071 = vsub.s32 2, %v1070
    %v1072 = vrot.slane %v826, %v1071
    %v1089 = vunpack.c.l.b16 %v847
    %v1090 = vunpack.c.l.b16 %v848
    %v1091 = vunpack.c.l.b16 %v849
    %v1092 = vunpack.c.l.b16 %v850
    %v1093 = vunpack.c.l.b16 %v851
    %v1094 = vunpack.c.l.b16 %v852
    %v1095 = vunpack.c.l.b16 %v853
    %v1096 = vunpack.c.l.b16 %v854
    %v1097 = vunpack.c.l.b16 %v855
    %v1098 = vunpack.c.l.b16 %v856
    %v1099 = vunpack.c.l.b16 %v857
    %v1100 = vunpack.c.l.b16 %v858
    %v1101 = vunpack.c.l.b16 %v859
    %v1102 = vunpack.c.l.b16 %v860
    %v1103 = vunpack.c.l.b16 %v861
    %v1104 = vunpack.c.l.b16 %v862
    %v1105 = vpack.c.b16 %v1090, %v1089
    %v1106 = vpack.c.b16 %v1092, %v1091
    %v1107 = vpack.c.b16 %v1094, %v1093
    %v1108 = vpack.c.b16 %v1096, %v1095
    %v1109 = vpack.c.b16 %v1098, %v1097
    %v1110 = vpack.c.b16 %v1100, %v1099
    %v1111 = vpack.c.b16 %v1102, %v1101
    %v1112 = vpack.c.b16 %v1104, %v1103
    %1121 = vmatprep.subr.bf16.mxu0 0
    %1122 = vmatpush1.bf16.msra.mxu0 %v1112
    %1123 = vmatprep.subr.bf16.mxu0 0
    %1124 = vmatpush1.bf16.msra.mxu0 %v1111
    %1125 = vmatprep.subr.bf16.mxu0 0
    %1126 = vmatpush1.bf16.msra.mxu0 %v1110
    %1127 = vmatprep.subr.bf16.mxu0 0
    %1128 = vmatpush1.bf16.msra.mxu0 %v1109
    %1129 = vmatprep.subr.bf16.mxu0 0
    %1130 = vmatpush1.bf16.msra.mxu0 %v1108
    %1131 = vmatprep.subr.bf16.mxu0 0
    %1132 = vmatpush1.bf16.msra.mxu0 %v1107
    %1133 = vmatprep.subr.bf16.mxu0 0
    %1134 = vmatpush1.bf16.msra.mxu0 %v1106
    %1135 = vmatprep.subr.bf16.mxu0 0
    %1136 = vmatpush1.bf16.msra.mxu0 %v1105
    %1137 = vmatprep.subr.bf16.mxu0 0
    %1138 = vmatpush2.bf16.msra.mxu0 0
    %1139 = vmatprep.subr.bf16.mxu0 0
    %1140 = vmatpush2.bf16.msra.mxu0 0
    %1141 = vmatprep.subr.bf16.mxu0 0
    %1142 = vmatpush2.bf16.msra.mxu0 0
    %1143 = vmatprep.subr.bf16.mxu0 0
    %1144 = vmatpush2.bf16.msra.mxu0 0
    %1145 = vmatprep.subr.bf16.mxu0 0
    %1146 = vmatpush2.bf16.msra.mxu0 0
    %1147 = vmatprep.subr.bf16.mxu0 0
    %1148 = vmatpush2.bf16.msra.mxu0 0
    %1149 = vmatprep.subr.bf16.mxu0 0
    %1150 = vmatpush2.bf16.msra.mxu0 0
    %1151 = vmatprep.subr.bf16.mxu0 0
    %1152 = vmatpush2.bf16.msra.mxu0 0
    %1153 = vmatprep.mubr.bf16.mxu0 0
    %1154 = vmatmul.mubr.bf16.gmra.mxu0 %v1066
    %v1155 = vpop.f32.mrf.mxu0
    %v1156 = vadd.f32 %v1072, %v1155
    %v1157 = vpop.f32.mrf.mxu0
    %v1158 = vpop.f32.mrf.mxu0
    %v1159 = vadd.f32 %v1072, %v1158
    %v1160 = vpop.f32.mrf.mxu0
    %1161 = vmatprep.mubr.bf16.mxu0 0
    %1162 = vmatmul.mubr.bf16.gmra.mxu0 %v1067
    %v1163 = vpop.f32.mrf.mxu0
    %v1164 = vadd.f32 %v1072, %v1163
    %v1165 = vpop.f32.mrf.mxu0
    %v1166 = vpop.f32.mrf.mxu0
    %v1167 = vadd.f32 %v1072, %v1166
    %v1168 = vpop.f32.mrf.mxu0
    %1169 = vmatprep.mubr.bf16.mxu0 0
    %1170 = vmatmul.mubr.bf16.gmra.mxu0 %v1068
    %v1171 = vpop.f32.mrf.mxu0
    %v1172 = vadd.f32 %v1072, %v1171
    %v1173 = vpop.f32.mrf.mxu0
    %v1174 = vpop.f32.mrf.mxu0
    %v1175 = vpop.f32.mrf.mxu0
    %1176 = vdwg.mxu0
    %v1177 = vadd.f32 %v1156, %v820
    %v1178 = vadd.f32 %v1159, %v821
    %v1179 = vadd.f32 %v1164, %v822
    %v1180 = vadd.f32 %v1167, %v823
    %v1181 = vadd.f32 %v1172, %v824
    %v1182 = vmax.f32 %v1177, 0.0
    %v1183 = vmax.f32 %v1178, 0.0
    %v1184 = vmax.f32 %v1179, 0.0
    %v1185 = vmax.f32 %v1180, 0.0
    %v1186 = vmax.f32 %v1181, 0.0
    %s1187 = scalar_lea.vmem [#allocation11], 8
    %v1188 = vld [vmem:[%s1187] sm:$0x7]
    %s1189 = scalar_lea.vmem [#allocation10], 8
    %v1190 = vld [vmem:[%s1189] sm:$0x7]
    %s1191 = scalar_lea.vmem [#allocation13], 256
    %v1192 = vld [vmem:[%s1191] sm:$0xf]
    %v1193 = vld [vmem:[%s1191 + $0x4] sm:$0xf]
    %v1194 = vld [vmem:[%s1191 + $0x8] sm:$0xf]
    %v1195 = vld [vmem:[%s1191 + $0xc] sm:$0xf]
    %v1196 = vld [vmem:[%s1191 + $0x10] sm:$0xf]
    %v1197 = vld [vmem:[%s1191 + $0x14] sm:$0xf]
    %v1198 = vld [vmem:[%s1191 + $0x18] sm:$0xf]
    %v1199 = vld [vmem:[%s1191 + $0x1c] sm:$0xf]
    %v1200 = vld [vmem:[%s1191 + $0x20] sm:$0xf]
    %v1201 = vld [vmem:[%s1191 + $0x24] sm:$0xf]
    %v1202 = vld [vmem:[%s1191 + $0x28] sm:$0xf]
    %v1203 = vld [vmem:[%s1191 + $0x2c] sm:$0xf]
    %v1204 = vld [vmem:[%s1191 + $0x30] sm:$0xf]
    %v1205 = vld [vmem:[%s1191 + $0x34] sm:$0xf]
    %v1206 = vld [vmem:[%s1191 + $0x38] sm:$0xf]
    %v1207 = vld [vmem:[%s1191 + $0x3c] sm:$0xf]
    %s1208 = scalar_lea.vmem [#allocation13], 320
    %v1209 = vld [vmem:[%s1208] sm:$0xf]
    %v1210 = vld [vmem:[%s1208 + $0x4] sm:$0xf]
    %v1211 = vld [vmem:[%s1208 + $0x8] sm:$0xf]
    %v1212 = vld [vmem:[%s1208 + $0xc] sm:$0xf]
    %v1213 = vld [vmem:[%s1208 + $0x10] sm:$0xf]
    %v1214 = vld [vmem:[%s1208 + $0x14] sm:$0xf]
    %v1215 = vld [vmem:[%s1208 + $0x18] sm:$0xf]
    %v1216 = vld [vmem:[%s1208 + $0x1c] sm:$0xf]
    %v1217 = vld [vmem:[%s1208 + $0x20] sm:$0xf]
    %v1218 = vld [vmem:[%s1208 + $0x24] sm:$0xf]
    %v1219 = vld [vmem:[%s1208 + $0x28] sm:$0xf]
    %v1220 = vld [vmem:[%s1208 + $0x2c] sm:$0xf]
    %v1221 = vld [vmem:[%s1208 + $0x30] sm:$0xf]
    %v1222 = vld [vmem:[%s1208 + $0x34] sm:$0xf]
    %v1223 = vld [vmem:[%s1208 + $0x38] sm:$0xf]
    %v1224 = vld [vmem:[%s1208 + $0x3c] sm:$0xf]
    %v1230 = vrot.slane %v1182, 6
    %v1231 = vrot.slane %v1183, 6
    %v1232 = vsel %vm164, %v1230, %v1231
    %v1233 = vrot.slane %v1184, 6
    %v1234 = vsel %vm164, %v1231, %v1233
    %v1235 = vrot.slane %v1185, 6
    %v1236 = vsel %vm164, %v1233, %v1235
    %v1237 = vrot.slane %v1186, 6
    %v1238 = vsel %vm164, %v1235, %v1237
    %v1244 = vsel %vm164, 0.0, %v1230
    %v1245 = vlaneseq
    %v1246 = vshrl.u32 %v1245, 7
    %v1247 = vsub.s32 0, %v1246
    %v1248 = vrot.slane %v1190, %v1247
    %v1249 = vmul.f32 %v1244, %v1248
    %v1250 = vmul.f32 %v1232, %v1248
    %v1251 = vmul.f32 %v1234, %v1248
    %v1252 = vmul.f32 %v1236, %v1248
    %v1253 = vmul.f32 %v1238, %v1248
    %v1254 = vrot.slane %v1182, 7
    %v1255 = vrot.slane %v1183, 7
    %v1256 = vsel %vm189, %v1254, %v1255
    %v1257 = vrot.slane %v1184, 7
    %v1258 = vsel %vm189, %v1255, %v1257
    %v1259 = vrot.slane %v1185, 7
    %v1260 = vsel %vm189, %v1257, %v1259
    %v1261 = vrot.slane %v1186, 7
    %v1262 = vsel %vm189, %v1259, %v1261
    %v1268 = vsel %vm189, 0.0, %v1254
    %v1269 = vlaneseq
    %v1270 = vshrl.u32 %v1269, 7
    %v1271 = vsub.s32 1, %v1270
    %v1272 = vrot.slane %v1190, %v1271
    %v1273 = vmul.f32 %v1268, %v1272
    %v1274 = vmul.f32 %v1256, %v1272
    %v1275 = vmul.f32 %v1258, %v1272
    %v1276 = vmul.f32 %v1260, %v1272
    %v1277 = vmul.f32 %v1262, %v1272
    %v1278 = vadd.f32 %v1249, %v1273
    %v1279 = vadd.f32 %v1250, %v1274
    %v1280 = vadd.f32 %v1251, %v1275
    %v1281 = vadd.f32 %v1252, %v1276
    %v1282 = vadd.f32 %v1253, %v1277
    %v1283 = vlaneseq
    %v1284 = vshrl.u32 %v1283, 7
    %v1285 = vsub.s32 2, %v1284
    %v1286 = vrot.slane %v1190, %v1285
    %v1287 = vmul.f32 %v1182, %v1286
    %v1288 = vmul.f32 %v1183, %v1286
    %v1289 = vmul.f32 %v1184, %v1286
    %v1290 = vmul.f32 %v1185, %v1286
    %v1291 = vmul.f32 %v1186, %v1286
    %v1292 = vadd.f32 %v1278, %v1287
    %v1293 = vadd.f32 %v1279, %v1288
    %v1294 = vadd.f32 %v1280, %v1289
    %v1295 = vadd.f32 %v1281, %v1290
    %v1296 = vadd.f32 %v1282, %v1291
    %v1297 = vlaneseq
    %v1298 = vshrl.u32 %v1297, 7
    %v1299 = vsub.s32 0, %v1298
    %v1300 = vrot.slane %v1188, %v1299
    %v1301 = vadd.f32 %v1292, %v1300
    %v1302 = vadd.f32 %v1293, %v1300
    %v1303 = vadd.f32 %v1294, %v1300
    %v1304 = vadd.f32 %v1295, %v1300
    %v1305 = vadd.f32 %v1296, %v1300
    %v1306 = vmax.f32 %v1301, 0.0
    %v1307 = vmax.f32 %v1302, 0.0
    %v1308 = vmax.f32 %v1303, 0.0
    %v1309 = vmax.f32 %v1304, 0.0
    %v1310 = vmax.f32 %v1305, 0.0
    %v1311 = vpack.c.bf16 %v1307, %v1306
    %v1312 = vpack.c.bf16 %v1309, %v1308
    %v1313 = vpack.c.bf16 %v1310, %v1310
    %v1314 = vlaneseq
    %v1315 = vshrl.u32 %v1314, 7
    %v1316 = vsub.s32 1, %v1315
    %v1317 = vrot.slane %v1188, %v1316
    %v1334 = vunpack.c.l.b16 %v1192
    %v1335 = vunpack.c.l.b16 %v1193
    %v1336 = vunpack.c.l.b16 %v1194
    %v1337 = vunpack.c.l.b16 %v1195
    %v1338 = vunpack.c.l.b16 %v1196
    %v1339 = vunpack.c.l.b16 %v1197
    %v1340 = vunpack.c.l.b16 %v1198
    %v1341 = vunpack.c.l.b16 %v1199
    %v1342 = vunpack.c.l.b16 %v1200
    %v1343 = vunpack.c.l.b16 %v1201
    %v1344 = vunpack.c.l.b16 %v1202
    %v1345 = vunpack.c.l.b16 %v1203
    %v1346 = vunpack.c.l.b16 %v1204
    %v1347 = vunpack.c.l.b16 %v1205
    %v1348 = vunpack.c.l.b16 %v1206
    %v1349 = vunpack.c.l.b16 %v1207
    %v1350 = vpack.c.b16 %v1335, %v1334
    %v1351 = vpack.c.b16 %v1337, %v1336
    %v1352 = vpack.c.b16 %v1339, %v1338
    %v1353 = vpack.c.b16 %v1341, %v1340
    %v1354 = vpack.c.b16 %v1343, %v1342
    %v1355 = vpack.c.b16 %v1345, %v1344
    %v1356 = vpack.c.b16 %v1347, %v1346
    %v1357 = vpack.c.b16 %v1349, %v1348
    %1366 = vmatprep.subr.bf16.mxu0 0
    %1367 = vmatpush1.bf16.msra.mxu0 %v1357
    %1368 = vmatprep.subr.bf16.mxu0 0
    %1369 = vmatpush1.bf16.msra.mxu0 %v1356
    %1370 = vmatprep.subr.bf16.mxu0 0
    %1371 = vmatpush1.bf16.msra.mxu0 %v1355
    %1372 = vmatprep.subr.bf16.mxu0 0
    %1373 = vmatpush1.bf16.msra.mxu0 %v1354
    %1374 = vmatprep.subr.bf16.mxu0 0
    %1375 = vmatpush1.bf16.msra.mxu0 %v1353
    %1376 = vmatprep.subr.bf16.mxu0 0
    %1377 = vmatpush1.bf16.msra.mxu0 %v1352
    %1378 = vmatprep.subr.bf16.mxu0 0
    %1379 = vmatpush1.bf16.msra.mxu0 %v1351
    %1380 = vmatprep.subr.bf16.mxu0 0
    %1381 = vmatpush1.bf16.msra.mxu0 %v1350
    %1382 = vmatprep.subr.bf16.mxu0 0
    %1383 = vmatpush2.bf16.msra.mxu0 0
    %1384 = vmatprep.subr.bf16.mxu0 0
    %1385 = vmatpush2.bf16.msra.mxu0 0
    %1386 = vmatprep.subr.bf16.mxu0 0
    %1387 = vmatpush2.bf16.msra.mxu0 0
    %1388 = vmatprep.subr.bf16.mxu0 0
    %1389 = vmatpush2.bf16.msra.mxu0 0
    %1390 = vmatprep.subr.bf16.mxu0 0
    %1391 = vmatpush2.bf16.msra.mxu0 0
    %1392 = vmatprep.subr.bf16.mxu0 0
    %1393 = vmatpush2.bf16.msra.mxu0 0
    %1394 = vmatprep.subr.bf16.mxu0 0
    %1395 = vmatpush2.bf16.msra.mxu0 0
    %1396 = vmatprep.subr.bf16.mxu0 0
    %1397 = vmatpush2.bf16.msra.mxu0 0
    %1398 = vmatprep.mubr.bf16.mxu0 0
    %1399 = vmatmul.mubr.bf16.gmra.mxu0 %v1311
    %v1400 = vpop.f32.mrf.mxu0
    %v1401 = vadd.f32 %v1317, %v1400
    %v1402 = vpop.f32.mrf.mxu0
    %v1403 = vpop.f32.mrf.mxu0
    %v1404 = vadd.f32 %v1317, %v1403
    %v1405 = vpop.f32.mrf.mxu0
    %1406 = vmatprep.mubr.bf16.mxu0 0
    %1407 = vmatmul.mubr.bf16.gmra.mxu0 %v1312
    %v1408 = vpop.f32.mrf.mxu0
    %v1409 = vadd.f32 %v1317, %v1408
    %v1410 = vpop.f32.mrf.mxu0
    %v1411 = vpop.f32.mrf.mxu0
    %v1412 = vadd.f32 %v1317, %v1411
    %v1413 = vpop.f32.mrf.mxu0
    %1414 = vmatprep.mubr.bf16.mxu0 0
    %1415 = vmatmul.mubr.bf16.gmra.mxu0 %v1313
    %v1416 = vpop.f32.mrf.mxu0
    %v1417 = vadd.f32 %v1317, %v1416
    %v1418 = vpop.f32.mrf.mxu0
    %v1419 = vpop.f32.mrf.mxu0
    %v1420 = vpop.f32.mrf.mxu0
    %1421 = vdwg.mxu0
    %v1422 = vmax.f32 %v1401, 0.0
    %v1423 = vmax.f32 %v1404, 0.0
    %v1424 = vmax.f32 %v1409, 0.0
    %v1425 = vmax.f32 %v1412, 0.0
    %v1426 = vmax.f32 %v1417, 0.0
    %v1427 = vpack.c.bf16 %v1423, %v1422
    %v1428 = vpack.c.bf16 %v1425, %v1424
    %v1429 = vpack.c.bf16 %v1426, %v1426
    %v1430 = vlaneseq
    %v1431 = vshrl.u32 %v1430, 7
    %v1432 = vsub.s32 2, %v1431
    %v1433 = vrot.slane %v1188, %v1432
    %v1450 = vunpack.c.l.b16 %v1209
    %v1451 = vunpack.c.l.b16 %v1210
    %v1452 = vunpack.c.l.b16 %v1211
    %v1453 = vunpack.c.l.b16 %v1212
    %v1454 = vunpack.c.l.b16 %v1213
    %v1455 = vunpack.c.l.b16 %v1214
    %v1456 = vunpack.c.l.b16 %v1215
    %v1457 = vunpack.c.l.b16 %v1216
    %v1458 = vunpack.c.l.b16 %v1217
    %v1459 = vunpack.c.l.b16 %v1218
    %v1460 = vunpack.c.l.b16 %v1219
    %v1461 = vunpack.c.l.b16 %v1220
    %v1462 = vunpack.c.l.b16 %v1221
    %v1463 = vunpack.c.l.b16 %v1222
    %v1464 = vunpack.c.l.b16 %v1223
    %v1465 = vunpack.c.l.b16 %v1224
    %v1466 = vpack.c.b16 %v1451, %v1450
    %v1467 = vpack.c.b16 %v1453, %v1452
    %v1468 = vpack.c.b16 %v1455, %v1454
    %v1469 = vpack.c.b16 %v1457, %v1456
    %v1470 = vpack.c.b16 %v1459, %v1458
    %v1471 = vpack.c.b16 %v1461, %v1460
    %v1472 = vpack.c.b16 %v1463, %v1462
    %v1473 = vpack.c.b16 %v1465, %v1464
    %1482 = vmatprep.subr.bf16.mxu0 0
    %1483 = vmatpush1.bf16.msra.mxu0 %v1473
    %1484 = vmatprep.subr.bf16.mxu0 0
    %1485 = vmatpush1.bf16.msra.mxu0 %v1472
    %1486 = vmatprep.subr.bf16.mxu0 0
    %1487 = vmatpush1.bf16.msra.mxu0 %v1471
    %1488 = vmatprep.subr.bf16.mxu0 0
    %1489 = vmatpush1.bf16.msra.mxu0 %v1470
    %1490 = vmatprep.subr.bf16.mxu0 0
    %1491 = vmatpush1.bf16.msra.mxu0 %v1469
    %1492 = vmatprep.subr.bf16.mxu0 0
    %1493 = vmatpush1.bf16.msra.mxu0 %v1468
    %1494 = vmatprep.subr.bf16.mxu0 0
    %1495 = vmatpush1.bf16.msra.mxu0 %v1467
    %1496 = vmatprep.subr.bf16.mxu0 0
    %1497 = vmatpush1.bf16.msra.mxu0 %v1466
    %1498 = vmatprep.subr.bf16.mxu0 0
    %1499 = vmatpush2.bf16.msra.mxu0 0
    %1500 = vmatprep.subr.bf16.mxu0 0
    %1501 = vmatpush2.bf16.msra.mxu0 0
    %1502 = vmatprep.subr.bf16.mxu0 0
    %1503 = vmatpush2.bf16.msra.mxu0 0
    %1504 = vmatprep.subr.bf16.mxu0 0
    %1505 = vmatpush2.bf16.msra.mxu0 0
    %1506 = vmatprep.subr.bf16.mxu0 0
    %1507 = vmatpush2.bf16.msra.mxu0 0
    %1508 = vmatprep.subr.bf16.mxu0 0
    %1509 = vmatpush2.bf16.msra.mxu0 0
    %1510 = vmatprep.subr.bf16.mxu0 0
    %1511 = vmatpush2.bf16.msra.mxu0 0
    %1512 = vmatprep.subr.bf16.mxu0 0
    %1513 = vmatpush2.bf16.msra.mxu0 0
    %1514 = vmatprep.mubr.bf16.mxu0 0
    %1515 = vmatmul.mubr.bf16.gmra.mxu0 %v1427
    %v1516 = vpop.f32.mrf.mxu0
    %v1517 = vadd.f32 %v1433, %v1516
    %v1518 = vpop.f32.mrf.mxu0
    %v1519 = vpop.f32.mrf.mxu0
    %v1520 = vadd.f32 %v1433, %v1519
    %v1521 = vpop.f32.mrf.mxu0
    %1522 = vmatprep.mubr.bf16.mxu0 0
    %1523 = vmatmul.mubr.bf16.gmra.mxu0 %v1428
    %v1524 = vpop.f32.mrf.mxu0
    %v1525 = vadd.f32 %v1433, %v1524
    %v1526 = vpop.f32.mrf.mxu0
    %v1527 = vpop.f32.mrf.mxu0
    %v1528 = vadd.f32 %v1433, %v1527
    %v1529 = vpop.f32.mrf.mxu0
    %1530 = vmatprep.mubr.bf16.mxu0 0
    %1531 = vmatmul.mubr.bf16.gmra.mxu0 %v1429
    %v1532 = vpop.f32.mrf.mxu0
    %v1533 = vadd.f32 %v1433, %v1532
    %v1534 = vpop.f32.mrf.mxu0
    %v1535 = vpop.f32.mrf.mxu0
    %v1536 = vpop.f32.mrf.mxu0
    %1537 = vdwg.mxu0
    %v1538 = vadd.f32 %v1517, %v1182
    %v1539 = vadd.f32 %v1520, %v1183
    %v1540 = vadd.f32 %v1525, %v1184
    %v1541 = vadd.f32 %v1528, %v1185
    %v1542 = vadd.f32 %v1533, %v1186
    %v1543 = vmax.f32 %v1538, 0.0
    %v1544 = vmax.f32 %v1539, 0.0
    %v1545 = vmax.f32 %v1540, 0.0
    %v1546 = vmax.f32 %v1541, 0.0
    %v1547 = vmax.f32 %v1542, 0.0
    %s1548 = scalar_lea.vmem [#allocation11], 12
    %v1549 = vld [vmem:[%s1548] sm:$0x7]
    %s1550 = scalar_lea.vmem [#allocation10], 12
    %v1551 = vld [vmem:[%s1550] sm:$0x7]
    %s1552 = scalar_lea.vmem [#allocation13], 384
    %v1553 = vld [vmem:[%s1552] sm:$0xf]
    %v1554 = vld [vmem:[%s1552 + $0x4] sm:$0xf]
    %v1555 = vld [vmem:[%s1552 + $0x8] sm:$0xf]
    %v1556 = vld [vmem:[%s1552 + $0xc] sm:$0xf]
    %v1557 = vld [vmem:[%s1552 + $0x10] sm:$0xf]
    %v1558 = vld [vmem:[%s1552 + $0x14] sm:$0xf]
    %v1559 = vld [vmem:[%s1552 + $0x18] sm:$0xf]
    %v1560 = vld [vmem:[%s1552 + $0x1c] sm:$0xf]
    %v1561 = vld [vmem:[%s1552 + $0x20] sm:$0xf]
    %v1562 = vld [vmem:[%s1552 + $0x24] sm:$0xf]
    %v1563 = vld [vmem:[%s1552 + $0x28] sm:$0xf]
    %v1564 = vld [vmem:[%s1552 + $0x2c] sm:$0xf]
    %v1565 = vld [vmem:[%s1552 + $0x30] sm:$0xf]
    %v1566 = vld [vmem:[%s1552 + $0x34] sm:$0xf]
    %v1567 = vld [vmem:[%s1552 + $0x38] sm:$0xf]
    %v1568 = vld [vmem:[%s1552 + $0x3c] sm:$0xf]
    %s1569 = scalar_lea.vmem [#allocation13], 448
    %v1570 = vld [vmem:[%s1569] sm:$0xf]
    %v1571 = vld [vmem:[%s1569 + $0x4] sm:$0xf]
    %v1572 = vld [vmem:[%s1569 + $0x8] sm:$0xf]
    %v1573 = vld [vmem:[%s1569 + $0xc] sm:$0xf]
    %v1574 = vld [vmem:[%s1569 + $0x10] sm:$0xf]
    %v1575 = vld [vmem:[%s1569 + $0x14] sm:$0xf]
    %v1576 = vld [vmem:[%s1569 + $0x18] sm:$0xf]
    %v1577 = vld [vmem:[%s1569 + $0x1c] sm:$0xf]
    %v1578 = vld [vmem:[%s1569 + $0x20] sm:$0xf]
    %v1579 = vld [vmem:[%s1569 + $0x24] sm:$0xf]
    %v1580 = vld [vmem:[%s1569 + $0x28] sm:$0xf]
    %v1581 = vld [vmem:[%s1569 + $0x2c] sm:$0xf]
    %v1582 = vld [vmem:[%s1569 + $0x30] sm:$0xf]
    %v1583 = vld [vmem:[%s1569 + $0x34] sm:$0xf]
    %v1584 = vld [vmem:[%s1569 + $0x38] sm:$0xf]
    %v1585 = vld [vmem:[%s1569 + $0x3c] sm:$0xf]
    %v1591 = vrot.slane %v1543, 4
    %v1592 = vrot.slane %v1544, 4
    %v1593 = vsel %vm868, %v1591, %v1592
    %v1594 = vrot.slane %v1545, 4
    %v1595 = vsel %vm868, %v1592, %v1594
    %v1596 = vrot.slane %v1546, 4
    %v1597 = vsel %vm868, %v1594, %v1596
    %v1598 = vrot.slane %v1547, 4
    %v1599 = vsel %vm868, %v1596, %v1598
    %v1605 = vsel %vm868, 0.0, %v1591
    %v1606 = vlaneseq
    %v1607 = vshrl.u32 %v1606, 7
    %v1608 = vsub.s32 0, %v1607
    %v1609 = vrot.slane %v1551, %v1608
    %v1610 = vmul.f32 %v1605, %v1609
    %v1611 = vmul.f32 %v1593, %v1609
    %v1612 = vmul.f32 %v1595, %v1609
    %v1613 = vmul.f32 %v1597, %v1609
    %v1614 = vmul.f32 %v1599, %v1609
    %v1615 = vrot.slane %v1543, 6
    %v1616 = vrot.slane %v1544, 6
    %v1617 = vsel %vm164, %v1615, %v1616
    %v1618 = vrot.slane %v1545, 6
    %v1619 = vsel %vm164, %v1616, %v1618
    %v1620 = vrot.slane %v1546, 6
    %v1621 = vsel %vm164, %v1618, %v1620
    %v1622 = vrot.slane %v1547, 6
    %v1623 = vsel %vm164, %v1620, %v1622
    %v1629 = vsel %vm164, 0.0, %v1615
    %v1630 = vlaneseq
    %v1631 = vshrl.u32 %v1630, 7
    %v1632 = vsub.s32 1, %v1631
    %v1633 = vrot.slane %v1551, %v1632
    %v1634 = vmul.f32 %v1629, %v1633
    %v1635 = vmul.f32 %v1617, %v1633
    %v1636 = vmul.f32 %v1619, %v1633
    %v1637 = vmul.f32 %v1621, %v1633
    %v1638 = vmul.f32 %v1623, %v1633
    %v1639 = vadd.f32 %v1610, %v1634
    %v1640 = vadd.f32 %v1611, %v1635
    %v1641 = vadd.f32 %v1612, %v1636
    %v1642 = vadd.f32 %v1613, %v1637
    %v1643 = vadd.f32 %v1614, %v1638
    %v1644 = vlaneseq
    %v1645 = vshrl.u32 %v1644, 7
    %v1646 = vsub.s32 2, %v1645
    %v1647 = vrot.slane %v1551, %v1646
    %v1648 = vmul.f32 %v1543, %v1647
    %v1649 = vmul.f32 %v1544, %v1647
    %v1650 = vmul.f32 %v1545, %v1647
    %v1651 = vmul.f32 %v1546, %v1647
    %v1652 = vmul.f32 %v1547, %v1647
    %v1653 = vadd.f32 %v1639, %v1648
    %v1654 = vadd.f32 %v1640, %v1649
    %v1655 = vadd.f32 %v1641, %v1650
    %v1656 = vadd.f32 %v1642, %v1651
    %v1657 = vadd.f32 %v1643, %v1652
    %v1658 = vlaneseq
    %v1659 = vshrl.u32 %v1658, 7
    %v1660 = vsub.s32 0, %v1659
    %v1661 = vrot.slane %v1549, %v1660
    %v1662 = vadd.f32 %v1653, %v1661
    %v1663 = vadd.f32 %v1654, %v1661
    %v1664 = vadd.f32 %v1655, %v1661
    %v1665 = vadd.f32 %v1656, %v1661
    %v1666 = vadd.f32 %v1657, %v1661
    %v1667 = vmax.f32 %v1662, 0.0
    %v1668 = vmax.f32 %v1663, 0.0
    %v1669 = vmax.f32 %v1664, 0.0
    %v1670 = vmax.f32 %v1665, 0.0
    %v1671 = vmax.f32 %v1666, 0.0
    %v1672 = vpack.c.bf16 %v1668, %v1667
    %v1673 = vpack.c.bf16 %v1670, %v1669
    %v1674 = vpack.c.bf16 %v1671, %v1671
    %v1675 = vlaneseq
    %v1676 = vshrl.u32 %v1675, 7
    %v1677 = vsub.s32 1, %v1676
    %v1678 = vrot.slane %v1549, %v1677
    %v1695 = vunpack.c.l.b16 %v1553
    %v1696 = vunpack.c.l.b16 %v1554
    %v1697 = vunpack.c.l.b16 %v1555
    %v1698 = vunpack.c.l.b16 %v1556
    %v1699 = vunpack.c.l.b16 %v1557
    %v1700 = vunpack.c.l.b16 %v1558
    %v1701 = vunpack.c.l.b16 %v1559
    %v1702 = vunpack.c.l.b16 %v1560
    %v1703 = vunpack.c.l.b16 %v1561
    %v1704 = vunpack.c.l.b16 %v1562
    %v1705 = vunpack.c.l.b16 %v1563
    %v1706 = vunpack.c.l.b16 %v1564
    %v1707 = vunpack.c.l.b16 %v1565
    %v1708 = vunpack.c.l.b16 %v1566
    %v1709 = vunpack.c.l.b16 %v1567
    %v1710 = vunpack.c.l.b16 %v1568
    %v1711 = vpack.c.b16 %v1696, %v1695
    %v1712 = vpack.c.b16 %v1698, %v1697
    %v1713 = vpack.c.b16 %v1700, %v1699
    %v1714 = vpack.c.b16 %v1702, %v1701
    %v1715 = vpack.c.b16 %v1704, %v1703
    %v1716 = vpack.c.b16 %v1706, %v1705
    %v1717 = vpack.c.b16 %v1708, %v1707
    %v1718 = vpack.c.b16 %v1710, %v1709
    %1727 = vmatprep.subr.bf16.mxu0 0
    %1728 = vmatpush1.bf16.msra.mxu0 %v1718
    %1729 = vmatprep.subr.bf16.mxu0 0
    %1730 = vmatpush1.bf16.msra.mxu0 %v1717
    %1731 = vmatprep.subr.bf16.mxu0 0
    %1732 = vmatpush1.bf16.msra.mxu0 %v1716
    %1733 = vmatprep.subr.bf16.mxu0 0
    %1734 = vmatpush1.bf16.msra.mxu0 %v1715
    %1735 = vmatprep.subr.bf16.mxu0 0
    %1736 = vmatpush1.bf16.msra.mxu0 %v1714
    %1737 = vmatprep.subr.bf16.mxu0 0
    %1738 = vmatpush1.bf16.msra.mxu0 %v1713
    %1739 = vmatprep.subr.bf16.mxu0 0
    %1740 = vmatpush1.bf16.msra.mxu0 %v1712
    %1741 = vmatprep.subr.bf16.mxu0 0
    %1742 = vmatpush1.bf16.msra.mxu0 %v1711
    %1743 = vmatprep.subr.bf16.mxu0 0
    %1744 = vmatpush2.bf16.msra.mxu0 0
    %1745 = vmatprep.subr.bf16.mxu0 0
    %1746 = vmatpush2.bf16.msra.mxu0 0
    %1747 = vmatprep.subr.bf16.mxu0 0
    %1748 = vmatpush2.bf16.msra.mxu0 0
    %1749 = vmatprep.subr.bf16.mxu0 0
    %1750 = vmatpush2.bf16.msra.mxu0 0
    %1751 = vmatprep.subr.bf16.mxu0 0
    %1752 = vmatpush2.bf16.msra.mxu0 0
    %1753 = vmatprep.subr.bf16.mxu0 0
    %1754 = vmatpush2.bf16.msra.mxu0 0
    %1755 = vmatprep.subr.bf16.mxu0 0
    %1756 = vmatpush2.bf16.msra.mxu0 0
    %1757 = vmatprep.subr.bf16.mxu0 0
    %1758 = vmatpush2.bf16.msra.mxu0 0
    %1759 = vmatprep.mubr.bf16.mxu0 0
    %1760 = vmatmul.mubr.bf16.gmra.mxu0 %v1672
    %v1761 = vpop.f32.mrf.mxu0
    %v1762 = vadd.f32 %v1678, %v1761
    %v1763 = vpop.f32.mrf.mxu0
    %v1764 = vpop.f32.mrf.mxu0
    %v1765 = vadd.f32 %v1678, %v1764
    %v1766 = vpop.f32.mrf.mxu0
    %1767 = vmatprep.mubr.bf16.mxu0 0
    %1768 = vmatmul.mubr.bf16.gmra.mxu0 %v1673
    %v1769 = vpop.f32.mrf.mxu0
    %v1770 = vadd.f32 %v1678, %v1769
    %v1771 = vpop.f32.mrf.mxu0
    %v1772 = vpop.f32.mrf.mxu0
    %v1773 = vadd.f32 %v1678, %v1772
    %v1774 = vpop.f32.mrf.mxu0
    %1775 = vmatprep.mubr.bf16.mxu0 0
    %1776 = vmatmul.mubr.bf16.gmra.mxu0 %v1674
    %v1777 = vpop.f32.mrf.mxu0
    %v1778 = vadd.f32 %v1678, %v1777
    %v1779 = vpop.f32.mrf.mxu0
    %v1780 = vpop.f32.mrf.mxu0
    %v1781 = vpop.f32.mrf.mxu0
    %1782 = vdwg.mxu0
    %v1783 = vmax.f32 %v1762, 0.0
    %v1784 = vmax.f32 %v1765, 0.0
    %v1785 = vmax.f32 %v1770, 0.0
    %v1786 = vmax.f32 %v1773, 0.0
    %v1787 = vmax.f32 %v1778, 0.0
    %v1788 = vpack.c.bf16 %v1784, %v1783
    %v1789 = vpack.c.bf16 %v1786, %v1785
    %v1790 = vpack.c.bf16 %v1787, %v1787
    %v1791 = vlaneseq
    %v1792 = vshrl.u32 %v1791, 7
    %v1793 = vsub.s32 2, %v1792
    %v1794 = vrot.slane %v1549, %v1793
    %v1811 = vunpack.c.l.b16 %v1570
    %v1812 = vunpack.c.l.b16 %v1571
    %v1813 = vunpack.c.l.b16 %v1572
    %v1814 = vunpack.c.l.b16 %v1573
    %v1815 = vunpack.c.l.b16 %v1574
    %v1816 = vunpack.c.l.b16 %v1575
    %v1817 = vunpack.c.l.b16 %v1576
    %v1818 = vunpack.c.l.b16 %v1577
    %v1819 = vunpack.c.l.b16 %v1578
    %v1820 = vunpack.c.l.b16 %v1579
    %v1821 = vunpack.c.l.b16 %v1580
    %v1822 = vunpack.c.l.b16 %v1581
    %v1823 = vunpack.c.l.b16 %v1582
    %v1824 = vunpack.c.l.b16 %v1583
    %v1825 = vunpack.c.l.b16 %v1584
    %v1826 = vunpack.c.l.b16 %v1585
    %v1827 = vpack.c.b16 %v1812, %v1811
    %v1828 = vpack.c.b16 %v1814, %v1813
    %v1829 = vpack.c.b16 %v1816, %v1815
    %v1830 = vpack.c.b16 %v1818, %v1817
    %v1831 = vpack.c.b16 %v1820, %v1819
    %v1832 = vpack.c.b16 %v1822, %v1821
    %v1833 = vpack.c.b16 %v1824, %v1823
    %v1834 = vpack.c.b16 %v1826, %v1825
    %1843 = vmatprep.subr.bf16.mxu0 0
    %1844 = vmatpush1.bf16.msra.mxu0 %v1834
    %1845 = vmatprep.subr.bf16.mxu0 0
    %1846 = vmatpush1.bf16.msra.mxu0 %v1833
    %1847 = vmatprep.subr.bf16.mxu0 0
    %1848 = vmatpush1.bf16.msra.mxu0 %v1832
    %1849 = vmatprep.subr.bf16.mxu0 0
    %1850 = vmatpush1.bf16.msra.mxu0 %v1831
    %1851 = vmatprep.subr.bf16.mxu0 0
    %1852 = vmatpush1.bf16.msra.mxu0 %v1830
    %1853 = vmatprep.subr.bf16.mxu0 0
    %1854 = vmatpush1.bf16.msra.mxu0 %v1829
    %1855 = vmatprep.subr.bf16.mxu0 0
    %1856 = vmatpush1.bf16.msra.mxu0 %v1828
    %1857 = vmatprep.subr.bf16.mxu0 0
    %1858 = vmatpush1.bf16.msra.mxu0 %v1827
    %1859 = vmatprep.subr.bf16.mxu0 0
    %1860 = vmatpush2.bf16.msra.mxu0 0
    %1861 = vmatprep.subr.bf16.mxu0 0
    %1862 = vmatpush2.bf16.msra.mxu0 0
    %1863 = vmatprep.subr.bf16.mxu0 0
    %1864 = vmatpush2.bf16.msra.mxu0 0
    %1865 = vmatprep.subr.bf16.mxu0 0
    %1866 = vmatpush2.bf16.msra.mxu0 0
    %1867 = vmatprep.subr.bf16.mxu0 0
    %1868 = vmatpush2.bf16.msra.mxu0 0
    %1869 = vmatprep.subr.bf16.mxu0 0
    %1870 = vmatpush2.bf16.msra.mxu0 0
    %1871 = vmatprep.subr.bf16.mxu0 0
    %1872 = vmatpush2.bf16.msra.mxu0 0
    %1873 = vmatprep.subr.bf16.mxu0 0
    %1874 = vmatpush2.bf16.msra.mxu0 0
    %1875 = vmatprep.mubr.bf16.mxu0 0
    %1876 = vmatmul.mubr.bf16.gmra.mxu0 %v1788
    %v1877 = vpop.f32.mrf.mxu0
    %v1878 = vadd.f32 %v1794, %v1877
    %v1879 = vpop.f32.mrf.mxu0
    %v1880 = vpop.f32.mrf.mxu0
    %v1881 = vadd.f32 %v1794, %v1880
    %v1882 = vpop.f32.mrf.mxu0
    %1883 = vmatprep.mubr.bf16.mxu0 0
    %1884 = vmatmul.mubr.bf16.gmra.mxu0 %v1789
    %v1885 = vpop.f32.mrf.mxu0
    %v1886 = vadd.f32 %v1794, %v1885
    %v1887 = vpop.f32.mrf.mxu0
    %v1888 = vpop.f32.mrf.mxu0
    %v1889 = vadd.f32 %v1794, %v1888
    %v1890 = vpop.f32.mrf.mxu0
    %1891 = vmatprep.mubr.bf16.mxu0 0
    %1892 = vmatmul.mubr.bf16.gmra.mxu0 %v1790
    %v1893 = vpop.f32.mrf.mxu0
    %v1894 = vadd.f32 %v1794, %v1893
    %v1895 = vpop.f32.mrf.mxu0
    %v1896 = vpop.f32.mrf.mxu0
    %v1897 = vpop.f32.mrf.mxu0
    %1898 = vdwg.mxu0
    %v1899 = vadd.f32 %v1878, %v1543
    %v1900 = vadd.f32 %v1881, %v1544
    %v1901 = vadd.f32 %v1886, %v1545
    %v1902 = vadd.f32 %v1889, %v1546
    %v1903 = vadd.f32 %v1894, %v1547
    %v1904 = vmax.f32 %v1899, 0.0
    %v1905 = vmax.f32 %v1900, 0.0
    %v1906 = vmax.f32 %v1901, 0.0
    %v1907 = vmax.f32 %v1902, 0.0
    %v1908 = vmax.f32 %v1903, 0.0
    %v1909 = vadd.f32 %v1182, %v1904
    %v1910 = vadd.f32 %v1183, %v1905
    %v1911 = vadd.f32 %v1184, %v1906
    %v1912 = vadd.f32 %v1185, %v1907
    %v1913 = vadd.f32 %v1186, %v1908
    %s1914 = scalar_lea.vmem [#allocation11], 16
    %v1915 = vld [vmem:[%s1914] sm:$0x7]
    %s1916 = scalar_lea.vmem [#allocation10], 16
    %v1917 = vld [vmem:[%s1916] sm:$0x7]
    %s1918 = scalar_lea.vmem [#allocation13], 512
    %v1919 = vld [vmem:[%s1918] sm:$0xf]
    %v1920 = vld [vmem:[%s1918 + $0x4] sm:$0xf]
    %v1921 = vld [vmem:[%s1918 + $0x8] sm:$0xf]
    %v1922 = vld [vmem:[%s1918 + $0xc] sm:$0xf]
    %v1923 = vld [vmem:[%s1918 + $0x10] sm:$0xf]
    %v1924 = vld [vmem:[%s1918 + $0x14] sm:$0xf]
    %v1925 = vld [vmem:[%s1918 + $0x18] sm:$0xf]
    %v1926 = vld [vmem:[%s1918 + $0x1c] sm:$0xf]
    %v1927 = vld [vmem:[%s1918 + $0x20] sm:$0xf]
    %v1928 = vld [vmem:[%s1918 + $0x24] sm:$0xf]
    %v1929 = vld [vmem:[%s1918 + $0x28] sm:$0xf]
    %v1930 = vld [vmem:[%s1918 + $0x2c] sm:$0xf]
    %v1931 = vld [vmem:[%s1918 + $0x30] sm:$0xf]
    %v1932 = vld [vmem:[%s1918 + $0x34] sm:$0xf]
    %v1933 = vld [vmem:[%s1918 + $0x38] sm:$0xf]
    %v1934 = vld [vmem:[%s1918 + $0x3c] sm:$0xf]
    %s1935 = scalar_lea.vmem [#allocation13], 576
    %v1936 = vld [vmem:[%s1935] sm:$0xf]
    %v1937 = vld [vmem:[%s1935 + $0x4] sm:$0xf]
    %v1938 = vld [vmem:[%s1935 + $0x8] sm:$0xf]
    %v1939 = vld [vmem:[%s1935 + $0xc] sm:$0xf]
    %v1940 = vld [vmem:[%s1935 + $0x10] sm:$0xf]
    %v1941 = vld [vmem:[%s1935 + $0x14] sm:$0xf]
    %v1942 = vld [vmem:[%s1935 + $0x18] sm:$0xf]
    %v1943 = vld [vmem:[%s1935 + $0x1c] sm:$0xf]
    %v1944 = vld [vmem:[%s1935 + $0x20] sm:$0xf]
    %v1945 = vld [vmem:[%s1935 + $0x24] sm:$0xf]
    %v1946 = vld [vmem:[%s1935 + $0x28] sm:$0xf]
    %v1947 = vld [vmem:[%s1935 + $0x2c] sm:$0xf]
    %v1948 = vld [vmem:[%s1935 + $0x30] sm:$0xf]
    %v1949 = vld [vmem:[%s1935 + $0x34] sm:$0xf]
    %v1950 = vld [vmem:[%s1935 + $0x38] sm:$0xf]
    %v1951 = vld [vmem:[%s1935 + $0x3c] sm:$0xf]
    %v1957 = vrot.slane %v1904, 6
    %v1958 = vrot.slane %v1905, 6
    %v1959 = vsel %vm164, %v1957, %v1958
    %v1960 = vrot.slane %v1906, 6
    %v1961 = vsel %vm164, %v1958, %v1960
    %v1962 = vrot.slane %v1907, 6
    %v1963 = vsel %vm164, %v1960, %v1962
    %v1964 = vrot.slane %v1908, 6
    %v1965 = vsel %vm164, %v1962, %v1964
    %v1971 = vsel %vm164, 0.0, %v1957
    %v1972 = vlaneseq
    %v1973 = vshrl.u32 %v1972, 7
    %v1974 = vsub.s32 0, %v1973
    %v1975 = vrot.slane %v1917, %v1974
    %v1976 = vmul.f32 %v1971, %v1975
    %v1977 = vmul.f32 %v1959, %v1975
    %v1978 = vmul.f32 %v1961, %v1975
    %v1979 = vmul.f32 %v1963, %v1975
    %v1980 = vmul.f32 %v1965, %v1975
    %v1981 = vrot.slane %v1904, 7
    %v1982 = vrot.slane %v1905, 7
    %v1983 = vsel %vm189, %v1981, %v1982
    %v1984 = vrot.slane %v1906, 7
    %v1985 = vsel %vm189, %v1982, %v1984
    %v1986 = vrot.slane %v1907, 7
    %v1987 = vsel %vm189, %v1984, %v1986
    %v1988 = vrot.slane %v1908, 7
    %v1989 = vsel %vm189, %v1986, %v1988
    %v1995 = vsel %vm189, 0.0, %v1981
    %v1996 = vlaneseq
    %v1997 = vshrl.u32 %v1996, 7
    %v1998 = vsub.s32 1, %v1997
    %v1999 = vrot.slane %v1917, %v1998
    %v2000 = vmul.f32 %v1995, %v1999
    %v2001 = vmul.f32 %v1983, %v1999
    %v2002 = vmul.f32 %v1985, %v1999
    %v2003 = vmul.f32 %v1987, %v1999
    %v2004 = vmul.f32 %v1989, %v1999
    %v2005 = vadd.f32 %v1976, %v2000
    %v2006 = vadd.f32 %v1977, %v2001
    %v2007 = vadd.f32 %v1978, %v2002
    %v2008 = vadd.f32 %v1979, %v2003
    %v2009 = vadd.f32 %v1980, %v2004
    %v2010 = vlaneseq
    %v2011 = vshrl.u32 %v2010, 7
    %v2012 = vsub.s32 2, %v2011
    %v2013 = vrot.slane %v1917, %v2012
    %v2014 = vmul.f32 %v1904, %v2013
    %v2015 = vmul.f32 %v1905, %v2013
    %v2016 = vmul.f32 %v1906, %v2013
    %v2017 = vmul.f32 %v1907, %v2013
    %v2018 = vmul.f32 %v1908, %v2013
    %v2019 = vadd.f32 %v2005, %v2014
    %v2020 = vadd.f32 %v2006, %v2015
    %v2021 = vadd.f32 %v2007, %v2016
    %v2022 = vadd.f32 %v2008, %v2017
    %v2023 = vadd.f32 %v2009, %v2018
    %v2024 = vlaneseq
    %v2025 = vshrl.u32 %v2024, 7
    %v2026 = vsub.s32 0, %v2025
    %v2027 = vrot.slane %v1915, %v2026
    %v2028 = vadd.f32 %v2019, %v2027
    %v2029 = vadd.f32 %v2020, %v2027
    %v2030 = vadd.f32 %v2021, %v2027
    %v2031 = vadd.f32 %v2022, %v2027
    %v2032 = vadd.f32 %v2023, %v2027
    %v2033 = vmax.f32 %v2028, 0.0
    %v2034 = vmax.f32 %v2029, 0.0
    %v2035 = vmax.f32 %v2030, 0.0
    %v2036 = vmax.f32 %v2031, 0.0
    %v2037 = vmax.f32 %v2032, 0.0
    %v2038 = vpack.c.bf16 %v2034, %v2033
    %v2039 = vpack.c.bf16 %v2036, %v2035
    %v2040 = vpack.c.bf16 %v2037, %v2037
    %v2041 = vlaneseq
    %v2042 = vshrl.u32 %v2041, 7
    %v2043 = vsub.s32 1, %v2042
    %v2044 = vrot.slane %v1915, %v2043
    %v2061 = vunpack.c.l.b16 %v1919
    %v2062 = vunpack.c.l.b16 %v1920
    %v2063 = vunpack.c.l.b16 %v1921
    %v2064 = vunpack.c.l.b16 %v1922
    %v2065 = vunpack.c.l.b16 %v1923
    %v2066 = vunpack.c.l.b16 %v1924
    %v2067 = vunpack.c.l.b16 %v1925
    %v2068 = vunpack.c.l.b16 %v1926
    %v2069 = vunpack.c.l.b16 %v1927
    %v2070 = vunpack.c.l.b16 %v1928
    %v2071 = vunpack.c.l.b16 %v1929
    %v2072 = vunpack.c.l.b16 %v1930
    %v2073 = vunpack.c.l.b16 %v1931
    %v2074 = vunpack.c.l.b16 %v1932
    %v2075 = vunpack.c.l.b16 %v1933
    %v2076 = vunpack.c.l.b16 %v1934
    %v2077 = vpack.c.b16 %v2062, %v2061
    %v2078 = vpack.c.b16 %v2064, %v2063
    %v2079 = vpack.c.b16 %v2066, %v2065
    %v2080 = vpack.c.b16 %v2068, %v2067
    %v2081 = vpack.c.b16 %v2070, %v2069
    %v2082 = vpack.c.b16 %v2072, %v2071
    %v2083 = vpack.c.b16 %v2074, %v2073
    %v2084 = vpack.c.b16 %v2076, %v2075
    %2093 = vmatprep.subr.bf16.mxu0 0
    %2094 = vmatpush1.bf16.msra.mxu0 %v2084
    %2095 = vmatprep.subr.bf16.mxu0 0
    %2096 = vmatpush1.bf16.msra.mxu0 %v2083
    %2097 = vmatprep.subr.bf16.mxu0 0
    %2098 = vmatpush1.bf16.msra.mxu0 %v2082
    %2099 = vmatprep.subr.bf16.mxu0 0
    %2100 = vmatpush1.bf16.msra.mxu0 %v2081
    %2101 = vmatprep.subr.bf16.mxu0 0
    %2102 = vmatpush1.bf16.msra.mxu0 %v2080
    %2103 = vmatprep.subr.bf16.mxu0 0
    %2104 = vmatpush1.bf16.msra.mxu0 %v2079
    %2105 = vmatprep.subr.bf16.mxu0 0
    %2106 = vmatpush1.bf16.msra.mxu0 %v2078
    %2107 = vmatprep.subr.bf16.mxu0 0
    %2108 = vmatpush1.bf16.msra.mxu0 %v2077
    %2109 = vmatprep.subr.bf16.mxu0 0
    %2110 = vmatpush2.bf16.msra.mxu0 0
    %2111 = vmatprep.subr.bf16.mxu0 0
    %2112 = vmatpush2.bf16.msra.mxu0 0
    %2113 = vmatprep.subr.bf16.mxu0 0
    %2114 = vmatpush2.bf16.msra.mxu0 0
    %2115 = vmatprep.subr.bf16.mxu0 0
    %2116 = vmatpush2.bf16.msra.mxu0 0
    %2117 = vmatprep.subr.bf16.mxu0 0
    %2118 = vmatpush2.bf16.msra.mxu0 0
    %2119 = vmatprep.subr.bf16.mxu0 0
    %2120 = vmatpush2.bf16.msra.mxu0 0
    %2121 = vmatprep.subr.bf16.mxu0 0
    %2122 = vmatpush2.bf16.msra.mxu0 0
    %2123 = vmatprep.subr.bf16.mxu0 0
    %2124 = vmatpush2.bf16.msra.mxu0 0
    %2125 = vmatprep.mubr.bf16.mxu0 0
    %2126 = vmatmul.mubr.bf16.gmra.mxu0 %v2038
    %v2127 = vpop.f32.mrf.mxu0
    %v2128 = vadd.f32 %v2044, %v2127
    %v2129 = vpop.f32.mrf.mxu0
    %v2130 = vpop.f32.mrf.mxu0
    %v2131 = vadd.f32 %v2044, %v2130
    %v2132 = vpop.f32.mrf.mxu0
    %2133 = vmatprep.mubr.bf16.mxu0 0
    %2134 = vmatmul.mubr.bf16.gmra.mxu0 %v2039
    %v2135 = vpop.f32.mrf.mxu0
    %v2136 = vadd.f32 %v2044, %v2135
    %v2137 = vpop.f32.mrf.mxu0
    %v2138 = vpop.f32.mrf.mxu0
    %v2139 = vadd.f32 %v2044, %v2138
    %v2140 = vpop.f32.mrf.mxu0
    %2141 = vmatprep.mubr.bf16.mxu0 0
    %2142 = vmatmul.mubr.bf16.gmra.mxu0 %v2040
    %v2143 = vpop.f32.mrf.mxu0
    %v2144 = vadd.f32 %v2044, %v2143
    %v2145 = vpop.f32.mrf.mxu0
    %v2146 = vpop.f32.mrf.mxu0
    %v2147 = vpop.f32.mrf.mxu0
    %2148 = vdwg.mxu0
    %v2149 = vmax.f32 %v2128, 0.0
    %v2150 = vmax.f32 %v2131, 0.0
    %v2151 = vmax.f32 %v2136, 0.0
    %v2152 = vmax.f32 %v2139, 0.0
    %v2153 = vmax.f32 %v2144, 0.0
    %v2154 = vpack.c.bf16 %v2150, %v2149
    %v2155 = vpack.c.bf16 %v2152, %v2151
    %v2156 = vpack.c.bf16 %v2153, %v2153
    %v2157 = vlaneseq
    %v2158 = vshrl.u32 %v2157, 7
    %v2159 = vsub.s32 2, %v2158
    %v2160 = vrot.slane %v1915, %v2159
    %v2177 = vunpack.c.l.b16 %v1936
    %v2178 = vunpack.c.l.b16 %v1937
    %v2179 = vunpack.c.l.b16 %v1938
    %v2180 = vunpack.c.l.b16 %v1939
    %v2181 = vunpack.c.l.b16 %v1940
    %v2182 = vunpack.c.l.b16 %v1941
    %v2183 = vunpack.c.l.b16 %v1942
    %v2184 = vunpack.c.l.b16 %v1943
    %v2185 = vunpack.c.l.b16 %v1944
    %v2186 = vunpack.c.l.b16 %v1945
    %v2187 = vunpack.c.l.b16 %v1946
    %v2188 = vunpack.c.l.b16 %v1947
    %v2189 = vunpack.c.l.b16 %v1948
    %v2190 = vunpack.c.l.b16 %v1949
    %v2191 = vunpack.c.l.b16 %v1950
    %v2192 = vunpack.c.l.b16 %v1951
    %v2193 = vpack.c.b16 %v2178, %v2177
    %v2194 = vpack.c.b16 %v2180, %v2179
    %v2195 = vpack.c.b16 %v2182, %v2181
    %v2196 = vpack.c.b16 %v2184, %v2183
    %v2197 = vpack.c.b16 %v2186, %v2185
    %v2198 = vpack.c.b16 %v2188, %v2187
    %v2199 = vpack.c.b16 %v2190, %v2189
    %v2200 = vpack.c.b16 %v2192, %v2191
    %2209 = vmatprep.subr.bf16.mxu0 0
    %2210 = vmatpush1.bf16.msra.mxu0 %v2200
    %2211 = vmatprep.subr.bf16.mxu0 0
    %2212 = vmatpush1.bf16.msra.mxu0 %v2199
    %2213 = vmatprep.subr.bf16.mxu0 0
    %2214 = vmatpush1.bf16.msra.mxu0 %v2198
    %2215 = vmatprep.subr.bf16.mxu0 0
    %2216 = vmatpush1.bf16.msra.mxu0 %v2197
    %2217 = vmatprep.subr.bf16.mxu0 0
    %2218 = vmatpush1.bf16.msra.mxu0 %v2196
    %2219 = vmatprep.subr.bf16.mxu0 0
    %2220 = vmatpush1.bf16.msra.mxu0 %v2195
    %2221 = vmatprep.subr.bf16.mxu0 0
    %2222 = vmatpush1.bf16.msra.mxu0 %v2194
    %2223 = vmatprep.subr.bf16.mxu0 0
    %2224 = vmatpush1.bf16.msra.mxu0 %v2193
    %2225 = vmatprep.subr.bf16.mxu0 0
    %2226 = vmatpush2.bf16.msra.mxu0 0
    %2227 = vmatprep.subr.bf16.mxu0 0
    %2228 = vmatpush2.bf16.msra.mxu0 0
    %2229 = vmatprep.subr.bf16.mxu0 0
    %2230 = vmatpush2.bf16.msra.mxu0 0
    %2231 = vmatprep.subr.bf16.mxu0 0
    %2232 = vmatpush2.bf16.msra.mxu0 0
    %2233 = vmatprep.subr.bf16.mxu0 0
    %2234 = vmatpush2.bf16.msra.mxu0 0
    %2235 = vmatprep.subr.bf16.mxu0 0
    %2236 = vmatpush2.bf16.msra.mxu0 0
    %2237 = vmatprep.subr.bf16.mxu0 0
    %2238 = vmatpush2.bf16.msra.mxu0 0
    %2239 = vmatprep.subr.bf16.mxu0 0
    %2240 = vmatpush2.bf16.msra.mxu0 0
    %2241 = vmatprep.mubr.bf16.mxu0 0
    %2242 = vmatmul.mubr.bf16.gmra.mxu0 %v2154
    %v2243 = vpop.f32.mrf.mxu0
    %v2244 = vadd.f32 %v2160, %v2243
    %v2245 = vpop.f32.mrf.mxu0
    %v2246 = vpop.f32.mrf.mxu0
    %v2247 = vadd.f32 %v2160, %v2246
    %v2248 = vpop.f32.mrf.mxu0
    %2249 = vmatprep.mubr.bf16.mxu0 0
    %2250 = vmatmul.mubr.bf16.gmra.mxu0 %v2155
    %v2251 = vpop.f32.mrf.mxu0
    %v2252 = vadd.f32 %v2160, %v2251
    %v2253 = vpop.f32.mrf.mxu0
    %v2254 = vpop.f32.mrf.mxu0
    %v2255 = vadd.f32 %v2160, %v2254
    %v2256 = vpop.f32.mrf.mxu0
    %2257 = vmatprep.mubr.bf16.mxu0 0
    %2258 = vmatmul.mubr.bf16.gmra.mxu0 %v2156
    %v2259 = vpop.f32.mrf.mxu0
    %v2260 = vadd.f32 %v2160, %v2259
    %v2261 = vpop.f32.mrf.mxu0
    %v2262 = vpop.f32.mrf.mxu0
    %v2263 = vpop.f32.mrf.mxu0
    %2264 = vdwg.mxu0
    %v2265 = vadd.f32 %v2244, %v1904
    %v2266 = vadd.f32 %v2247, %v1905
    %v2267 = vadd.f32 %v2252, %v1906
    %v2268 = vadd.f32 %v2255, %v1907
    %v2269 = vadd.f32 %v2260, %v1908
    %v2270 = vmax.f32 %v2265, 0.0
    %v2271 = vmax.f32 %v2266, 0.0
    %v2272 = vmax.f32 %v2267, 0.0
    %v2273 = vmax.f32 %v2268, 0.0
    %v2274 = vmax.f32 %v2269, 0.0
    %s2275 = scalar_lea.vmem [#allocation11], 20
    %v2276 = vld [vmem:[%s2275] sm:$0x7]
    %s2277 = scalar_lea.vmem [#allocation10], 20
    %v2278 = vld [vmem:[%s2277] sm:$0x7]
    %s2279 = scalar_lea.vmem [#allocation13], 640
    %v2280 = vld [vmem:[%s2279] sm:$0xf]
    %v2281 = vld [vmem:[%s2279 + $0x4] sm:$0xf]
    %v2282 = vld [vmem:[%s2279 + $0x8] sm:$0xf]
    %v2283 = vld [vmem:[%s2279 + $0xc] sm:$0xf]
    %v2284 = vld [vmem:[%s2279 + $0x10] sm:$0xf]
    %v2285 = vld [vmem:[%s2279 + $0x14] sm:$0xf]
    %v2286 = vld [vmem:[%s2279 + $0x18] sm:$0xf]
    %v2287 = vld [vmem:[%s2279 + $0x1c] sm:$0xf]
    %v2288 = vld [vmem:[%s2279 + $0x20] sm:$0xf]
    %v2289 = vld [vmem:[%s2279 + $0x24] sm:$0xf]
    %v2290 = vld [vmem:[%s2279 + $0x28] sm:$0xf]
    %v2291 = vld [vmem:[%s2279 + $0x2c] sm:$0xf]
    %v2292 = vld [vmem:[%s2279 + $0x30] sm:$0xf]
    %v2293 = vld [vmem:[%s2279 + $0x34] sm:$0xf]
    %v2294 = vld [vmem:[%s2279 + $0x38] sm:$0xf]
    %v2295 = vld [vmem:[%s2279 + $0x3c] sm:$0xf]
    %s2296 = scalar_lea.vmem [#allocation13], 704
    %v2297 = vld [vmem:[%s2296] sm:$0xf]
    %v2298 = vld [vmem:[%s2296 + $0x4] sm:$0xf]
    %v2299 = vld [vmem:[%s2296 + $0x8] sm:$0xf]
    %v2300 = vld [vmem:[%s2296 + $0xc] sm:$0xf]
    %v2301 = vld [vmem:[%s2296 + $0x10] sm:$0xf]
    %v2302 = vld [vmem:[%s2296 + $0x14] sm:$0xf]
    %v2303 = vld [vmem:[%s2296 + $0x18] sm:$0xf]
    %v2304 = vld [vmem:[%s2296 + $0x1c] sm:$0xf]
    %v2305 = vld [vmem:[%s2296 + $0x20] sm:$0xf]
    %v2306 = vld [vmem:[%s2296 + $0x24] sm:$0xf]
    %v2307 = vld [vmem:[%s2296 + $0x28] sm:$0xf]
    %v2308 = vld [vmem:[%s2296 + $0x2c] sm:$0xf]
    %v2309 = vld [vmem:[%s2296 + $0x30] sm:$0xf]
    %v2310 = vld [vmem:[%s2296 + $0x34] sm:$0xf]
    %v2311 = vld [vmem:[%s2296 + $0x38] sm:$0xf]
    %v2312 = vld [vmem:[%s2296 + $0x3c] sm:$0xf]
    %v2318 = vrot.slane %v2270, 4
    %v2319 = vrot.slane %v2271, 4
    %v2320 = vsel %vm868, %v2318, %v2319
    %v2321 = vrot.slane %v2272, 4
    %v2322 = vsel %vm868, %v2319, %v2321
    %v2323 = vrot.slane %v2273, 4
    %v2324 = vsel %vm868, %v2321, %v2323
    %v2325 = vrot.slane %v2274, 4
    %v2326 = vsel %vm868, %v2323, %v2325
    %v2332 = vsel %vm868, 0.0, %v2318
    %v2333 = vlaneseq
    %v2334 = vshrl.u32 %v2333, 7
    %v2335 = vsub.s32 0, %v2334
    %v2336 = vrot.slane %v2278, %v2335
    %v2337 = vmul.f32 %v2332, %v2336
    %v2338 = vmul.f32 %v2320, %v2336
    %v2339 = vmul.f32 %v2322, %v2336
    %v2340 = vmul.f32 %v2324, %v2336
    %v2341 = vmul.f32 %v2326, %v2336
    %v2342 = vrot.slane %v2270, 6
    %v2343 = vrot.slane %v2271, 6
    %v2344 = vsel %vm164, %v2342, %v2343
    %v2345 = vrot.slane %v2272, 6
    %v2346 = vsel %vm164, %v2343, %v2345
    %v2347 = vrot.slane %v2273, 6
    %v2348 = vsel %vm164, %v2345, %v2347
    %v2349 = vrot.slane %v2274, 6
    %v2350 = vsel %vm164, %v2347, %v2349
    %v2356 = vsel %vm164, 0.0, %v2342
    %v2357 = vlaneseq
    %v2358 = vshrl.u32 %v2357, 7
    %v2359 = vsub.s32 1, %v2358
    %v2360 = vrot.slane %v2278, %v2359
    %v2361 = vmul.f32 %v2356, %v2360
    %v2362 = vmul.f32 %v2344, %v2360
    %v2363 = vmul.f32 %v2346, %v2360
    %v2364 = vmul.f32 %v2348, %v2360
    %v2365 = vmul.f32 %v2350, %v2360
    %v2366 = vadd.f32 %v2337, %v2361
    %v2367 = vadd.f32 %v2338, %v2362
    %v2368 = vadd.f32 %v2339, %v2363
    %v2369 = vadd.f32 %v2340, %v2364
    %v2370 = vadd.f32 %v2341, %v2365
    %v2371 = vlaneseq
    %v2372 = vshrl.u32 %v2371, 7
    %v2373 = vsub.s32 2, %v2372
    %v2374 = vrot.slane %v2278, %v2373
    %v2375 = vmul.f32 %v2270, %v2374
    %v2376 = vmul.f32 %v2271, %v2374
    %v2377 = vmul.f32 %v2272, %v2374
    %v2378 = vmul.f32 %v2273, %v2374
    %v2379 = vmul.f32 %v2274, %v2374
    %v2380 = vadd.f32 %v2366, %v2375
    %v2381 = vadd.f32 %v2367, %v2376
    %v2382 = vadd.f32 %v2368, %v2377
    %v2383 = vadd.f32 %v2369, %v2378
    %v2384 = vadd.f32 %v2370, %v2379
    %v2385 = vlaneseq
    %v2386 = vshrl.u32 %v2385, 7
    %v2387 = vsub.s32 0, %v2386
    %v2388 = vrot.slane %v2276, %v2387
    %v2389 = vadd.f32 %v2380, %v2388
    %v2390 = vadd.f32 %v2381, %v2388
    %v2391 = vadd.f32 %v2382, %v2388
    %v2392 = vadd.f32 %v2383, %v2388
    %v2393 = vadd.f32 %v2384, %v2388
    %v2394 = vmax.f32 %v2389, 0.0
    %v2395 = vmax.f32 %v2390, 0.0
    %v2396 = vmax.f32 %v2391, 0.0
    %v2397 = vmax.f32 %v2392, 0.0
    %v2398 = vmax.f32 %v2393, 0.0
    %v2399 = vpack.c.bf16 %v2395, %v2394
    %v2400 = vpack.c.bf16 %v2397, %v2396
    %v2401 = vpack.c.bf16 %v2398, %v2398
    %v2402 = vlaneseq
    %v2403 = vshrl.u32 %v2402, 7
    %v2404 = vsub.s32 1, %v2403
    %v2405 = vrot.slane %v2276, %v2404
    %v2422 = vunpack.c.l.b16 %v2280
    %v2423 = vunpack.c.l.b16 %v2281
    %v2424 = vunpack.c.l.b16 %v2282
    %v2425 = vunpack.c.l.b16 %v2283
    %v2426 = vunpack.c.l.b16 %v2284
    %v2427 = vunpack.c.l.b16 %v2285
    %v2428 = vunpack.c.l.b16 %v2286
    %v2429 = vunpack.c.l.b16 %v2287
    %v2430 = vunpack.c.l.b16 %v2288
    %v2431 = vunpack.c.l.b16 %v2289
    %v2432 = vunpack.c.l.b16 %v2290
    %v2433 = vunpack.c.l.b16 %v2291
    %v2434 = vunpack.c.l.b16 %v2292
    %v2435 = vunpack.c.l.b16 %v2293
    %v2436 = vunpack.c.l.b16 %v2294
    %v2437 = vunpack.c.l.b16 %v2295
    %v2438 = vpack.c.b16 %v2423, %v2422
    %v2439 = vpack.c.b16 %v2425, %v2424
    %v2440 = vpack.c.b16 %v2427, %v2426
    %v2441 = vpack.c.b16 %v2429, %v2428
    %v2442 = vpack.c.b16 %v2431, %v2430
    %v2443 = vpack.c.b16 %v2433, %v2432
    %v2444 = vpack.c.b16 %v2435, %v2434
    %v2445 = vpack.c.b16 %v2437, %v2436
    %2454 = vmatprep.subr.bf16.mxu0 0
    %2455 = vmatpush1.bf16.msra.mxu0 %v2445
    %2456 = vmatprep.subr.bf16.mxu0 0
    %2457 = vmatpush1.bf16.msra.mxu0 %v2444
    %2458 = vmatprep.subr.bf16.mxu0 0
    %2459 = vmatpush1.bf16.msra.mxu0 %v2443
    %2460 = vmatprep.subr.bf16.mxu0 0
    %2461 = vmatpush1.bf16.msra.mxu0 %v2442
    %2462 = vmatprep.subr.bf16.mxu0 0
    %2463 = vmatpush1.bf16.msra.mxu0 %v2441
    %2464 = vmatprep.subr.bf16.mxu0 0
    %2465 = vmatpush1.bf16.msra.mxu0 %v2440
    %2466 = vmatprep.subr.bf16.mxu0 0
    %2467 = vmatpush1.bf16.msra.mxu0 %v2439
    %2468 = vmatprep.subr.bf16.mxu0 0
    %2469 = vmatpush1.bf16.msra.mxu0 %v2438
    %2470 = vmatprep.subr.bf16.mxu0 0
    %2471 = vmatpush2.bf16.msra.mxu0 0
    %2472 = vmatprep.subr.bf16.mxu0 0
    %2473 = vmatpush2.bf16.msra.mxu0 0
    %2474 = vmatprep.subr.bf16.mxu0 0
    %2475 = vmatpush2.bf16.msra.mxu0 0
    %2476 = vmatprep.subr.bf16.mxu0 0
    %2477 = vmatpush2.bf16.msra.mxu0 0
    %2478 = vmatprep.subr.bf16.mxu0 0
    %2479 = vmatpush2.bf16.msra.mxu0 0
    %2480 = vmatprep.subr.bf16.mxu0 0
    %2481 = vmatpush2.bf16.msra.mxu0 0
    %2482 = vmatprep.subr.bf16.mxu0 0
    %2483 = vmatpush2.bf16.msra.mxu0 0
    %2484 = vmatprep.subr.bf16.mxu0 0
    %2485 = vmatpush2.bf16.msra.mxu0 0
    %2486 = vmatprep.mubr.bf16.mxu0 0
    %2487 = vmatmul.mubr.bf16.gmra.mxu0 %v2399
    %v2488 = vpop.f32.mrf.mxu0
    %v2489 = vadd.f32 %v2405, %v2488
    %v2490 = vpop.f32.mrf.mxu0
    %v2491 = vpop.f32.mrf.mxu0
    %v2492 = vadd.f32 %v2405, %v2491
    %v2493 = vpop.f32.mrf.mxu0
    %2494 = vmatprep.mubr.bf16.mxu0 0
    %2495 = vmatmul.mubr.bf16.gmra.mxu0 %v2400
    %v2496 = vpop.f32.mrf.mxu0
    %v2497 = vadd.f32 %v2405, %v2496
    %v2498 = vpop.f32.mrf.mxu0
    %v2499 = vpop.f32.mrf.mxu0
    %v2500 = vadd.f32 %v2405, %v2499
    %v2501 = vpop.f32.mrf.mxu0
    %2502 = vmatprep.mubr.bf16.mxu0 0
    %2503 = vmatmul.mubr.bf16.gmra.mxu0 %v2401
    %v2504 = vpop.f32.mrf.mxu0
    %v2505 = vadd.f32 %v2405, %v2504
    %v2506 = vpop.f32.mrf.mxu0
    %v2507 = vpop.f32.mrf.mxu0
    %v2508 = vpop.f32.mrf.mxu0
    %2509 = vdwg.mxu0
    %v2510 = vmax.f32 %v2489, 0.0
    %v2511 = vmax.f32 %v2492, 0.0
    %v2512 = vmax.f32 %v2497, 0.0
    %v2513 = vmax.f32 %v2500, 0.0
    %v2514 = vmax.f32 %v2505, 0.0
    %v2515 = vpack.c.bf16 %v2511, %v2510
    %v2516 = vpack.c.bf16 %v2513, %v2512
    %v2517 = vpack.c.bf16 %v2514, %v2514
    %v2518 = vlaneseq
    %v2519 = vshrl.u32 %v2518, 7
    %v2520 = vsub.s32 2, %v2519
    %v2521 = vrot.slane %v2276, %v2520
    %v2538 = vunpack.c.l.b16 %v2297
    %v2539 = vunpack.c.l.b16 %v2298
    %v2540 = vunpack.c.l.b16 %v2299
    %v2541 = vunpack.c.l.b16 %v2300
    %v2542 = vunpack.c.l.b16 %v2301
    %v2543 = vunpack.c.l.b16 %v2302
    %v2544 = vunpack.c.l.b16 %v2303
    %v2545 = vunpack.c.l.b16 %v2304
    %v2546 = vunpack.c.l.b16 %v2305
    %v2547 = vunpack.c.l.b16 %v2306
    %v2548 = vunpack.c.l.b16 %v2307
    %v2549 = vunpack.c.l.b16 %v2308
    %v2550 = vunpack.c.l.b16 %v2309
    %v2551 = vunpack.c.l.b16 %v2310
    %v2552 = vunpack.c.l.b16 %v2311
    %v2553 = vunpack.c.l.b16 %v2312
    %v2554 = vpack.c.b16 %v2539, %v2538
    %v2555 = vpack.c.b16 %v2541, %v2540
    %v2556 = vpack.c.b16 %v2543, %v2542
    %v2557 = vpack.c.b16 %v2545, %v2544
    %v2558 = vpack.c.b16 %v2547, %v2546
    %v2559 = vpack.c.b16 %v2549, %v2548
    %v2560 = vpack.c.b16 %v2551, %v2550
    %v2561 = vpack.c.b16 %v2553, %v2552
    %2570 = vmatprep.subr.bf16.mxu0 0
    %2571 = vmatpush1.bf16.msra.mxu0 %v2561
    %2572 = vmatprep.subr.bf16.mxu0 0
    %2573 = vmatpush1.bf16.msra.mxu0 %v2560
    %2574 = vmatprep.subr.bf16.mxu0 0
    %2575 = vmatpush1.bf16.msra.mxu0 %v2559
    %2576 = vmatprep.subr.bf16.mxu0 0
    %2577 = vmatpush1.bf16.msra.mxu0 %v2558
    %2578 = vmatprep.subr.bf16.mxu0 0
    %2579 = vmatpush1.bf16.msra.mxu0 %v2557
    %2580 = vmatprep.subr.bf16.mxu0 0
    %2581 = vmatpush1.bf16.msra.mxu0 %v2556
    %2582 = vmatprep.subr.bf16.mxu0 0
    %2583 = vmatpush1.bf16.msra.mxu0 %v2555
    %2584 = vmatprep.subr.bf16.mxu0 0
    %2585 = vmatpush1.bf16.msra.mxu0 %v2554
    %2586 = vmatprep.subr.bf16.mxu0 0
    %2587 = vmatpush2.bf16.msra.mxu0 0
    %2588 = vmatprep.subr.bf16.mxu0 0
    %2589 = vmatpush2.bf16.msra.mxu0 0
    %2590 = vmatprep.subr.bf16.mxu0 0
    %2591 = vmatpush2.bf16.msra.mxu0 0
    %2592 = vmatprep.subr.bf16.mxu0 0
    %2593 = vmatpush2.bf16.msra.mxu0 0
    %2594 = vmatprep.subr.bf16.mxu0 0
    %2595 = vmatpush2.bf16.msra.mxu0 0
    %2596 = vmatprep.subr.bf16.mxu0 0
    %2597 = vmatpush2.bf16.msra.mxu0 0
    %2598 = vmatprep.subr.bf16.mxu0 0
    %2599 = vmatpush2.bf16.msra.mxu0 0
    %2600 = vmatprep.subr.bf16.mxu0 0
    %2601 = vmatpush2.bf16.msra.mxu0 0
    %2602 = vmatprep.mubr.bf16.mxu0 0
    %2603 = vmatmul.mubr.bf16.gmra.mxu0 %v2515
    %v2604 = vpop.f32.mrf.mxu0
    %v2605 = vadd.f32 %v2521, %v2604
    %v2606 = vpop.f32.mrf.mxu0
    %v2607 = vpop.f32.mrf.mxu0
    %v2608 = vadd.f32 %v2521, %v2607
    %v2609 = vpop.f32.mrf.mxu0
    %2610 = vmatprep.mubr.bf16.mxu0 0
    %2611 = vmatmul.mubr.bf16.gmra.mxu0 %v2516
    %v2612 = vpop.f32.mrf.mxu0
    %v2613 = vadd.f32 %v2521, %v2612
    %v2614 = vpop.f32.mrf.mxu0
    %v2615 = vpop.f32.mrf.mxu0
    %v2616 = vadd.f32 %v2521, %v2615
    %v2617 = vpop.f32.mrf.mxu0
    %2618 = vmatprep.mubr.bf16.mxu0 0
    %2619 = vmatmul.mubr.bf16.gmra.mxu0 %v2517
    %v2620 = vpop.f32.mrf.mxu0
    %v2621 = vadd.f32 %v2521, %v2620
    %v2622 = vpop.f32.mrf.mxu0
    %v2623 = vpop.f32.mrf.mxu0
    %v2624 = vpop.f32.mrf.mxu0
    %2625 = vdwg.mxu0
    %v2626 = vadd.f32 %v2605, %v2270
    %v2627 = vadd.f32 %v2608, %v2271
    %v2628 = vadd.f32 %v2613, %v2272
    %v2629 = vadd.f32 %v2616, %v2273
    %v2630 = vadd.f32 %v2621, %v2274
    %v2631 = vmax.f32 %v2626, 0.0
    %v2632 = vmax.f32 %v2627, 0.0
    %v2633 = vmax.f32 %v2628, 0.0
    %v2634 = vmax.f32 %v2629, 0.0
    %v2635 = vmax.f32 %v2630, 0.0
    %v2636 = vadd.f32 %v1909, %v2631
    %v2637 = vadd.f32 %v1910, %v2632
    %v2638 = vadd.f32 %v1911, %v2633
    %v2639 = vadd.f32 %v1912, %v2634
    %v2640 = vadd.f32 %v1913, %v2635
    %2641 = vst [vmem:[#allocation14] sm:$0xff] %v2636
    %2642 = vst [vmem:[#allocation14 + $0x8] sm:$0xff] %v2637
    %2643 = vst [vmem:[#allocation14 + $0x10] sm:$0xff] %v2638
    %2644 = vst [vmem:[#allocation14 + $0x18] sm:$0xff] %v2639
    %2645 = vst [vmem:[#allocation14 + $0x20] sm:$0xff] %v2640
    // Predicated region
    $region66: #{tpu_custom_call.1} parent=1 // pred_check
      _
    $region67: #{tpu_custom_call.1} parent=1 // pred_check_branch
      %2647 = sbr.rel (0) target = $region69
    $region68: #{tpu_custom_call.1} parent=1 // pred_region
      %s2649 = ssub.s32 640, 640
      %2650 = vsyncadd [#allocation4], %s2649
      %s2651 = sshll.u32 [#allocation14], 4
      %s2652 = int_to_ptr.vmem [resolvable:$true] %s2651
      %2657 = dma.vmem_to_hbm [thread:$0]  %s2652, 640, %s9, [#allocation4], 128, 128, 8
    $region69: #{tpu_custom_call.1} parent=1 // pred_fallthru
      _
    // Predicated region
    $region70: #{tpu_custom_call.1} parent=1 // pred_check
      _
    $region71: #{tpu_custom_call.1} parent=1 // pred_check_branch
      %2659 = sbr.rel (0) target = $region73
    $region72: #{tpu_custom_call.1} parent=1 // pred_region
      %2660 = dma.done [#allocation4], 640
    $region73: #{tpu_custom_call.1} parent=1 // pred_fallthru
      _
    %2661 = vsyncpa [#allocation3], 1
    %2662 = vsyncpa [#allocation6], 1
    %2663 = vsyncpa [#allocation9], 1
    %2664 = vsyncpa [#allocation12], 1
    %2665 = vsyncpa [#allocation4], 1

</llo_original>
